<compile_context>
chip_gen: v5e
topology: v5e:2x2
jax: 0.10.0
libtpu: 0.0.40
codegen_flags: <defaults>
</compile_context>

<pallas_src>
import functools

import jax
import jax.numpy as jnp
from jax.experimental import pallas as pl
from jax.experimental.pallas import tpu as pltpu

K = 7          # conv kernel size
PAD = K // 2   # 'same' padding for odd kernel, stride 1


def _pad_lanes(a, bt):
    """Zero-pad a (Bt, L) register array to (Bt, L + 2*PAD) along lanes."""
    z = jnp.zeros((bt, PAD), jnp.float32)
    return jnp.concatenate([z, a, z], axis=-1)


def _basic_block1d_kernel(x_ref, w1_ref, b1_ref, w2_ref, b2_ref, out_ref,
                          *, cin, cout, L):
    """x_ref: (Bt, Cin, L) VMEM block.  w*/b* refs: flat f32 arrays in SMEM.

    Weights are BN-scale-folded, flattened in (Cout, Cin, K) order.
    """
    bt = x_ref.shape[0]

    # Load per input channel: (Bt, L) with L lane-dense.
    xs = [x_ref[:, c, :].astype(jnp.float32) for c in range(cin)]
    xps = [_pad_lanes(xc, bt) for xc in xs]                     # (Bt, L + 2*PAD)

    # conv1 (BN1 scale folded in) -> +bias -> ReLU.  Dropout = identity (eval).
    hps = []
    for co in range(cout):
        acc = jnp.zeros((bt, L), jnp.float32)
        for c in range(cin):
            base = (co * cin + c) * K
            for k in range(K):
                acc = acc + xps[c][:, k:k + L] * w1_ref[base + k]
        h = jnp.maximum(acc + b1_ref[co], 0.0)
        hps.append(_pad_lanes(h, bt))                           # pad for conv2

    # conv2 (BN2 scale folded in) -> +bias -> +residual -> ReLU.
    outs = []
    for co in range(cout):
        acc = jnp.zeros((bt, L), jnp.float32)
        for c in range(cout):
            base = (co * cout + c) * K
            for k in range(K):
                acc = acc + hps[c][:, k:k + L] * w2_ref[base + k]
        outs.append(jnp.maximum(acc + b2_ref[co] + xs[co], 0.0))

    out_ref[...] = jnp.stack(outs, axis=1).astype(out_ref.dtype)


def _pick_batch_tile(B):
    """Largest of {8,4,2,1} dividing B while keeping >= 2 grid steps (if B>=2)."""
    for bt in (8, 4, 2, 1):
        if B % bt == 0 and (B // bt >= 2 or B < 2):
            return bt
    return 1


def basic_block1d(x, w1, gamma1, beta1, mean1, var1,
                  w2, gamma2, beta2, mean2, var2, eps=1e-5):
    """Eval-mode forward of BasicBlock1d.

    x: (B, Cin, L).  w1: (P, Cin, K).  w2: (P, P, K).  BN params: (P,).
    Returns (B, P, L) in x.dtype.
    """
    B, Cin, L = x.shape
    P = w1.shape[0]
    assert w1.shape == (P, Cin, K) and w2.shape == (P, P, K)
    assert Cin == P, "downsample=None requires inplanes == planes"
    # TODO(synk): training-mode BatchNorm (batch stats), stochastic Dropout and
    # the optional downsample branch are not implemented (eval semantics only).
    # TODO(synk): for realistic channel counts (C >= 128) the per-tap scalar
    # updates should become a single im2col (L, K*Cin) @ (K*Cin, Cout) MXU dot.

    f32 = jnp.float32
    # Fold BN running stats: BN(y) = y * s + (beta - mean * s), with conv linear
    # the scale is pushed into the conv weights.
    s1 = gamma1.astype(f32) / jnp.sqrt(var1.astype(f32) + eps)
    s2 = gamma2.astype(f32) / jnp.sqrt(var2.astype(f32) + eps)
    b1 = beta1.astype(f32) - mean1.astype(f32) * s1               # (P,)
    b2 = beta2.astype(f32) - mean2.astype(f32) * s2               # (P,)
    w1f = (w1.astype(f32) * s1[:, None, None]).reshape(-1)        # (P*Cin*K,)
    w2f = (w2.astype(f32) * s2[:, None, None]).reshape(-1)        # (P*P*K,)

    Bt = _pick_batch_tile(B)
    grid = (B // Bt,)

    kernel = functools.partial(_basic_block1d_kernel, cin=Cin, cout=P, L=L)
    smem = pl.BlockSpec(memory_space=pltpu.MemorySpace.SMEM)
    return pl.pallas_call(
        kernel,
        out_shape=jax.ShapeDtypeStruct((B, P, L), x.dtype),
        grid=grid,
        in_specs=[
            pl.BlockSpec((Bt, Cin, L), lambda b: (b, 0, 0)),  # x tile (pipelined)
            smem,                                             # conv1 weights (flat)
            smem,                                             # bn1 bias
            smem,                                             # conv2 weights (flat)
            smem,                                             # bn2 bias
        ],
        out_specs=pl.BlockSpec((Bt, P, L), lambda b: (b, 0, 0)),
        compiler_params=pltpu.CompilerParams(
            dimension_semantics=("parallel",)),
    )(x, w1f, b1, w2f, b2)


if __name__ == "__main__":
    key = jax.random.PRNGKey(0)
    ks = jax.random.split(key, 11)

    B, C, L = 2, 4, 16   # batch=2, inplanes=planes=4, length=16
    x = jax.random.normal(ks[0], (B, C, L), jnp.float32)

    w1 = 0.3 * jax.random.normal(ks[1], (C, C, K), jnp.float32)
    g1 = 1.0 + 0.1 * jax.random.normal(ks[2], (C,), jnp.float32)
    be1 = 0.1 * jax.random.normal(ks[3], (C,), jnp.float32)
    m1 = 0.1 * jax.random.normal(ks[4], (C,), jnp.float32)
    v1 = jax.random.uniform(ks[5], (C,), jnp.float32, minval=0.5, maxval=1.5)

    w2 = 0.3 * jax.random.normal(ks[6], (C, C, K), jnp.float32)
    g2 = 1.0 + 0.1 * jax.random.normal(ks[7], (C,), jnp.float32)
    be2 = 0.1 * jax.random.normal(ks[8], (C,), jnp.float32)
    m2 = 0.1 * jax.random.normal(ks[9], (C,), jnp.float32)
    v2 = jax.random.uniform(ks[10], (C,), jnp.float32, minval=0.5, maxval=1.5)

    y = basic_block1d(x, w1, g1, be1, m1, v1, w2, g2, be2, m2, v2)
    jax.block_until_ready(y)

    # Pure-JAX reference of the PyTorch eval-mode forward.
    def conv1d_same(a, w):
        return jax.lax.conv_general_dilated(
            a, w, window_strides=(1,), padding=[(PAD, PAD)],
            dimension_numbers=("NCH", "OIH", "NCH"),
            precision=jax.lax.Precision.HIGHEST)

    def bn(a, g, b, m, v, eps=1e-5):
        return (a - m[None, :, None]) / jnp.sqrt(v[None, :, None] + eps) \
               * g[None, :, None] + b[None, :, None]

    h_ref = jnp.maximum(bn(conv1d_same(x, w1), g1, be1, m1, v1), 0.0)
    h_ref = bn(conv1d_same(h_ref, w2), g2, be2, m2, v2)
    ref = jnp.maximum(h_ref + x, 0.0)

    err = float(jnp.max(jnp.abs(y - ref)))
    assert jnp.allclose(y, ref, atol=1e-4, rtol=1e-4), ("max abs err", err)

    print("KERNEL_OK")
</pallas_src>

<mosaic_0001>
module attributes {stable_mosaic.version = 11 : i64} {
  func.func @_basic_block1d_kernel(%arg0: i32, %arg1: memref<1x4x16xf32, #tpu.memory_space<vmem>>, %arg2: memref<112xf32, #tpu.memory_space<smem>>, %arg3: memref<4xf32, #tpu.memory_space<smem>>, %arg4: memref<112xf32, #tpu.memory_space<smem>>, %arg5: memref<4xf32, #tpu.memory_space<smem>>, %arg6: memref<1x4x16xf32, #tpu.memory_space<vmem>>) attributes {dimension_semantics = [#tpu.dimension_semantics<parallel>], iteration_bounds = array<i64: 2>, scalar_prefetch = 0 : i64, scratch_operands = 0 : i64, tpu.core_type = #tpu.core_type<tc>, window_params = [{transform_indices = @transform_0, window_bounds = array<i64: 1, 4, 16>}, {transform_indices = @transform_1, window_bounds = array<i64: 112>}, {transform_indices = @transform_2, window_bounds = array<i64: 4>}, {transform_indices = @transform_3, window_bounds = array<i64: 112>}, {transform_indices = @transform_4, window_bounds = array<i64: 4>}, {transform_indices = @transform_5, window_bounds = array<i64: 1, 4, 16>}]} {
    %c0 = arith.constant 0 : index
    %c0_0 = arith.constant 0 : index
    %c0_1 = arith.constant 0 : index
    %0 = vector.load %arg1[%c0, %c0_0, %c0_1] : memref<1x4x16xf32, #tpu.memory_space<vmem>>, vector<1x1x16xf32>
    %1 = vector.shape_cast %0 : vector<1x1x16xf32> to vector<1x16xf32>
    %c0_2 = arith.constant 0 : index
    %c1 = arith.constant 1 : index
    %c0_3 = arith.constant 0 : index
    %2 = vector.load %arg1[%c0_2, %c1, %c0_3] : memref<1x4x16xf32, #tpu.memory_space<vmem>>, vector<1x1x16xf32>
    %3 = vector.shape_cast %2 : vector<1x1x16xf32> to vector<1x16xf32>
    %c0_4 = arith.constant 0 : index
    %c2 = arith.constant 2 : index
    %c0_5 = arith.constant 0 : index
    %4 = vector.load %arg1[%c0_4, %c2, %c0_5] : memref<1x4x16xf32, #tpu.memory_space<vmem>>, vector<1x1x16xf32>
    %5 = vector.shape_cast %4 : vector<1x1x16xf32> to vector<1x16xf32>
    %c0_6 = arith.constant 0 : index
    %c3 = arith.constant 3 : index
    %c0_7 = arith.constant 0 : index
    %6 = vector.load %arg1[%c0_6, %c3, %c0_7] : memref<1x4x16xf32, #tpu.memory_space<vmem>>, vector<1x1x16xf32>
    %7 = vector.shape_cast %6 : vector<1x1x16xf32> to vector<1x16xf32>
    %cst = arith.constant 0.000000e+00 : f32
    %8 = vector.broadcast %cst : f32 to vector<1x3xf32>
    %9 = tpu.concatenate %8, %1, %8 in 1 : vector<1x3xf32>, vector<1x16xf32>, vector<1x3xf32> -> vector<1x22xf32>
    %cst_8 = arith.constant 0.000000e+00 : f32
    %10 = vector.broadcast %cst_8 : f32 to vector<1x3xf32>
    %11 = tpu.concatenate %10, %3, %10 in 1 : vector<1x3xf32>, vector<1x16xf32>, vector<1x3xf32> -> vector<1x22xf32>
    %cst_9 = arith.constant 0.000000e+00 : f32
    %12 = vector.broadcast %cst_9 : f32 to vector<1x3xf32>
    %13 = tpu.concatenate %12, %5, %12 in 1 : vector<1x3xf32>, vector<1x16xf32>, vector<1x3xf32> -> vector<1x22xf32>
    %cst_10 = arith.constant 0.000000e+00 : f32
    %14 = vector.broadcast %cst_10 : f32 to vector<1x3xf32>
    %15 = tpu.concatenate %14, %7, %14 in 1 : vector<1x3xf32>, vector<1x16xf32>, vector<1x3xf32> -> vector<1x22xf32>
    %cst_11 = arith.constant 0.000000e+00 : f32
    %16 = vector.broadcast %cst_11 : f32 to vector<1x16xf32>
    %17 = vector.extract_strided_slice %9 {offsets = [0, 0], sizes = [1, 16], strides = [1, 1]} : vector<1x22xf32> to vector<1x16xf32>
    %c0_12 = arith.constant 0 : index
    %18 = memref.load %arg2[%c0_12] : memref<112xf32, #tpu.memory_space<smem>>
    %19 = vector.broadcast %18 : f32 to vector<1x16xf32>
    %20 = arith.mulf %17, %19 : vector<1x16xf32>
    %21 = arith.addf %16, %20 : vector<1x16xf32>
    %22 = vector.extract_strided_slice %9 {offsets = [0, 1], sizes = [1, 16], strides = [1, 1]} : vector<1x22xf32> to vector<1x16xf32>
    %c1_13 = arith.constant 1 : index
    %23 = memref.load %arg2[%c1_13] : memref<112xf32, #tpu.memory_space<smem>>
    %24 = vector.broadcast %23 : f32 to vector<1x16xf32>
    %25 = arith.mulf %22, %24 : vector<1x16xf32>
    %26 = arith.addf %21, %25 : vector<1x16xf32>
    %27 = vector.extract_strided_slice %9 {offsets = [0, 2], sizes = [1, 16], strides = [1, 1]} : vector<1x22xf32> to vector<1x16xf32>
    %c2_14 = arith.constant 2 : index
    %28 = memref.load %arg2[%c2_14] : memref<112xf32, #tpu.memory_space<smem>>
    %29 = vector.broadcast %28 : f32 to vector<1x16xf32>
    %30 = arith.mulf %27, %29 : vector<1x16xf32>
    %31 = arith.addf %26, %30 : vector<1x16xf32>
    %32 = vector.extract_strided_slice %9 {offsets = [0, 3], sizes = [1, 16], strides = [1, 1]} : vector<1x22xf32> to vector<1x16xf32>
    %c3_15 = arith.constant 3 : index
    %33 = memref.load %arg2[%c3_15] : memref<112xf32, #tpu.memory_space<smem>>
    %34 = vector.broadcast %33 : f32 to vector<1x16xf32>
    %35 = arith.mulf %32, %34 : vector<1x16xf32>
    %36 = arith.addf %31, %35 : vector<1x16xf32>
    %37 = vector.extract_strided_slice %9 {offsets = [0, 4], sizes = [1, 16], strides = [1, 1]} : vector<1x22xf32> to vector<1x16xf32>
    %c4 = arith.constant 4 : index
    %38 = memref.load %arg2[%c4] : memref<112xf32, #tpu.memory_space<smem>>
    %39 = vector.broadcast %38 : f32 to vector<1x16xf32>
    %40 = arith.mulf %37, %39 : vector<1x16xf32>
    %41 = arith.addf %36, %40 : vector<1x16xf32>
    %42 = vector.extract_strided_slice %9 {offsets = [0, 5], sizes = [1, 16], strides = [1, 1]} : vector<1x22xf32> to vector<1x16xf32>
    %c5 = arith.constant 5 : index
    %43 = memref.load %arg2[%c5] : memref<112xf32, #tpu.memory_space<smem>>
    %44 = vector.broadcast %43 : f32 to vector<1x16xf32>
    %45 = arith.mulf %42, %44 : vector<1x16xf32>
    %46 = arith.addf %41, %45 : vector<1x16xf32>
    %47 = vector.extract_strided_slice %9 {offsets = [0, 6], sizes = [1, 16], strides = [1, 1]} : vector<1x22xf32> to vector<1x16xf32>
    %c6 = arith.constant 6 : index
    %48 = memref.load %arg2[%c6] : memref<112xf32, #tpu.memory_space<smem>>
    %49 = vector.broadcast %48 : f32 to vector<1x16xf32>
    %50 = arith.mulf %47, %49 : vector<1x16xf32>
    %51 = arith.addf %46, %50 : vector<1x16xf32>
    %52 = vector.extract_strided_slice %11 {offsets = [0, 0], sizes = [1, 16], strides = [1, 1]} : vector<1x22xf32> to vector<1x16xf32>
    %c7 = arith.constant 7 : index
    %53 = memref.load %arg2[%c7] : memref<112xf32, #tpu.memory_space<smem>>
    %54 = vector.broadcast %53 : f32 to vector<1x16xf32>
    %55 = arith.mulf %52, %54 : vector<1x16xf32>
    %56 = arith.addf %51, %55 : vector<1x16xf32>
    %57 = vector.extract_strided_slice %11 {offsets = [0, 1], sizes = [1, 16], strides = [1, 1]} : vector<1x22xf32> to vector<1x16xf32>
    %c8 = arith.constant 8 : index
    %58 = memref.load %arg2[%c8] : memref<112xf32, #tpu.memory_space<smem>>
    %59 = vector.broadcast %58 : f32 to vector<1x16xf32>
    %60 = arith.mulf %57, %59 : vector<1x16xf32>
    %61 = arith.addf %56, %60 : vector<1x16xf32>
    %62 = vector.extract_strided_slice %11 {offsets = [0, 2], sizes = [1, 16], strides = [1, 1]} : vector<1x22xf32> to vector<1x16xf32>
    %c9 = arith.constant 9 : index
    %63 = memref.load %arg2[%c9] : memref<112xf32, #tpu.memory_space<smem>>
    %64 = vector.broadcast %63 : f32 to vector<1x16xf32>
    %65 = arith.mulf %62, %64 : vector<1x16xf32>
    %66 = arith.addf %61, %65 : vector<1x16xf32>
    %67 = vector.extract_strided_slice %11 {offsets = [0, 3], sizes = [1, 16], strides = [1, 1]} : vector<1x22xf32> to vector<1x16xf32>
    %c10 = arith.constant 10 : index
    %68 = memref.load %arg2[%c10] : memref<112xf32, #tpu.memory_space<smem>>
    %69 = vector.broadcast %68 : f32 to vector<1x16xf32>
    %70 = arith.mulf %67, %69 : vector<1x16xf32>
    %71 = arith.addf %66, %70 : vector<1x16xf32>
    %72 = vector.extract_strided_slice %11 {offsets = [0, 4], sizes = [1, 16], strides = [1, 1]} : vector<1x22xf32> to vector<1x16xf32>
    %c11 = arith.constant 11 : index
    %73 = memref.load %arg2[%c11] : memref<112xf32, #tpu.memory_space<smem>>
    %74 = vector.broadcast %73 : f32 to vector<1x16xf32>
    %75 = arith.mulf %72, %74 : vector<1x16xf32>
    %76 = arith.addf %71, %75 : vector<1x16xf32>
    %77 = vector.extract_strided_slice %11 {offsets = [0, 5], sizes = [1, 16], strides = [1, 1]} : vector<1x22xf32> to vector<1x16xf32>
    %c12 = arith.constant 12 : index
    %78 = memref.load %arg2[%c12] : memref<112xf32, #tpu.memory_space<smem>>
    %79 = vector.broadcast %78 : f32 to vector<1x16xf32>
    %80 = arith.mulf %77, %79 : vector<1x16xf32>
    %81 = arith.addf %76, %80 : vector<1x16xf32>
    %82 = vector.extract_strided_slice %11 {offsets = [0, 6], sizes = [1, 16], strides = [1, 1]} : vector<1x22xf32> to vector<1x16xf32>
    %c13 = arith.constant 13 : index
    %83 = memref.load %arg2[%c13] : memref<112xf32, #tpu.memory_space<smem>>
    %84 = vector.broadcast %83 : f32 to vector<1x16xf32>
    %85 = arith.mulf %82, %84 : vector<1x16xf32>
    %86 = arith.addf %81, %85 : vector<1x16xf32>
    %87 = vector.extract_strided_slice %13 {offsets = [0, 0], sizes = [1, 16], strides = [1, 1]} : vector<1x22xf32> to vector<1x16xf32>
    %c14 = arith.constant 14 : index
    %88 = memref.load %arg2[%c14] : memref<112xf32, #tpu.memory_space<smem>>
    %89 = vector.broadcast %88 : f32 to vector<1x16xf32>
    %90 = arith.mulf %87, %89 : vector<1x16xf32>
    %91 = arith.addf %86, %90 : vector<1x16xf32>
    %92 = vector.extract_strided_slice %13 {offsets = [0, 1], sizes = [1, 16], strides = [1, 1]} : vector<1x22xf32> to vector<1x16xf32>
    %c15 = arith.constant 15 : index
    %93 = memref.load %arg2[%c15] : memref<112xf32, #tpu.memory_space<smem>>
    %94 = vector.broadcast %93 : f32 to vector<1x16xf32>
    %95 = arith.mulf %92, %94 : vector<1x16xf32>
    %96 = arith.addf %91, %95 : vector<1x16xf32>
    %97 = vector.extract_strided_slice %13 {offsets = [0, 2], sizes = [1, 16], strides = [1, 1]} : vector<1x22xf32> to vector<1x16xf32>
    %c16 = arith.constant 16 : index
    %98 = memref.load %arg2[%c16] : memref<112xf32, #tpu.memory_space<smem>>
    %99 = vector.broadcast %98 : f32 to vector<1x16xf32>
    %100 = arith.mulf %97, %99 : vector<1x16xf32>
    %101 = arith.addf %96, %100 : vector<1x16xf32>
    %102 = vector.extract_strided_slice %13 {offsets = [0, 3], sizes = [1, 16], strides = [1, 1]} : vector<1x22xf32> to vector<1x16xf32>
    %c17 = arith.constant 17 : index
    %103 = memref.load %arg2[%c17] : memref<112xf32, #tpu.memory_space<smem>>
    %104 = vector.broadcast %103 : f32 to vector<1x16xf32>
    %105 = arith.mulf %102, %104 : vector<1x16xf32>
    %106 = arith.addf %101, %105 : vector<1x16xf32>
    %107 = vector.extract_strided_slice %13 {offsets = [0, 4], sizes = [1, 16], strides = [1, 1]} : vector<1x22xf32> to vector<1x16xf32>
    %c18 = arith.constant 18 : index
    %108 = memref.load %arg2[%c18] : memref<112xf32, #tpu.memory_space<smem>>
    %109 = vector.broadcast %108 : f32 to vector<1x16xf32>
    %110 = arith.mulf %107, %109 : vector<1x16xf32>
    %111 = arith.addf %106, %110 : vector<1x16xf32>
    %112 = vector.extract_strided_slice %13 {offsets = [0, 5], sizes = [1, 16], strides = [1, 1]} : vector<1x22xf32> to vector<1x16xf32>
    %c19 = arith.constant 19 : index
    %113 = memref.load %arg2[%c19] : memref<112xf32, #tpu.memory_space<smem>>
    %114 = vector.broadcast %113 : f32 to vector<1x16xf32>
    %115 = arith.mulf %112, %114 : vector<1x16xf32>
    %116 = arith.addf %111, %115 : vector<1x16xf32>
    %117 = vector.extract_strided_slice %13 {offsets = [0, 6], sizes = [1, 16], strides = [1, 1]} : vector<1x22xf32> to vector<1x16xf32>
    %c20 = arith.constant 20 : index
    %118 = memref.load %arg2[%c20] : memref<112xf32, #tpu.memory_space<smem>>
    %119 = vector.broadcast %118 : f32 to vector<1x16xf32>
    %120 = arith.mulf %117, %119 : vector<1x16xf32>
    %121 = arith.addf %116, %120 : vector<1x16xf32>
    %122 = vector.extract_strided_slice %15 {offsets = [0, 0], sizes = [1, 16], strides = [1, 1]} : vector<1x22xf32> to vector<1x16xf32>
    %c21 = arith.constant 21 : index
    %123 = memref.load %arg2[%c21] : memref<112xf32, #tpu.memory_space<smem>>
    %124 = vector.broadcast %123 : f32 to vector<1x16xf32>
    %125 = arith.mulf %122, %124 : vector<1x16xf32>
    %126 = arith.addf %121, %125 : vector<1x16xf32>
    %127 = vector.extract_strided_slice %15 {offsets = [0, 1], sizes = [1, 16], strides = [1, 1]} : vector<1x22xf32> to vector<1x16xf32>
    %c22 = arith.constant 22 : index
    %128 = memref.load %arg2[%c22] : memref<112xf32, #tpu.memory_space<smem>>
    %129 = vector.broadcast %128 : f32 to vector<1x16xf32>
    %130 = arith.mulf %127, %129 : vector<1x16xf32>
    %131 = arith.addf %126, %130 : vector<1x16xf32>
    %132 = vector.extract_strided_slice %15 {offsets = [0, 2], sizes = [1, 16], strides = [1, 1]} : vector<1x22xf32> to vector<1x16xf32>
    %c23 = arith.constant 23 : index
    %133 = memref.load %arg2[%c23] : memref<112xf32, #tpu.memory_space<smem>>
    %134 = vector.broadcast %133 : f32 to vector<1x16xf32>
    %135 = arith.mulf %132, %134 : vector<1x16xf32>
    %136 = arith.addf %131, %135 : vector<1x16xf32>
    %137 = vector.extract_strided_slice %15 {offsets = [0, 3], sizes = [1, 16], strides = [1, 1]} : vector<1x22xf32> to vector<1x16xf32>
    %c24 = arith.constant 24 : index
    %138 = memref.load %arg2[%c24] : memref<112xf32, #tpu.memory_space<smem>>
    %139 = vector.broadcast %138 : f32 to vector<1x16xf32>
    %140 = arith.mulf %137, %139 : vector<1x16xf32>
    %141 = arith.addf %136, %140 : vector<1x16xf32>
    %142 = vector.extract_strided_slice %15 {offsets = [0, 4], sizes = [1, 16], strides = [1, 1]} : vector<1x22xf32> to vector<1x16xf32>
    %c25 = arith.constant 25 : index
    %143 = memref.load %arg2[%c25] : memref<112xf32, #tpu.memory_space<smem>>
    %144 = vector.broadcast %143 : f32 to vector<1x16xf32>
    %145 = arith.mulf %142, %144 : vector<1x16xf32>
    %146 = arith.addf %141, %145 : vector<1x16xf32>
    %147 = vector.extract_strided_slice %15 {offsets = [0, 5], sizes = [1, 16], strides = [1, 1]} : vector<1x22xf32> to vector<1x16xf32>
    %c26 = arith.constant 26 : index
    %148 = memref.load %arg2[%c26] : memref<112xf32, #tpu.memory_space<smem>>
    %149 = vector.broadcast %148 : f32 to vector<1x16xf32>
    %150 = arith.mulf %147, %149 : vector<1x16xf32>
    %151 = arith.addf %146, %150 : vector<1x16xf32>
    %152 = vector.extract_strided_slice %15 {offsets = [0, 6], sizes = [1, 16], strides = [1, 1]} : vector<1x22xf32> to vector<1x16xf32>
    %c27 = arith.constant 27 : index
    %153 = memref.load %arg2[%c27] : memref<112xf32, #tpu.memory_space<smem>>
    %154 = vector.broadcast %153 : f32 to vector<1x16xf32>
    %155 = arith.mulf %152, %154 : vector<1x16xf32>
    %156 = arith.addf %151, %155 : vector<1x16xf32>
    %c0_16 = arith.constant 0 : index
    %157 = memref.load %arg3[%c0_16] : memref<4xf32, #tpu.memory_space<smem>>
    %158 = vector.broadcast %157 : f32 to vector<1x16xf32>
    %159 = arith.addf %156, %158 : vector<1x16xf32>
    %cst_17 = arith.constant 0.000000e+00 : f32
    %160 = vector.broadcast %cst_17 : f32 to vector<1x16xf32>
    %161 = arith.maximumf %159, %160 : vector<1x16xf32>
    %cst_18 = arith.constant 0.000000e+00 : f32
    %162 = vector.broadcast %cst_18 : f32 to vector<1x3xf32>
    %163 = tpu.concatenate %162, %161, %162 in 1 : vector<1x3xf32>, vector<1x16xf32>, vector<1x3xf32> -> vector<1x22xf32>
    %cst_19 = arith.constant 0.000000e+00 : f32
    %164 = vector.broadcast %cst_19 : f32 to vector<1x16xf32>
    %165 = vector.extract_strided_slice %9 {offsets = [0, 0], sizes = [1, 16], strides = [1, 1]} : vector<1x22xf32> to vector<1x16xf32>
    %c28 = arith.constant 28 : index
    %166 = memref.load %arg2[%c28] : memref<112xf32, #tpu.memory_space<smem>>
    %167 = vector.broadcast %166 : f32 to vector<1x16xf32>
    %168 = arith.mulf %165, %167 : vector<1x16xf32>
    %169 = arith.addf %164, %168 : vector<1x16xf32>
    %170 = vector.extract_strided_slice %9 {offsets = [0, 1], sizes = [1, 16], strides = [1, 1]} : vector<1x22xf32> to vector<1x16xf32>
    %c29 = arith.constant 29 : index
    %171 = memref.load %arg2[%c29] : memref<112xf32, #tpu.memory_space<smem>>
    %172 = vector.broadcast %171 : f32 to vector<1x16xf32>
    %173 = arith.mulf %170, %172 : vector<1x16xf32>
    %174 = arith.addf %169, %173 : vector<1x16xf32>
    %175 = vector.extract_strided_slice %9 {offsets = [0, 2], sizes = [1, 16], strides = [1, 1]} : vector<1x22xf32> to vector<1x16xf32>
    %c30 = arith.constant 30 : index
    %176 = memref.load %arg2[%c30] : memref<112xf32, #tpu.memory_space<smem>>
    %177 = vector.broadcast %176 : f32 to vector<1x16xf32>
    %178 = arith.mulf %175, %177 : vector<1x16xf32>
    %179 = arith.addf %174, %178 : vector<1x16xf32>
    %180 = vector.extract_strided_slice %9 {offsets = [0, 3], sizes = [1, 16], strides = [1, 1]} : vector<1x22xf32> to vector<1x16xf32>
    %c31 = arith.constant 31 : index
    %181 = memref.load %arg2[%c31] : memref<112xf32, #tpu.memory_space<smem>>
    %182 = vector.broadcast %181 : f32 to vector<1x16xf32>
    %183 = arith.mulf %180, %182 : vector<1x16xf32>
    %184 = arith.addf %179, %183 : vector<1x16xf32>
    %185 = vector.extract_strided_slice %9 {offsets = [0, 4], sizes = [1, 16], strides = [1, 1]} : vector<1x22xf32> to vector<1x16xf32>
    %c32 = arith.constant 32 : index
    %186 = memref.load %arg2[%c32] : memref<112xf32, #tpu.memory_space<smem>>
    %187 = vector.broadcast %186 : f32 to vector<1x16xf32>
    %188 = arith.mulf %185, %187 : vector<1x16xf32>
    %189 = arith.addf %184, %188 : vector<1x16xf32>
    %190 = vector.extract_strided_slice %9 {offsets = [0, 5], sizes = [1, 16], strides = [1, 1]} : vector<1x22xf32> to vector<1x16xf32>
    %c33 = arith.constant 33 : index
    %191 = memref.load %arg2[%c33] : memref<112xf32, #tpu.memory_space<smem>>
    %192 = vector.broadcast %191 : f32 to vector<1x16xf32>
    %193 = arith.mulf %190, %192 : vector<1x16xf32>
    %194 = arith.addf %189, %193 : vector<1x16xf32>
    %195 = vector.extract_strided_slice %9 {offsets = [0, 6], sizes = [1, 16], strides = [1, 1]} : vector<1x22xf32> to vector<1x16xf32>
    %c34 = arith.constant 34 : index
    %196 = memref.load %arg2[%c34] : memref<112xf32, #tpu.memory_space<smem>>
    %197 = vector.broadcast %196 : f32 to vector<1x16xf32>
    %198 = arith.mulf %195, %197 : vector<1x16xf32>
    %199 = arith.addf %194, %198 : vector<1x16xf32>
    %200 = vector.extract_strided_slice %11 {offsets = [0, 0], sizes = [1, 16], strides = [1, 1]} : vector<1x22xf32> to vector<1x16xf32>
    %c35 = arith.constant 35 : index
    %201 = memref.load %arg2[%c35] : memref<112xf32, #tpu.memory_space<smem>>
    %202 = vector.broadcast %201 : f32 to vector<1x16xf32>
    %203 = arith.mulf %200, %202 : vector<1x16xf32>
    %204 = arith.addf %199, %203 : vector<1x16xf32>
    %205 = vector.extract_strided_slice %11 {offsets = [0, 1], sizes = [1, 16], strides = [1, 1]} : vector<1x22xf32> to vector<1x16xf32>
    %c36 = arith.constant 36 : index
    %206 = memref.load %arg2[%c36] : memref<112xf32, #tpu.memory_space<smem>>
    %207 = vector.broadcast %206 : f32 to vector<1x16xf32>
    %208 = arith.mulf %205, %207 : vector<1x16xf32>
    %209 = arith.addf %204, %208 : vector<1x16xf32>
    %210 = vector.extract_strided_slice %11 {offsets = [0, 2], sizes = [1, 16], strides = [1, 1]} : vector<1x22xf32> to vector<1x16xf32>
    %c37 = arith.constant 37 : index
    %211 = memref.load %arg2[%c37] : memref<112xf32, #tpu.memory_space<smem>>
    %212 = vector.broadcast %211 : f32 to vector<1x16xf32>
    %213 = arith.mulf %210, %212 : vector<1x16xf32>
    %214 = arith.addf %209, %213 : vector<1x16xf32>
    %215 = vector.extract_strided_slice %11 {offsets = [0, 3], sizes = [1, 16], strides = [1, 1]} : vector<1x22xf32> to vector<1x16xf32>
    %c38 = arith.constant 38 : index
    %216 = memref.load %arg2[%c38] : memref<112xf32, #tpu.memory_space<smem>>
    %217 = vector.broadcast %216 : f32 to vector<1x16xf32>
    %218 = arith.mulf %215, %217 : vector<1x16xf32>
    %219 = arith.addf %214, %218 : vector<1x16xf32>
    %220 = vector.extract_strided_slice %11 {offsets = [0, 4], sizes = [1, 16], strides = [1, 1]} : vector<1x22xf32> to vector<1x16xf32>
    %c39 = arith.constant 39 : index
    %221 = memref.load %arg2[%c39] : memref<112xf32, #tpu.memory_space<smem>>
    %222 = vector.broadcast %221 : f32 to vector<1x16xf32>
    %223 = arith.mulf %220, %222 : vector<1x16xf32>
    %224 = arith.addf %219, %223 : vector<1x16xf32>
    %225 = vector.extract_strided_slice %11 {offsets = [0, 5], sizes = [1, 16], strides = [1, 1]} : vector<1x22xf32> to vector<1x16xf32>
    %c40 = arith.constant 40 : index
    %226 = memref.load %arg2[%c40] : memref<112xf32, #tpu.memory_space<smem>>
    %227 = vector.broadcast %226 : f32 to vector<1x16xf32>
    %228 = arith.mulf %225, %227 : vector<1x16xf32>
    %229 = arith.addf %224, %228 : vector<1x16xf32>
    %230 = vector.extract_strided_slice %11 {offsets = [0, 6], sizes = [1, 16], strides = [1, 1]} : vector<1x22xf32> to vector<1x16xf32>
    %c41 = arith.constant 41 : index
    %231 = memref.load %arg2[%c41] : memref<112xf32, #tpu.memory_space<smem>>
    %232 = vector.broadcast %231 : f32 to vector<1x16xf32>
    %233 = arith.mulf %230, %232 : vector<1x16xf32>
    %234 = arith.addf %229, %233 : vector<1x16xf32>
    %235 = vector.extract_strided_slice %13 {offsets = [0, 0], sizes = [1, 16], strides = [1, 1]} : vector<1x22xf32> to vector<1x16xf32>
    %c42 = arith.constant 42 : index
    %236 = memref.load %arg2[%c42] : memref<112xf32, #tpu.memory_space<smem>>
    %237 = vector.broadcast %236 : f32 to vector<1x16xf32>
    %238 = arith.mulf %235, %237 : vector<1x16xf32>
    %239 = arith.addf %234, %238 : vector<1x16xf32>
    %240 = vector.extract_strided_slice %13 {offsets = [0, 1], sizes = [1, 16], strides = [1, 1]} : vector<1x22xf32> to vector<1x16xf32>
    %c43 = arith.constant 43 : index
    %241 = memref.load %arg2[%c43] : memref<112xf32, #tpu.memory_space<smem>>
    %242 = vector.broadcast %241 : f32 to vector<1x16xf32>
    %243 = arith.mulf %240, %242 : vector<1x16xf32>
    %244 = arith.addf %239, %243 : vector<1x16xf32>
    %245 = vector.extract_strided_slice %13 {offsets = [0, 2], sizes = [1, 16], strides = [1, 1]} : vector<1x22xf32> to vector<1x16xf32>
    %c44 = arith.constant 44 : index
    %246 = memref.load %arg2[%c44] : memref<112xf32, #tpu.memory_space<smem>>
    %247 = vector.broadcast %246 : f32 to vector<1x16xf32>
    %248 = arith.mulf %245, %247 : vector<1x16xf32>
    %249 = arith.addf %244, %248 : vector<1x16xf32>
    %250 = vector.extract_strided_slice %13 {offsets = [0, 3], sizes = [1, 16], strides = [1, 1]} : vector<1x22xf32> to vector<1x16xf32>
    %c45 = arith.constant 45 : index
    %251 = memref.load %arg2[%c45] : memref<112xf32, #tpu.memory_space<smem>>
    %252 = vector.broadcast %251 : f32 to vector<1x16xf32>
    %253 = arith.mulf %250, %252 : vector<1x16xf32>
    %254 = arith.addf %249, %253 : vector<1x16xf32>
    %255 = vector.extract_strided_slice %13 {offsets = [0, 4], sizes = [1, 16], strides = [1, 1]} : vector<1x22xf32> to vector<1x16xf32>
    %c46 = arith.constant 46 : index
    %256 = memref.load %arg2[%c46] : memref<112xf32, #tpu.memory_space<smem>>
    %257 = vector.broadcast %256 : f32 to vector<1x16xf32>
    %258 = arith.mulf %255, %257 : vector<1x16xf32>
    %259 = arith.addf %254, %258 : vector<1x16xf32>
    %260 = vector.extract_strided_slice %13 {offsets = [0, 5], sizes = [1, 16], strides = [1, 1]} : vector<1x22xf32> to vector<1x16xf32>
    %c47 = arith.constant 47 : index
    %261 = memref.load %arg2[%c47] : memref<112xf32, #tpu.memory_space<smem>>
    %262 = vector.broadcast %261 : f32 to vector<1x16xf32>
    %263 = arith.mulf %260, %262 : vector<1x16xf32>
    %264 = arith.addf %259, %263 : vector<1x16xf32>
    %265 = vector.extract_strided_slice %13 {offsets = [0, 6], sizes = [1, 16], strides = [1, 1]} : vector<1x22xf32> to vector<1x16xf32>
    %c48 = arith.constant 48 : index
    %266 = memref.load %arg2[%c48] : memref<112xf32, #tpu.memory_space<smem>>
    %267 = vector.broadcast %266 : f32 to vector<1x16xf32>
    %268 = arith.mulf %265, %267 : vector<1x16xf32>
    %269 = arith.addf %264, %268 : vector<1x16xf32>
    %270 = vector.extract_strided_slice %15 {offsets = [0, 0], sizes = [1, 16], strides = [1, 1]} : vector<1x22xf32> to vector<1x16xf32>
    %c49 = arith.constant 49 : index
    %271 = memref.load %arg2[%c49] : memref<112xf32, #tpu.memory_space<smem>>
    %272 = vector.broadcast %271 : f32 to vector<1x16xf32>
    %273 = arith.mulf %270, %272 : vector<1x16xf32>
    %274 = arith.addf %269, %273 : vector<1x16xf32>
    %275 = vector.extract_strided_slice %15 {offsets = [0, 1], sizes = [1, 16], strides = [1, 1]} : vector<1x22xf32> to vector<1x16xf32>
    %c50 = arith.constant 50 : index
    %276 = memref.load %arg2[%c50] : memref<112xf32, #tpu.memory_space<smem>>
    %277 = vector.broadcast %276 : f32 to vector<1x16xf32>
    %278 = arith.mulf %275, %277 : vector<1x16xf32>
    %279 = arith.addf %274, %278 : vector<1x16xf32>
    %280 = vector.extract_strided_slice %15 {offsets = [0, 2], sizes = [1, 16], strides = [1, 1]} : vector<1x22xf32> to vector<1x16xf32>
    %c51 = arith.constant 51 : index
    %281 = memref.load %arg2[%c51] : memref<112xf32, #tpu.memory_space<smem>>
    %282 = vector.broadcast %281 : f32 to vector<1x16xf32>
    %283 = arith.mulf %280, %282 : vector<1x16xf32>
    %284 = arith.addf %279, %283 : vector<1x16xf32>
    %285 = vector.extract_strided_slice %15 {offsets = [0, 3], sizes = [1, 16], strides = [1, 1]} : vector<1x22xf32> to vector<1x16xf32>
    %c52 = arith.constant 52 : index
    %286 = memref.load %arg2[%c52] : memref<112xf32, #tpu.memory_space<smem>>
    %287 = vector.broadcast %286 : f32 to vector<1x16xf32>
    %288 = arith.mulf %285, %287 : vector<1x16xf32>
    %289 = arith.addf %284, %288 : vector<1x16xf32>
    %290 = vector.extract_strided_slice %15 {offsets = [0, 4], sizes = [1, 16], strides = [1, 1]} : vector<1x22xf32> to vector<1x16xf32>
    %c53 = arith.constant 53 : index
    %291 = memref.load %arg2[%c53] : memref<112xf32, #tpu.memory_space<smem>>
    %292 = vector.broadcast %291 : f32 to vector<1x16xf32>
    %293 = arith.mulf %290, %292 : vector<1x16xf32>
    %294 = arith.addf %289, %293 : vector<1x16xf32>
    %295 = vector.extract_strided_slice %15 {offsets = [0, 5], sizes = [1, 16], strides = [1, 1]} : vector<1x22xf32> to vector<1x16xf32>
    %c54 = arith.constant 54 : index
    %296 = memref.load %arg2[%c54] : memref<112xf32, #tpu.memory_space<smem>>
    %297 = vector.broadcast %296 : f32 to vector<1x16xf32>
    %298 = arith.mulf %295, %297 : vector<1x16xf32>
    %299 = arith.addf %294, %298 : vector<1x16xf32>
    %300 = vector.extract_strided_slice %15 {offsets = [0, 6], sizes = [1, 16], strides = [1, 1]} : vector<1x22xf32> to vector<1x16xf32>
    %c55 = arith.constant 55 : index
    %301 = memref.load %arg2[%c55] : memref<112xf32, #tpu.memory_space<smem>>
    %302 = vector.broadcast %301 : f32 to vector<1x16xf32>
    %303 = arith.mulf %300, %302 : vector<1x16xf32>
    %304 = arith.addf %299, %303 : vector<1x16xf32>
    %c1_20 = arith.constant 1 : index
    %305 = memref.load %arg3[%c1_20] : memref<4xf32, #tpu.memory_space<smem>>
    %306 = vector.broadcast %305 : f32 to vector<1x16xf32>
    %307 = arith.addf %304, %306 : vector<1x16xf32>
    %cst_21 = arith.constant 0.000000e+00 : f32
    %308 = vector.broadcast %cst_21 : f32 to vector<1x16xf32>
    %309 = arith.maximumf %307, %308 : vector<1x16xf32>
    %cst_22 = arith.constant 0.000000e+00 : f32
    %310 = vector.broadcast %cst_22 : f32 to vector<1x3xf32>
    %311 = tpu.concatenate %310, %309, %310 in 1 : vector<1x3xf32>, vector<1x16xf32>, vector<1x3xf32> -> vector<1x22xf32>
    %cst_23 = arith.constant 0.000000e+00 : f32
    %312 = vector.broadcast %cst_23 : f32 to vector<1x16xf32>
    %313 = vector.extract_strided_slice %9 {offsets = [0, 0], sizes = [1, 16], strides = [1, 1]} : vector<1x22xf32> to vector<1x16xf32>
    %c56 = arith.constant 56 : index
    %314 = memref.load %arg2[%c56] : memref<112xf32, #tpu.memory_space<smem>>
    %315 = vector.broadcast %314 : f32 to vector<1x16xf32>
    %316 = arith.mulf %313, %315 : vector<1x16xf32>
    %317 = arith.addf %312, %316 : vector<1x16xf32>
    %318 = vector.extract_strided_slice %9 {offsets = [0, 1], sizes = [1, 16], strides = [1, 1]} : vector<1x22xf32> to vector<1x16xf32>
    %c57 = arith.constant 57 : index
    %319 = memref.load %arg2[%c57] : memref<112xf32, #tpu.memory_space<smem>>
    %320 = vector.broadcast %319 : f32 to vector<1x16xf32>
    %321 = arith.mulf %318, %320 : vector<1x16xf32>
    %322 = arith.addf %317, %321 : vector<1x16xf32>
    %323 = vector.extract_strided_slice %9 {offsets = [0, 2], sizes = [1, 16], strides = [1, 1]} : vector<1x22xf32> to vector<1x16xf32>
    %c58 = arith.constant 58 : index
    %324 = memref.load %arg2[%c58] : memref<112xf32, #tpu.memory_space<smem>>
    %325 = vector.broadcast %324 : f32 to vector<1x16xf32>
    %326 = arith.mulf %323, %325 : vector<1x16xf32>
    %327 = arith.addf %322, %326 : vector<1x16xf32>
    %328 = vector.extract_strided_slice %9 {offsets = [0, 3], sizes = [1, 16], strides = [1, 1]} : vector<1x22xf32> to vector<1x16xf32>
    %c59 = arith.constant 59 : index
    %329 = memref.load %arg2[%c59] : memref<112xf32, #tpu.memory_space<smem>>
    %330 = vector.broadcast %329 : f32 to vector<1x16xf32>
    %331 = arith.mulf %328, %330 : vector<1x16xf32>
    %332 = arith.addf %327, %331 : vector<1x16xf32>
    %333 = vector.extract_strided_slice %9 {offsets = [0, 4], sizes = [1, 16], strides = [1, 1]} : vector<1x22xf32> to vector<1x16xf32>
    %c60 = arith.constant 60 : index
    %334 = memref.load %arg2[%c60] : memref<112xf32, #tpu.memory_space<smem>>
    %335 = vector.broadcast %334 : f32 to vector<1x16xf32>
    %336 = arith.mulf %333, %335 : vector<1x16xf32>
    %337 = arith.addf %332, %336 : vector<1x16xf32>
    %338 = vector.extract_strided_slice %9 {offsets = [0, 5], sizes = [1, 16], strides = [1, 1]} : vector<1x22xf32> to vector<1x16xf32>
    %c61 = arith.constant 61 : index
    %339 = memref.load %arg2[%c61] : memref<112xf32, #tpu.memory_space<smem>>
    %340 = vector.broadcast %339 : f32 to vector<1x16xf32>
    %341 = arith.mulf %338, %340 : vector<1x16xf32>
    %342 = arith.addf %337, %341 : vector<1x16xf32>
    %343 = vector.extract_strided_slice %9 {offsets = [0, 6], sizes = [1, 16], strides = [1, 1]} : vector<1x22xf32> to vector<1x16xf32>
    %c62 = arith.constant 62 : index
    %344 = memref.load %arg2[%c62] : memref<112xf32, #tpu.memory_space<smem>>
    %345 = vector.broadcast %344 : f32 to vector<1x16xf32>
    %346 = arith.mulf %343, %345 : vector<1x16xf32>
    %347 = arith.addf %342, %346 : vector<1x16xf32>
    %348 = vector.extract_strided_slice %11 {offsets = [0, 0], sizes = [1, 16], strides = [1, 1]} : vector<1x22xf32> to vector<1x16xf32>
    %c63 = arith.constant 63 : index
    %349 = memref.load %arg2[%c63] : memref<112xf32, #tpu.memory_space<smem>>
    %350 = vector.broadcast %349 : f32 to vector<1x16xf32>
    %351 = arith.mulf %348, %350 : vector<1x16xf32>
    %352 = arith.addf %347, %351 : vector<1x16xf32>
    %353 = vector.extract_strided_slice %11 {offsets = [0, 1], sizes = [1, 16], strides = [1, 1]} : vector<1x22xf32> to vector<1x16xf32>
    %c64 = arith.constant 64 : index
    %354 = memref.load %arg2[%c64] : memref<112xf32, #tpu.memory_space<smem>>
    %355 = vector.broadcast %354 : f32 to vector<1x16xf32>
    %356 = arith.mulf %353, %355 : vector<1x16xf32>
    %357 = arith.addf %352, %356 : vector<1x16xf32>
    %358 = vector.extract_strided_slice %11 {offsets = [0, 2], sizes = [1, 16], strides = [1, 1]} : vector<1x22xf32> to vector<1x16xf32>
    %c65 = arith.constant 65 : index
    %359 = memref.load %arg2[%c65] : memref<112xf32, #tpu.memory_space<smem>>
    %360 = vector.broadcast %359 : f32 to vector<1x16xf32>
    %361 = arith.mulf %358, %360 : vector<1x16xf32>
    %362 = arith.addf %357, %361 : vector<1x16xf32>
    %363 = vector.extract_strided_slice %11 {offsets = [0, 3], sizes = [1, 16], strides = [1, 1]} : vector<1x22xf32> to vector<1x16xf32>
    %c66 = arith.constant 66 : index
    %364 = memref.load %arg2[%c66] : memref<112xf32, #tpu.memory_space<smem>>
    %365 = vector.broadcast %364 : f32 to vector<1x16xf32>
    %366 = arith.mulf %363, %365 : vector<1x16xf32>
    %367 = arith.addf %362, %366 : vector<1x16xf32>
    %368 = vector.extract_strided_slice %11 {offsets = [0, 4], sizes = [1, 16], strides = [1, 1]} : vector<1x22xf32> to vector<1x16xf32>
    %c67 = arith.constant 67 : index
    %369 = memref.load %arg2[%c67] : memref<112xf32, #tpu.memory_space<smem>>
    %370 = vector.broadcast %369 : f32 to vector<1x16xf32>
    %371 = arith.mulf %368, %370 : vector<1x16xf32>
    %372 = arith.addf %367, %371 : vector<1x16xf32>
    %373 = vector.extract_strided_slice %11 {offsets = [0, 5], sizes = [1, 16], strides = [1, 1]} : vector<1x22xf32> to vector<1x16xf32>
    %c68 = arith.constant 68 : index
    %374 = memref.load %arg2[%c68] : memref<112xf32, #tpu.memory_space<smem>>
    %375 = vector.broadcast %374 : f32 to vector<1x16xf32>
    %376 = arith.mulf %373, %375 : vector<1x16xf32>
    %377 = arith.addf %372, %376 : vector<1x16xf32>
    %378 = vector.extract_strided_slice %11 {offsets = [0, 6], sizes = [1, 16], strides = [1, 1]} : vector<1x22xf32> to vector<1x16xf32>
    %c69 = arith.constant 69 : index
    %379 = memref.load %arg2[%c69] : memref<112xf32, #tpu.memory_space<smem>>
    %380 = vector.broadcast %379 : f32 to vector<1x16xf32>
    %381 = arith.mulf %378, %380 : vector<1x16xf32>
    %382 = arith.addf %377, %381 : vector<1x16xf32>
    %383 = vector.extract_strided_slice %13 {offsets = [0, 0], sizes = [1, 16], strides = [1, 1]} : vector<1x22xf32> to vector<1x16xf32>
    %c70 = arith.constant 70 : index
    %384 = memref.load %arg2[%c70] : memref<112xf32, #tpu.memory_space<smem>>
    %385 = vector.broadcast %384 : f32 to vector<1x16xf32>
    %386 = arith.mulf %383, %385 : vector<1x16xf32>
    %387 = arith.addf %382, %386 : vector<1x16xf32>
    %388 = vector.extract_strided_slice %13 {offsets = [0, 1], sizes = [1, 16], strides = [1, 1]} : vector<1x22xf32> to vector<1x16xf32>
    %c71 = arith.constant 71 : index
    %389 = memref.load %arg2[%c71] : memref<112xf32, #tpu.memory_space<smem>>
    %390 = vector.broadcast %389 : f32 to vector<1x16xf32>
    %391 = arith.mulf %388, %390 : vector<1x16xf32>
    %392 = arith.addf %387, %391 : vector<1x16xf32>
    %393 = vector.extract_strided_slice %13 {offsets = [0, 2], sizes = [1, 16], strides = [1, 1]} : vector<1x22xf32> to vector<1x16xf32>
    %c72 = arith.constant 72 : index
    %394 = memref.load %arg2[%c72] : memref<112xf32, #tpu.memory_space<smem>>
    %395 = vector.broadcast %394 : f32 to vector<1x16xf32>
    %396 = arith.mulf %393, %395 : vector<1x16xf32>
    %397 = arith.addf %392, %396 : vector<1x16xf32>
    %398 = vector.extract_strided_slice %13 {offsets = [0, 3], sizes = [1, 16], strides = [1, 1]} : vector<1x22xf32> to vector<1x16xf32>
    %c73 = arith.constant 73 : index
    %399 = memref.load %arg2[%c73] : memref<112xf32, #tpu.memory_space<smem>>
    %400 = vector.broadcast %399 : f32 to vector<1x16xf32>
    %401 = arith.mulf %398, %400 : vector<1x16xf32>
    %402 = arith.addf %397, %401 : vector<1x16xf32>
    %403 = vector.extract_strided_slice %13 {offsets = [0, 4], sizes = [1, 16], strides = [1, 1]} : vector<1x22xf32> to vector<1x16xf32>
    %c74 = arith.constant 74 : index
    %404 = memref.load %arg2[%c74] : memref<112xf32, #tpu.memory_space<smem>>
    %405 = vector.broadcast %404 : f32 to vector<1x16xf32>
    %406 = arith.mulf %403, %405 : vector<1x16xf32>
    %407 = arith.addf %402, %406 : vector<1x16xf32>
    %408 = vector.extract_strided_slice %13 {offsets = [0, 5], sizes = [1, 16], strides = [1, 1]} : vector<1x22xf32> to vector<1x16xf32>
    %c75 = arith.constant 75 : index
    %409 = memref.load %arg2[%c75] : memref<112xf32, #tpu.memory_space<smem>>
    %410 = vector.broadcast %409 : f32 to vector<1x16xf32>
    %411 = arith.mulf %408, %410 : vector<1x16xf32>
    %412 = arith.addf %407, %411 : vector<1x16xf32>
    %413 = vector.extract_strided_slice %13 {offsets = [0, 6], sizes = [1, 16], strides = [1, 1]} : vector<1x22xf32> to vector<1x16xf32>
    %c76 = arith.constant 76 : index
    %414 = memref.load %arg2[%c76] : memref<112xf32, #tpu.memory_space<smem>>
    %415 = vector.broadcast %414 : f32 to vector<1x16xf32>
    %416 = arith.mulf %413, %415 : vector<1x16xf32>
    %417 = arith.addf %412, %416 : vector<1x16xf32>
    %418 = vector.extract_strided_slice %15 {offsets = [0, 0], sizes = [1, 16], strides = [1, 1]} : vector<1x22xf32> to vector<1x16xf32>
    %c77 = arith.constant 77 : index
    %419 = memref.load %arg2[%c77] : memref<112xf32, #tpu.memory_space<smem>>
    %420 = vector.broadcast %419 : f32 to vector<1x16xf32>
    %421 = arith.mulf %418, %420 : vector<1x16xf32>
    %422 = arith.addf %417, %421 : vector<1x16xf32>
    %423 = vector.extract_strided_slice %15 {offsets = [0, 1], sizes = [1, 16], strides = [1, 1]} : vector<1x22xf32> to vector<1x16xf32>
    %c78 = arith.constant 78 : index
    %424 = memref.load %arg2[%c78] : memref<112xf32, #tpu.memory_space<smem>>
    %425 = vector.broadcast %424 : f32 to vector<1x16xf32>
    %426 = arith.mulf %423, %425 : vector<1x16xf32>
    %427 = arith.addf %422, %426 : vector<1x16xf32>
    %428 = vector.extract_strided_slice %15 {offsets = [0, 2], sizes = [1, 16], strides = [1, 1]} : vector<1x22xf32> to vector<1x16xf32>
    %c79 = arith.constant 79 : index
    %429 = memref.load %arg2[%c79] : memref<112xf32, #tpu.memory_space<smem>>
    %430 = vector.broadcast %429 : f32 to vector<1x16xf32>
    %431 = arith.mulf %428, %430 : vector<1x16xf32>
    %432 = arith.addf %427, %431 : vector<1x16xf32>
    %433 = vector.extract_strided_slice %15 {offsets = [0, 3], sizes = [1, 16], strides = [1, 1]} : vector<1x22xf32> to vector<1x16xf32>
    %c80 = arith.constant 80 : index
    %434 = memref.load %arg2[%c80] : memref<112xf32, #tpu.memory_space<smem>>
    %435 = vector.broadcast %434 : f32 to vector<1x16xf32>
    %436 = arith.mulf %433, %435 : vector<1x16xf32>
    %437 = arith.addf %432, %436 : vector<1x16xf32>
    %438 = vector.extract_strided_slice %15 {offsets = [0, 4], sizes = [1, 16], strides = [1, 1]} : vector<1x22xf32> to vector<1x16xf32>
    %c81 = arith.constant 81 : index
    %439 = memref.load %arg2[%c81] : memref<112xf32, #tpu.memory_space<smem>>
    %440 = vector.broadcast %439 : f32 to vector<1x16xf32>
    %441 = arith.mulf %438, %440 : vector<1x16xf32>
    %442 = arith.addf %437, %441 : vector<1x16xf32>
    %443 = vector.extract_strided_slice %15 {offsets = [0, 5], sizes = [1, 16], strides = [1, 1]} : vector<1x22xf32> to vector<1x16xf32>
    %c82 = arith.constant 82 : index
    %444 = memref.load %arg2[%c82] : memref<112xf32, #tpu.memory_space<smem>>
    %445 = vector.broadcast %444 : f32 to vector<1x16xf32>
    %446 = arith.mulf %443, %445 : vector<1x16xf32>
    %447 = arith.addf %442, %446 : vector<1x16xf32>
    %448 = vector.extract_strided_slice %15 {offsets = [0, 6], sizes = [1, 16], strides = [1, 1]} : vector<1x22xf32> to vector<1x16xf32>
    %c83 = arith.constant 83 : index
    %449 = memref.load %arg2[%c83] : memref<112xf32, #tpu.memory_space<smem>>
    %450 = vector.broadcast %449 : f32 to vector<1x16xf32>
    %451 = arith.mulf %448, %450 : vector<1x16xf32>
    %452 = arith.addf %447, %451 : vector<1x16xf32>
    %c2_24 = arith.constant 2 : index
    %453 = memref.load %arg3[%c2_24] : memref<4xf32, #tpu.memory_space<smem>>
    %454 = vector.broadcast %453 : f32 to vector<1x16xf32>
    %455 = arith.addf %452, %454 : vector<1x16xf32>
    %cst_25 = arith.constant 0.000000e+00 : f32
    %456 = vector.broadcast %cst_25 : f32 to vector<1x16xf32>
    %457 = arith.maximumf %455, %456 : vector<1x16xf32>
    %cst_26 = arith.constant 0.000000e+00 : f32
    %458 = vector.broadcast %cst_26 : f32 to vector<1x3xf32>
    %459 = tpu.concatenate %458, %457, %458 in 1 : vector<1x3xf32>, vector<1x16xf32>, vector<1x3xf32> -> vector<1x22xf32>
    %cst_27 = arith.constant 0.000000e+00 : f32
    %460 = vector.broadcast %cst_27 : f32 to vector<1x16xf32>
    %461 = vector.extract_strided_slice %9 {offsets = [0, 0], sizes = [1, 16], strides = [1, 1]} : vector<1x22xf32> to vector<1x16xf32>
    %c84 = arith.constant 84 : index
    %462 = memref.load %arg2[%c84] : memref<112xf32, #tpu.memory_space<smem>>
    %463 = vector.broadcast %462 : f32 to vector<1x16xf32>
    %464 = arith.mulf %461, %463 : vector<1x16xf32>
    %465 = arith.addf %460, %464 : vector<1x16xf32>
    %466 = vector.extract_strided_slice %9 {offsets = [0, 1], sizes = [1, 16], strides = [1, 1]} : vector<1x22xf32> to vector<1x16xf32>
    %c85 = arith.constant 85 : index
    %467 = memref.load %arg2[%c85] : memref<112xf32, #tpu.memory_space<smem>>
    %468 = vector.broadcast %467 : f32 to vector<1x16xf32>
    %469 = arith.mulf %466, %468 : vector<1x16xf32>
    %470 = arith.addf %465, %469 : vector<1x16xf32>
    %471 = vector.extract_strided_slice %9 {offsets = [0, 2], sizes = [1, 16], strides = [1, 1]} : vector<1x22xf32> to vector<1x16xf32>
    %c86 = arith.constant 86 : index
    %472 = memref.load %arg2[%c86] : memref<112xf32, #tpu.memory_space<smem>>
    %473 = vector.broadcast %472 : f32 to vector<1x16xf32>
    %474 = arith.mulf %471, %473 : vector<1x16xf32>
    %475 = arith.addf %470, %474 : vector<1x16xf32>
    %476 = vector.extract_strided_slice %9 {offsets = [0, 3], sizes = [1, 16], strides = [1, 1]} : vector<1x22xf32> to vector<1x16xf32>
    %c87 = arith.constant 87 : index
    %477 = memref.load %arg2[%c87] : memref<112xf32, #tpu.memory_space<smem>>
    %478 = vector.broadcast %477 : f32 to vector<1x16xf32>
    %479 = arith.mulf %476, %478 : vector<1x16xf32>
    %480 = arith.addf %475, %479 : vector<1x16xf32>
    %481 = vector.extract_strided_slice %9 {offsets = [0, 4], sizes = [1, 16], strides = [1, 1]} : vector<1x22xf32> to vector<1x16xf32>
    %c88 = arith.constant 88 : index
    %482 = memref.load %arg2[%c88] : memref<112xf32, #tpu.memory_space<smem>>
    %483 = vector.broadcast %482 : f32 to vector<1x16xf32>
    %484 = arith.mulf %481, %483 : vector<1x16xf32>
    %485 = arith.addf %480, %484 : vector<1x16xf32>
    %486 = vector.extract_strided_slice %9 {offsets = [0, 5], sizes = [1, 16], strides = [1, 1]} : vector<1x22xf32> to vector<1x16xf32>
    %c89 = arith.constant 89 : index
    %487 = memref.load %arg2[%c89] : memref<112xf32, #tpu.memory_space<smem>>
    %488 = vector.broadcast %487 : f32 to vector<1x16xf32>
    %489 = arith.mulf %486, %488 : vector<1x16xf32>
    %490 = arith.addf %485, %489 : vector<1x16xf32>
    %491 = vector.extract_strided_slice %9 {offsets = [0, 6], sizes = [1, 16], strides = [1, 1]} : vector<1x22xf32> to vector<1x16xf32>
    %c90 = arith.constant 90 : index
    %492 = memref.load %arg2[%c90] : memref<112xf32, #tpu.memory_space<smem>>
    %493 = vector.broadcast %492 : f32 to vector<1x16xf32>
    %494 = arith.mulf %491, %493 : vector<1x16xf32>
    %495 = arith.addf %490, %494 : vector<1x16xf32>
    %496 = vector.extract_strided_slice %11 {offsets = [0, 0], sizes = [1, 16], strides = [1, 1]} : vector<1x22xf32> to vector<1x16xf32>
    %c91 = arith.constant 91 : index
    %497 = memref.load %arg2[%c91] : memref<112xf32, #tpu.memory_space<smem>>
    %498 = vector.broadcast %497 : f32 to vector<1x16xf32>
    %499 = arith.mulf %496, %498 : vector<1x16xf32>
    %500 = arith.addf %495, %499 : vector<1x16xf32>
    %501 = vector.extract_strided_slice %11 {offsets = [0, 1], sizes = [1, 16], strides = [1, 1]} : vector<1x22xf32> to vector<1x16xf32>
    %c92 = arith.constant 92 : index
    %502 = memref.load %arg2[%c92] : memref<112xf32, #tpu.memory_space<smem>>
    %503 = vector.broadcast %502 : f32 to vector<1x16xf32>
    %504 = arith.mulf %501, %503 : vector<1x16xf32>
    %505 = arith.addf %500, %504 : vector<1x16xf32>
    %506 = vector.extract_strided_slice %11 {offsets = [0, 2], sizes = [1, 16], strides = [1, 1]} : vector<1x22xf32> to vector<1x16xf32>
    %c93 = arith.constant 93 : index
    %507 = memref.load %arg2[%c93] : memref<112xf32, #tpu.memory_space<smem>>
    %508 = vector.broadcast %507 : f32 to vector<1x16xf32>
    %509 = arith.mulf %506, %508 : vector<1x16xf32>
    %510 = arith.addf %505, %509 : vector<1x16xf32>
    %511 = vector.extract_strided_slice %11 {offsets = [0, 3], sizes = [1, 16], strides = [1, 1]} : vector<1x22xf32> to vector<1x16xf32>
    %c94 = arith.constant 94 : index
    %512 = memref.load %arg2[%c94] : memref<112xf32, #tpu.memory_space<smem>>
    %513 = vector.broadcast %512 : f32 to vector<1x16xf32>
    %514 = arith.mulf %511, %513 : vector<1x16xf32>
    %515 = arith.addf %510, %514 : vector<1x16xf32>
    %516 = vector.extract_strided_slice %11 {offsets = [0, 4], sizes = [1, 16], strides = [1, 1]} : vector<1x22xf32> to vector<1x16xf32>
    %c95 = arith.constant 95 : index
    %517 = memref.load %arg2[%c95] : memref<112xf32, #tpu.memory_space<smem>>
    %518 = vector.broadcast %517 : f32 to vector<1x16xf32>
    %519 = arith.mulf %516, %518 : vector<1x16xf32>
    %520 = arith.addf %515, %519 : vector<1x16xf32>
    %521 = vector.extract_strided_slice %11 {offsets = [0, 5], sizes = [1, 16], strides = [1, 1]} : vector<1x22xf32> to vector<1x16xf32>
    %c96 = arith.constant 96 : index
    %522 = memref.load %arg2[%c96] : memref<112xf32, #tpu.memory_space<smem>>
    %523 = vector.broadcast %522 : f32 to vector<1x16xf32>
    %524 = arith.mulf %521, %523 : vector<1x16xf32>
    %525 = arith.addf %520, %524 : vector<1x16xf32>
    %526 = vector.extract_strided_slice %11 {offsets = [0, 6], sizes = [1, 16], strides = [1, 1]} : vector<1x22xf32> to vector<1x16xf32>
    %c97 = arith.constant 97 : index
    %527 = memref.load %arg2[%c97] : memref<112xf32, #tpu.memory_space<smem>>
    %528 = vector.broadcast %527 : f32 to vector<1x16xf32>
    %529 = arith.mulf %526, %528 : vector<1x16xf32>
    %530 = arith.addf %525, %529 : vector<1x16xf32>
    %531 = vector.extract_strided_slice %13 {offsets = [0, 0], sizes = [1, 16], strides = [1, 1]} : vector<1x22xf32> to vector<1x16xf32>
    %c98 = arith.constant 98 : index
    %532 = memref.load %arg2[%c98] : memref<112xf32, #tpu.memory_space<smem>>
    %533 = vector.broadcast %532 : f32 to vector<1x16xf32>
    %534 = arith.mulf %531, %533 : vector<1x16xf32>
    %535 = arith.addf %530, %534 : vector<1x16xf32>
    %536 = vector.extract_strided_slice %13 {offsets = [0, 1], sizes = [1, 16], strides = [1, 1]} : vector<1x22xf32> to vector<1x16xf32>
    %c99 = arith.constant 99 : index
    %537 = memref.load %arg2[%c99] : memref<112xf32, #tpu.memory_space<smem>>
    %538 = vector.broadcast %537 : f32 to vector<1x16xf32>
    %539 = arith.mulf %536, %538 : vector<1x16xf32>
    %540 = arith.addf %535, %539 : vector<1x16xf32>
    %541 = vector.extract_strided_slice %13 {offsets = [0, 2], sizes = [1, 16], strides = [1, 1]} : vector<1x22xf32> to vector<1x16xf32>
    %c100 = arith.constant 100 : index
    %542 = memref.load %arg2[%c100] : memref<112xf32, #tpu.memory_space<smem>>
    %543 = vector.broadcast %542 : f32 to vector<1x16xf32>
    %544 = arith.mulf %541, %543 : vector<1x16xf32>
    %545 = arith.addf %540, %544 : vector<1x16xf32>
    %546 = vector.extract_strided_slice %13 {offsets = [0, 3], sizes = [1, 16], strides = [1, 1]} : vector<1x22xf32> to vector<1x16xf32>
    %c101 = arith.constant 101 : index
    %547 = memref.load %arg2[%c101] : memref<112xf32, #tpu.memory_space<smem>>
    %548 = vector.broadcast %547 : f32 to vector<1x16xf32>
    %549 = arith.mulf %546, %548 : vector<1x16xf32>
    %550 = arith.addf %545, %549 : vector<1x16xf32>
    %551 = vector.extract_strided_slice %13 {offsets = [0, 4], sizes = [1, 16], strides = [1, 1]} : vector<1x22xf32> to vector<1x16xf32>
    %c102 = arith.constant 102 : index
    %552 = memref.load %arg2[%c102] : memref<112xf32, #tpu.memory_space<smem>>
    %553 = vector.broadcast %552 : f32 to vector<1x16xf32>
    %554 = arith.mulf %551, %553 : vector<1x16xf32>
    %555 = arith.addf %550, %554 : vector<1x16xf32>
    %556 = vector.extract_strided_slice %13 {offsets = [0, 5], sizes = [1, 16], strides = [1, 1]} : vector<1x22xf32> to vector<1x16xf32>
    %c103 = arith.constant 103 : index
    %557 = memref.load %arg2[%c103] : memref<112xf32, #tpu.memory_space<smem>>
    %558 = vector.broadcast %557 : f32 to vector<1x16xf32>
    %559 = arith.mulf %556, %558 : vector<1x16xf32>
    %560 = arith.addf %555, %559 : vector<1x16xf32>
    %561 = vector.extract_strided_slice %13 {offsets = [0, 6], sizes = [1, 16], strides = [1, 1]} : vector<1x22xf32> to vector<1x16xf32>
    %c104 = arith.constant 104 : index
    %562 = memref.load %arg2[%c104] : memref<112xf32, #tpu.memory_space<smem>>
    %563 = vector.broadcast %562 : f32 to vector<1x16xf32>
    %564 = arith.mulf %561, %563 : vector<1x16xf32>
    %565 = arith.addf %560, %564 : vector<1x16xf32>
    %566 = vector.extract_strided_slice %15 {offsets = [0, 0], sizes = [1, 16], strides = [1, 1]} : vector<1x22xf32> to vector<1x16xf32>
    %c105 = arith.constant 105 : index
    %567 = memref.load %arg2[%c105] : memref<112xf32, #tpu.memory_space<smem>>
    %568 = vector.broadcast %567 : f32 to vector<1x16xf32>
    %569 = arith.mulf %566, %568 : vector<1x16xf32>
    %570 = arith.addf %565, %569 : vector<1x16xf32>
    %571 = vector.extract_strided_slice %15 {offsets = [0, 1], sizes = [1, 16], strides = [1, 1]} : vector<1x22xf32> to vector<1x16xf32>
    %c106 = arith.constant 106 : index
    %572 = memref.load %arg2[%c106] : memref<112xf32, #tpu.memory_space<smem>>
    %573 = vector.broadcast %572 : f32 to vector<1x16xf32>
    %574 = arith.mulf %571, %573 : vector<1x16xf32>
    %575 = arith.addf %570, %574 : vector<1x16xf32>
    %576 = vector.extract_strided_slice %15 {offsets = [0, 2], sizes = [1, 16], strides = [1, 1]} : vector<1x22xf32> to vector<1x16xf32>
    %c107 = arith.constant 107 : index
    %577 = memref.load %arg2[%c107] : memref<112xf32, #tpu.memory_space<smem>>
    %578 = vector.broadcast %577 : f32 to vector<1x16xf32>
    %579 = arith.mulf %576, %578 : vector<1x16xf32>
    %580 = arith.addf %575, %579 : vector<1x16xf32>
    %581 = vector.extract_strided_slice %15 {offsets = [0, 3], sizes = [1, 16], strides = [1, 1]} : vector<1x22xf32> to vector<1x16xf32>
    %c108 = arith.constant 108 : index
    %582 = memref.load %arg2[%c108] : memref<112xf32, #tpu.memory_space<smem>>
    %583 = vector.broadcast %582 : f32 to vector<1x16xf32>
    %584 = arith.mulf %581, %583 : vector<1x16xf32>
    %585 = arith.addf %580, %584 : vector<1x16xf32>
    %586 = vector.extract_strided_slice %15 {offsets = [0, 4], sizes = [1, 16], strides = [1, 1]} : vector<1x22xf32> to vector<1x16xf32>
    %c109 = arith.constant 109 : index
    %587 = memref.load %arg2[%c109] : memref<112xf32, #tpu.memory_space<smem>>
    %588 = vector.broadcast %587 : f32 to vector<1x16xf32>
    %589 = arith.mulf %586, %588 : vector<1x16xf32>
    %590 = arith.addf %585, %589 : vector<1x16xf32>
    %591 = vector.extract_strided_slice %15 {offsets = [0, 5], sizes = [1, 16], strides = [1, 1]} : vector<1x22xf32> to vector<1x16xf32>
    %c110 = arith.constant 110 : index
    %592 = memref.load %arg2[%c110] : memref<112xf32, #tpu.memory_space<smem>>
    %593 = vector.broadcast %592 : f32 to vector<1x16xf32>
    %594 = arith.mulf %591, %593 : vector<1x16xf32>
    %595 = arith.addf %590, %594 : vector<1x16xf32>
    %596 = vector.extract_strided_slice %15 {offsets = [0, 6], sizes = [1, 16], strides = [1, 1]} : vector<1x22xf32> to vector<1x16xf32>
    %c111 = arith.constant 111 : index
    %597 = memref.load %arg2[%c111] : memref<112xf32, #tpu.memory_space<smem>>
    %598 = vector.broadcast %597 : f32 to vector<1x16xf32>
    %599 = arith.mulf %596, %598 : vector<1x16xf32>
    %600 = arith.addf %595, %599 : vector<1x16xf32>
    %c3_28 = arith.constant 3 : index
    %601 = memref.load %arg3[%c3_28] : memref<4xf32, #tpu.memory_space<smem>>
    %602 = vector.broadcast %601 : f32 to vector<1x16xf32>
    %603 = arith.addf %600, %602 : vector<1x16xf32>
    %cst_29 = arith.constant 0.000000e+00 : f32
    %604 = vector.broadcast %cst_29 : f32 to vector<1x16xf32>
    %605 = arith.maximumf %603, %604 : vector<1x16xf32>
    %cst_30 = arith.constant 0.000000e+00 : f32
    %606 = vector.broadcast %cst_30 : f32 to vector<1x3xf32>
    %607 = tpu.concatenate %606, %605, %606 in 1 : vector<1x3xf32>, vector<1x16xf32>, vector<1x3xf32> -> vector<1x22xf32>
    %cst_31 = arith.constant 0.000000e+00 : f32
    %608 = vector.broadcast %cst_31 : f32 to vector<1x16xf32>
    %609 = vector.extract_strided_slice %163 {offsets = [0, 0], sizes = [1, 16], strides = [1, 1]} : vector<1x22xf32> to vector<1x16xf32>
    %c0_32 = arith.constant 0 : index
    %610 = memref.load %arg4[%c0_32] : memref<112xf32, #tpu.memory_space<smem>>
    %611 = vector.broadcast %610 : f32 to vector<1x16xf32>
    %612 = arith.mulf %609, %611 : vector<1x16xf32>
    %613 = arith.addf %608, %612 : vector<1x16xf32>
    %614 = vector.extract_strided_slice %163 {offsets = [0, 1], sizes = [1, 16], strides = [1, 1]} : vector<1x22xf32> to vector<1x16xf32>
    %c1_33 = arith.constant 1 : index
    %615 = memref.load %arg4[%c1_33] : memref<112xf32, #tpu.memory_space<smem>>
    %616 = vector.broadcast %615 : f32 to vector<1x16xf32>
    %617 = arith.mulf %614, %616 : vector<1x16xf32>
    %618 = arith.addf %613, %617 : vector<1x16xf32>
    %619 = vector.extract_strided_slice %163 {offsets = [0, 2], sizes = [1, 16], strides = [1, 1]} : vector<1x22xf32> to vector<1x16xf32>
    %c2_34 = arith.constant 2 : index
    %620 = memref.load %arg4[%c2_34] : memref<112xf32, #tpu.memory_space<smem>>
    %621 = vector.broadcast %620 : f32 to vector<1x16xf32>
    %622 = arith.mulf %619, %621 : vector<1x16xf32>
    %623 = arith.addf %618, %622 : vector<1x16xf32>
    %624 = vector.extract_strided_slice %163 {offsets = [0, 3], sizes = [1, 16], strides = [1, 1]} : vector<1x22xf32> to vector<1x16xf32>
    %c3_35 = arith.constant 3 : index
    %625 = memref.load %arg4[%c3_35] : memref<112xf32, #tpu.memory_space<smem>>
    %626 = vector.broadcast %625 : f32 to vector<1x16xf32>
    %627 = arith.mulf %624, %626 : vector<1x16xf32>
    %628 = arith.addf %623, %627 : vector<1x16xf32>
    %629 = vector.extract_strided_slice %163 {offsets = [0, 4], sizes = [1, 16], strides = [1, 1]} : vector<1x22xf32> to vector<1x16xf32>
    %c4_36 = arith.constant 4 : index
    %630 = memref.load %arg4[%c4_36] : memref<112xf32, #tpu.memory_space<smem>>
    %631 = vector.broadcast %630 : f32 to vector<1x16xf32>
    %632 = arith.mulf %629, %631 : vector<1x16xf32>
    %633 = arith.addf %628, %632 : vector<1x16xf32>
    %634 = vector.extract_strided_slice %163 {offsets = [0, 5], sizes = [1, 16], strides = [1, 1]} : vector<1x22xf32> to vector<1x16xf32>
    %c5_37 = arith.constant 5 : index
    %635 = memref.load %arg4[%c5_37] : memref<112xf32, #tpu.memory_space<smem>>
    %636 = vector.broadcast %635 : f32 to vector<1x16xf32>
    %637 = arith.mulf %634, %636 : vector<1x16xf32>
    %638 = arith.addf %633, %637 : vector<1x16xf32>
    %639 = vector.extract_strided_slice %163 {offsets = [0, 6], sizes = [1, 16], strides = [1, 1]} : vector<1x22xf32> to vector<1x16xf32>
    %c6_38 = arith.constant 6 : index
    %640 = memref.load %arg4[%c6_38] : memref<112xf32, #tpu.memory_space<smem>>
    %641 = vector.broadcast %640 : f32 to vector<1x16xf32>
    %642 = arith.mulf %639, %641 : vector<1x16xf32>
    %643 = arith.addf %638, %642 : vector<1x16xf32>
    %644 = vector.extract_strided_slice %311 {offsets = [0, 0], sizes = [1, 16], strides = [1, 1]} : vector<1x22xf32> to vector<1x16xf32>
    %c7_39 = arith.constant 7 : index
    %645 = memref.load %arg4[%c7_39] : memref<112xf32, #tpu.memory_space<smem>>
    %646 = vector.broadcast %645 : f32 to vector<1x16xf32>
    %647 = arith.mulf %644, %646 : vector<1x16xf32>
    %648 = arith.addf %643, %647 : vector<1x16xf32>
    %649 = vector.extract_strided_slice %311 {offsets = [0, 1], sizes = [1, 16], strides = [1, 1]} : vector<1x22xf32> to vector<1x16xf32>
    %c8_40 = arith.constant 8 : index
    %650 = memref.load %arg4[%c8_40] : memref<112xf32, #tpu.memory_space<smem>>
    %651 = vector.broadcast %650 : f32 to vector<1x16xf32>
    %652 = arith.mulf %649, %651 : vector<1x16xf32>
    %653 = arith.addf %648, %652 : vector<1x16xf32>
    %654 = vector.extract_strided_slice %311 {offsets = [0, 2], sizes = [1, 16], strides = [1, 1]} : vector<1x22xf32> to vector<1x16xf32>
    %c9_41 = arith.constant 9 : index
    %655 = memref.load %arg4[%c9_41] : memref<112xf32, #tpu.memory_space<smem>>
    %656 = vector.broadcast %655 : f32 to vector<1x16xf32>
    %657 = arith.mulf %654, %656 : vector<1x16xf32>
    %658 = arith.addf %653, %657 : vector<1x16xf32>
    %659 = vector.extract_strided_slice %311 {offsets = [0, 3], sizes = [1, 16], strides = [1, 1]} : vector<1x22xf32> to vector<1x16xf32>
    %c10_42 = arith.constant 10 : index
    %660 = memref.load %arg4[%c10_42] : memref<112xf32, #tpu.memory_space<smem>>
    %661 = vector.broadcast %660 : f32 to vector<1x16xf32>
    %662 = arith.mulf %659, %661 : vector<1x16xf32>
    %663 = arith.addf %658, %662 : vector<1x16xf32>
    %664 = vector.extract_strided_slice %311 {offsets = [0, 4], sizes = [1, 16], strides = [1, 1]} : vector<1x22xf32> to vector<1x16xf32>
    %c11_43 = arith.constant 11 : index
    %665 = memref.load %arg4[%c11_43] : memref<112xf32, #tpu.memory_space<smem>>
    %666 = vector.broadcast %665 : f32 to vector<1x16xf32>
    %667 = arith.mulf %664, %666 : vector<1x16xf32>
    %668 = arith.addf %663, %667 : vector<1x16xf32>
    %669 = vector.extract_strided_slice %311 {offsets = [0, 5], sizes = [1, 16], strides = [1, 1]} : vector<1x22xf32> to vector<1x16xf32>
    %c12_44 = arith.constant 12 : index
    %670 = memref.load %arg4[%c12_44] : memref<112xf32, #tpu.memory_space<smem>>
    %671 = vector.broadcast %670 : f32 to vector<1x16xf32>
    %672 = arith.mulf %669, %671 : vector<1x16xf32>
    %673 = arith.addf %668, %672 : vector<1x16xf32>
    %674 = vector.extract_strided_slice %311 {offsets = [0, 6], sizes = [1, 16], strides = [1, 1]} : vector<1x22xf32> to vector<1x16xf32>
    %c13_45 = arith.constant 13 : index
    %675 = memref.load %arg4[%c13_45] : memref<112xf32, #tpu.memory_space<smem>>
    %676 = vector.broadcast %675 : f32 to vector<1x16xf32>
    %677 = arith.mulf %674, %676 : vector<1x16xf32>
    %678 = arith.addf %673, %677 : vector<1x16xf32>
    %679 = vector.extract_strided_slice %459 {offsets = [0, 0], sizes = [1, 16], strides = [1, 1]} : vector<1x22xf32> to vector<1x16xf32>
    %c14_46 = arith.constant 14 : index
    %680 = memref.load %arg4[%c14_46] : memref<112xf32, #tpu.memory_space<smem>>
    %681 = vector.broadcast %680 : f32 to vector<1x16xf32>
    %682 = arith.mulf %679, %681 : vector<1x16xf32>
    %683 = arith.addf %678, %682 : vector<1x16xf32>
    %684 = vector.extract_strided_slice %459 {offsets = [0, 1], sizes = [1, 16], strides = [1, 1]} : vector<1x22xf32> to vector<1x16xf32>
    %c15_47 = arith.constant 15 : index
    %685 = memref.load %arg4[%c15_47] : memref<112xf32, #tpu.memory_space<smem>>
    %686 = vector.broadcast %685 : f32 to vector<1x16xf32>
    %687 = arith.mulf %684, %686 : vector<1x16xf32>
    %688 = arith.addf %683, %687 : vector<1x16xf32>
    %689 = vector.extract_strided_slice %459 {offsets = [0, 2], sizes = [1, 16], strides = [1, 1]} : vector<1x22xf32> to vector<1x16xf32>
    %c16_48 = arith.constant 16 : index
    %690 = memref.load %arg4[%c16_48] : memref<112xf32, #tpu.memory_space<smem>>
    %691 = vector.broadcast %690 : f32 to vector<1x16xf32>
    %692 = arith.mulf %689, %691 : vector<1x16xf32>
    %693 = arith.addf %688, %692 : vector<1x16xf32>
    %694 = vector.extract_strided_slice %459 {offsets = [0, 3], sizes = [1, 16], strides = [1, 1]} : vector<1x22xf32> to vector<1x16xf32>
    %c17_49 = arith.constant 17 : index
    %695 = memref.load %arg4[%c17_49] : memref<112xf32, #tpu.memory_space<smem>>
    %696 = vector.broadcast %695 : f32 to vector<1x16xf32>
    %697 = arith.mulf %694, %696 : vector<1x16xf32>
    %698 = arith.addf %693, %697 : vector<1x16xf32>
    %699 = vector.extract_strided_slice %459 {offsets = [0, 4], sizes = [1, 16], strides = [1, 1]} : vector<1x22xf32> to vector<1x16xf32>
    %c18_50 = arith.constant 18 : index
    %700 = memref.load %arg4[%c18_50] : memref<112xf32, #tpu.memory_space<smem>>
    %701 = vector.broadcast %700 : f32 to vector<1x16xf32>
    %702 = arith.mulf %699, %701 : vector<1x16xf32>
    %703 = arith.addf %698, %702 : vector<1x16xf32>
    %704 = vector.extract_strided_slice %459 {offsets = [0, 5], sizes = [1, 16], strides = [1, 1]} : vector<1x22xf32> to vector<1x16xf32>
    %c19_51 = arith.constant 19 : index
    %705 = memref.load %arg4[%c19_51] : memref<112xf32, #tpu.memory_space<smem>>
    %706 = vector.broadcast %705 : f32 to vector<1x16xf32>
    %707 = arith.mulf %704, %706 : vector<1x16xf32>
    %708 = arith.addf %703, %707 : vector<1x16xf32>
    %709 = vector.extract_strided_slice %459 {offsets = [0, 6], sizes = [1, 16], strides = [1, 1]} : vector<1x22xf32> to vector<1x16xf32>
    %c20_52 = arith.constant 20 : index
    %710 = memref.load %arg4[%c20_52] : memref<112xf32, #tpu.memory_space<smem>>
    %711 = vector.broadcast %710 : f32 to vector<1x16xf32>
    %712 = arith.mulf %709, %711 : vector<1x16xf32>
    %713 = arith.addf %708, %712 : vector<1x16xf32>
    %714 = vector.extract_strided_slice %607 {offsets = [0, 0], sizes = [1, 16], strides = [1, 1]} : vector<1x22xf32> to vector<1x16xf32>
    %c21_53 = arith.constant 21 : index
    %715 = memref.load %arg4[%c21_53] : memref<112xf32, #tpu.memory_space<smem>>
    %716 = vector.broadcast %715 : f32 to vector<1x16xf32>
    %717 = arith.mulf %714, %716 : vector<1x16xf32>
    %718 = arith.addf %713, %717 : vector<1x16xf32>
    %719 = vector.extract_strided_slice %607 {offsets = [0, 1], sizes = [1, 16], strides = [1, 1]} : vector<1x22xf32> to vector<1x16xf32>
    %c22_54 = arith.constant 22 : index
    %720 = memref.load %arg4[%c22_54] : memref<112xf32, #tpu.memory_space<smem>>
    %721 = vector.broadcast %720 : f32 to vector<1x16xf32>
    %722 = arith.mulf %719, %721 : vector<1x16xf32>
    %723 = arith.addf %718, %722 : vector<1x16xf32>
    %724 = vector.extract_strided_slice %607 {offsets = [0, 2], sizes = [1, 16], strides = [1, 1]} : vector<1x22xf32> to vector<1x16xf32>
    %c23_55 = arith.constant 23 : index
    %725 = memref.load %arg4[%c23_55] : memref<112xf32, #tpu.memory_space<smem>>
    %726 = vector.broadcast %725 : f32 to vector<1x16xf32>
    %727 = arith.mulf %724, %726 : vector<1x16xf32>
    %728 = arith.addf %723, %727 : vector<1x16xf32>
    %729 = vector.extract_strided_slice %607 {offsets = [0, 3], sizes = [1, 16], strides = [1, 1]} : vector<1x22xf32> to vector<1x16xf32>
    %c24_56 = arith.constant 24 : index
    %730 = memref.load %arg4[%c24_56] : memref<112xf32, #tpu.memory_space<smem>>
    %731 = vector.broadcast %730 : f32 to vector<1x16xf32>
    %732 = arith.mulf %729, %731 : vector<1x16xf32>
    %733 = arith.addf %728, %732 : vector<1x16xf32>
    %734 = vector.extract_strided_slice %607 {offsets = [0, 4], sizes = [1, 16], strides = [1, 1]} : vector<1x22xf32> to vector<1x16xf32>
    %c25_57 = arith.constant 25 : index
    %735 = memref.load %arg4[%c25_57] : memref<112xf32, #tpu.memory_space<smem>>
    %736 = vector.broadcast %735 : f32 to vector<1x16xf32>
    %737 = arith.mulf %734, %736 : vector<1x16xf32>
    %738 = arith.addf %733, %737 : vector<1x16xf32>
    %739 = vector.extract_strided_slice %607 {offsets = [0, 5], sizes = [1, 16], strides = [1, 1]} : vector<1x22xf32> to vector<1x16xf32>
    %c26_58 = arith.constant 26 : index
    %740 = memref.load %arg4[%c26_58] : memref<112xf32, #tpu.memory_space<smem>>
    %741 = vector.broadcast %740 : f32 to vector<1x16xf32>
    %742 = arith.mulf %739, %741 : vector<1x16xf32>
    %743 = arith.addf %738, %742 : vector<1x16xf32>
    %744 = vector.extract_strided_slice %607 {offsets = [0, 6], sizes = [1, 16], strides = [1, 1]} : vector<1x22xf32> to vector<1x16xf32>
    %c27_59 = arith.constant 27 : index
    %745 = memref.load %arg4[%c27_59] : memref<112xf32, #tpu.memory_space<smem>>
    %746 = vector.broadcast %745 : f32 to vector<1x16xf32>
    %747 = arith.mulf %744, %746 : vector<1x16xf32>
    %748 = arith.addf %743, %747 : vector<1x16xf32>
    %c0_60 = arith.constant 0 : index
    %749 = memref.load %arg5[%c0_60] : memref<4xf32, #tpu.memory_space<smem>>
    %750 = vector.broadcast %749 : f32 to vector<1x16xf32>
    %751 = arith.addf %748, %750 : vector<1x16xf32>
    %752 = arith.addf %751, %1 : vector<1x16xf32>
    %cst_61 = arith.constant 0.000000e+00 : f32
    %753 = vector.broadcast %cst_61 : f32 to vector<1x16xf32>
    %754 = arith.maximumf %752, %753 : vector<1x16xf32>
    %cst_62 = arith.constant 0.000000e+00 : f32
    %755 = vector.broadcast %cst_62 : f32 to vector<1x16xf32>
    %756 = vector.extract_strided_slice %163 {offsets = [0, 0], sizes = [1, 16], strides = [1, 1]} : vector<1x22xf32> to vector<1x16xf32>
    %c28_63 = arith.constant 28 : index
    %757 = memref.load %arg4[%c28_63] : memref<112xf32, #tpu.memory_space<smem>>
    %758 = vector.broadcast %757 : f32 to vector<1x16xf32>
    %759 = arith.mulf %756, %758 : vector<1x16xf32>
    %760 = arith.addf %755, %759 : vector<1x16xf32>
    %761 = vector.extract_strided_slice %163 {offsets = [0, 1], sizes = [1, 16], strides = [1, 1]} : vector<1x22xf32> to vector<1x16xf32>
    %c29_64 = arith.constant 29 : index
    %762 = memref.load %arg4[%c29_64] : memref<112xf32, #tpu.memory_space<smem>>
    %763 = vector.broadcast %762 : f32 to vector<1x16xf32>
    %764 = arith.mulf %761, %763 : vector<1x16xf32>
    %765 = arith.addf %760, %764 : vector<1x16xf32>
    %766 = vector.extract_strided_slice %163 {offsets = [0, 2], sizes = [1, 16], strides = [1, 1]} : vector<1x22xf32> to vector<1x16xf32>
    %c30_65 = arith.constant 30 : index
    %767 = memref.load %arg4[%c30_65] : memref<112xf32, #tpu.memory_space<smem>>
    %768 = vector.broadcast %767 : f32 to vector<1x16xf32>
    %769 = arith.mulf %766, %768 : vector<1x16xf32>
    %770 = arith.addf %765, %769 : vector<1x16xf32>
    %771 = vector.extract_strided_slice %163 {offsets = [0, 3], sizes = [1, 16], strides = [1, 1]} : vector<1x22xf32> to vector<1x16xf32>
    %c31_66 = arith.constant 31 : index
    %772 = memref.load %arg4[%c31_66] : memref<112xf32, #tpu.memory_space<smem>>
    %773 = vector.broadcast %772 : f32 to vector<1x16xf32>
    %774 = arith.mulf %771, %773 : vector<1x16xf32>
    %775 = arith.addf %770, %774 : vector<1x16xf32>
    %776 = vector.extract_strided_slice %163 {offsets = [0, 4], sizes = [1, 16], strides = [1, 1]} : vector<1x22xf32> to vector<1x16xf32>
    %c32_67 = arith.constant 32 : index
    %777 = memref.load %arg4[%c32_67] : memref<112xf32, #tpu.memory_space<smem>>
    %778 = vector.broadcast %777 : f32 to vector<1x16xf32>
    %779 = arith.mulf %776, %778 : vector<1x16xf32>
    %780 = arith.addf %775, %779 : vector<1x16xf32>
    %781 = vector.extract_strided_slice %163 {offsets = [0, 5], sizes = [1, 16], strides = [1, 1]} : vector<1x22xf32> to vector<1x16xf32>
    %c33_68 = arith.constant 33 : index
    %782 = memref.load %arg4[%c33_68] : memref<112xf32, #tpu.memory_space<smem>>
    %783 = vector.broadcast %782 : f32 to vector<1x16xf32>
    %784 = arith.mulf %781, %783 : vector<1x16xf32>
    %785 = arith.addf %780, %784 : vector<1x16xf32>
    %786 = vector.extract_strided_slice %163 {offsets = [0, 6], sizes = [1, 16], strides = [1, 1]} : vector<1x22xf32> to vector<1x16xf32>
    %c34_69 = arith.constant 34 : index
    %787 = memref.load %arg4[%c34_69] : memref<112xf32, #tpu.memory_space<smem>>
    %788 = vector.broadcast %787 : f32 to vector<1x16xf32>
    %789 = arith.mulf %786, %788 : vector<1x16xf32>
    %790 = arith.addf %785, %789 : vector<1x16xf32>
    %791 = vector.extract_strided_slice %311 {offsets = [0, 0], sizes = [1, 16], strides = [1, 1]} : vector<1x22xf32> to vector<1x16xf32>
    %c35_70 = arith.constant 35 : index
    %792 = memref.load %arg4[%c35_70] : memref<112xf32, #tpu.memory_space<smem>>
    %793 = vector.broadcast %792 : f32 to vector<1x16xf32>
    %794 = arith.mulf %791, %793 : vector<1x16xf32>
    %795 = arith.addf %790, %794 : vector<1x16xf32>
    %796 = vector.extract_strided_slice %311 {offsets = [0, 1], sizes = [1, 16], strides = [1, 1]} : vector<1x22xf32> to vector<1x16xf32>
    %c36_71 = arith.constant 36 : index
    %797 = memref.load %arg4[%c36_71] : memref<112xf32, #tpu.memory_space<smem>>
    %798 = vector.broadcast %797 : f32 to vector<1x16xf32>
    %799 = arith.mulf %796, %798 : vector<1x16xf32>
    %800 = arith.addf %795, %799 : vector<1x16xf32>
    %801 = vector.extract_strided_slice %311 {offsets = [0, 2], sizes = [1, 16], strides = [1, 1]} : vector<1x22xf32> to vector<1x16xf32>
    %c37_72 = arith.constant 37 : index
    %802 = memref.load %arg4[%c37_72] : memref<112xf32, #tpu.memory_space<smem>>
    %803 = vector.broadcast %802 : f32 to vector<1x16xf32>
    %804 = arith.mulf %801, %803 : vector<1x16xf32>
    %805 = arith.addf %800, %804 : vector<1x16xf32>
    %806 = vector.extract_strided_slice %311 {offsets = [0, 3], sizes = [1, 16], strides = [1, 1]} : vector<1x22xf32> to vector<1x16xf32>
    %c38_73 = arith.constant 38 : index
    %807 = memref.load %arg4[%c38_73] : memref<112xf32, #tpu.memory_space<smem>>
    %808 = vector.broadcast %807 : f32 to vector<1x16xf32>
    %809 = arith.mulf %806, %808 : vector<1x16xf32>
    %810 = arith.addf %805, %809 : vector<1x16xf32>
    %811 = vector.extract_strided_slice %311 {offsets = [0, 4], sizes = [1, 16], strides = [1, 1]} : vector<1x22xf32> to vector<1x16xf32>
    %c39_74 = arith.constant 39 : index
    %812 = memref.load %arg4[%c39_74] : memref<112xf32, #tpu.memory_space<smem>>
    %813 = vector.broadcast %812 : f32 to vector<1x16xf32>
    %814 = arith.mulf %811, %813 : vector<1x16xf32>
    %815 = arith.addf %810, %814 : vector<1x16xf32>
    %816 = vector.extract_strided_slice %311 {offsets = [0, 5], sizes = [1, 16], strides = [1, 1]} : vector<1x22xf32> to vector<1x16xf32>
    %c40_75 = arith.constant 40 : index
    %817 = memref.load %arg4[%c40_75] : memref<112xf32, #tpu.memory_space<smem>>
    %818 = vector.broadcast %817 : f32 to vector<1x16xf32>
    %819 = arith.mulf %816, %818 : vector<1x16xf32>
    %820 = arith.addf %815, %819 : vector<1x16xf32>
    %821 = vector.extract_strided_slice %311 {offsets = [0, 6], sizes = [1, 16], strides = [1, 1]} : vector<1x22xf32> to vector<1x16xf32>
    %c41_76 = arith.constant 41 : index
    %822 = memref.load %arg4[%c41_76] : memref<112xf32, #tpu.memory_space<smem>>
    %823 = vector.broadcast %822 : f32 to vector<1x16xf32>
    %824 = arith.mulf %821, %823 : vector<1x16xf32>
    %825 = arith.addf %820, %824 : vector<1x16xf32>
    %826 = vector.extract_strided_slice %459 {offsets = [0, 0], sizes = [1, 16], strides = [1, 1]} : vector<1x22xf32> to vector<1x16xf32>
    %c42_77 = arith.constant 42 : index
    %827 = memref.load %arg4[%c42_77] : memref<112xf32, #tpu.memory_space<smem>>
    %828 = vector.broadcast %827 : f32 to vector<1x16xf32>
    %829 = arith.mulf %826, %828 : vector<1x16xf32>
    %830 = arith.addf %825, %829 : vector<1x16xf32>
    %831 = vector.extract_strided_slice %459 {offsets = [0, 1], sizes = [1, 16], strides = [1, 1]} : vector<1x22xf32> to vector<1x16xf32>
    %c43_78 = arith.constant 43 : index
    %832 = memref.load %arg4[%c43_78] : memref<112xf32, #tpu.memory_space<smem>>
    %833 = vector.broadcast %832 : f32 to vector<1x16xf32>
    %834 = arith.mulf %831, %833 : vector<1x16xf32>
    %835 = arith.addf %830, %834 : vector<1x16xf32>
    %836 = vector.extract_strided_slice %459 {offsets = [0, 2], sizes = [1, 16], strides = [1, 1]} : vector<1x22xf32> to vector<1x16xf32>
    %c44_79 = arith.constant 44 : index
    %837 = memref.load %arg4[%c44_79] : memref<112xf32, #tpu.memory_space<smem>>
    %838 = vector.broadcast %837 : f32 to vector<1x16xf32>
    %839 = arith.mulf %836, %838 : vector<1x16xf32>
    %840 = arith.addf %835, %839 : vector<1x16xf32>
    %841 = vector.extract_strided_slice %459 {offsets = [0, 3], sizes = [1, 16], strides = [1, 1]} : vector<1x22xf32> to vector<1x16xf32>
    %c45_80 = arith.constant 45 : index
    %842 = memref.load %arg4[%c45_80] : memref<112xf32, #tpu.memory_space<smem>>
    %843 = vector.broadcast %842 : f32 to vector<1x16xf32>
    %844 = arith.mulf %841, %843 : vector<1x16xf32>
    %845 = arith.addf %840, %844 : vector<1x16xf32>
    %846 = vector.extract_strided_slice %459 {offsets = [0, 4], sizes = [1, 16], strides = [1, 1]} : vector<1x22xf32> to vector<1x16xf32>
    %c46_81 = arith.constant 46 : index
    %847 = memref.load %arg4[%c46_81] : memref<112xf32, #tpu.memory_space<smem>>
    %848 = vector.broadcast %847 : f32 to vector<1x16xf32>
    %849 = arith.mulf %846, %848 : vector<1x16xf32>
    %850 = arith.addf %845, %849 : vector<1x16xf32>
    %851 = vector.extract_strided_slice %459 {offsets = [0, 5], sizes = [1, 16], strides = [1, 1]} : vector<1x22xf32> to vector<1x16xf32>
    %c47_82 = arith.constant 47 : index
    %852 = memref.load %arg4[%c47_82] : memref<112xf32, #tpu.memory_space<smem>>
    %853 = vector.broadcast %852 : f32 to vector<1x16xf32>
    %854 = arith.mulf %851, %853 : vector<1x16xf32>
    %855 = arith.addf %850, %854 : vector<1x16xf32>
    %856 = vector.extract_strided_slice %459 {offsets = [0, 6], sizes = [1, 16], strides = [1, 1]} : vector<1x22xf32> to vector<1x16xf32>
    %c48_83 = arith.constant 48 : index
    %857 = memref.load %arg4[%c48_83] : memref<112xf32, #tpu.memory_space<smem>>
    %858 = vector.broadcast %857 : f32 to vector<1x16xf32>
    %859 = arith.mulf %856, %858 : vector<1x16xf32>
    %860 = arith.addf %855, %859 : vector<1x16xf32>
    %861 = vector.extract_strided_slice %607 {offsets = [0, 0], sizes = [1, 16], strides = [1, 1]} : vector<1x22xf32> to vector<1x16xf32>
    %c49_84 = arith.constant 49 : index
    %862 = memref.load %arg4[%c49_84] : memref<112xf32, #tpu.memory_space<smem>>
    %863 = vector.broadcast %862 : f32 to vector<1x16xf32>
    %864 = arith.mulf %861, %863 : vector<1x16xf32>
    %865 = arith.addf %860, %864 : vector<1x16xf32>
    %866 = vector.extract_strided_slice %607 {offsets = [0, 1], sizes = [1, 16], strides = [1, 1]} : vector<1x22xf32> to vector<1x16xf32>
    %c50_85 = arith.constant 50 : index
    %867 = memref.load %arg4[%c50_85] : memref<112xf32, #tpu.memory_space<smem>>
    %868 = vector.broadcast %867 : f32 to vector<1x16xf32>
    %869 = arith.mulf %866, %868 : vector<1x16xf32>
    %870 = arith.addf %865, %869 : vector<1x16xf32>
    %871 = vector.extract_strided_slice %607 {offsets = [0, 2], sizes = [1, 16], strides = [1, 1]} : vector<1x22xf32> to vector<1x16xf32>
    %c51_86 = arith.constant 51 : index
    %872 = memref.load %arg4[%c51_86] : memref<112xf32, #tpu.memory_space<smem>>
    %873 = vector.broadcast %872 : f32 to vector<1x16xf32>
    %874 = arith.mulf %871, %873 : vector<1x16xf32>
    %875 = arith.addf %870, %874 : vector<1x16xf32>
    %876 = vector.extract_strided_slice %607 {offsets = [0, 3], sizes = [1, 16], strides = [1, 1]} : vector<1x22xf32> to vector<1x16xf32>
    %c52_87 = arith.constant 52 : index
    %877 = memref.load %arg4[%c52_87] : memref<112xf32, #tpu.memory_space<smem>>
    %878 = vector.broadcast %877 : f32 to vector<1x16xf32>
    %879 = arith.mulf %876, %878 : vector<1x16xf32>
    %880 = arith.addf %875, %879 : vector<1x16xf32>
    %881 = vector.extract_strided_slice %607 {offsets = [0, 4], sizes = [1, 16], strides = [1, 1]} : vector<1x22xf32> to vector<1x16xf32>
    %c53_88 = arith.constant 53 : index
    %882 = memref.load %arg4[%c53_88] : memref<112xf32, #tpu.memory_space<smem>>
    %883 = vector.broadcast %882 : f32 to vector<1x16xf32>
    %884 = arith.mulf %881, %883 : vector<1x16xf32>
    %885 = arith.addf %880, %884 : vector<1x16xf32>
    %886 = vector.extract_strided_slice %607 {offsets = [0, 5], sizes = [1, 16], strides = [1, 1]} : vector<1x22xf32> to vector<1x16xf32>
    %c54_89 = arith.constant 54 : index
    %887 = memref.load %arg4[%c54_89] : memref<112xf32, #tpu.memory_space<smem>>
    %888 = vector.broadcast %887 : f32 to vector<1x16xf32>
    %889 = arith.mulf %886, %888 : vector<1x16xf32>
    %890 = arith.addf %885, %889 : vector<1x16xf32>
    %891 = vector.extract_strided_slice %607 {offsets = [0, 6], sizes = [1, 16], strides = [1, 1]} : vector<1x22xf32> to vector<1x16xf32>
    %c55_90 = arith.constant 55 : index
    %892 = memref.load %arg4[%c55_90] : memref<112xf32, #tpu.memory_space<smem>>
    %893 = vector.broadcast %892 : f32 to vector<1x16xf32>
    %894 = arith.mulf %891, %893 : vector<1x16xf32>
    %895 = arith.addf %890, %894 : vector<1x16xf32>
    %c1_91 = arith.constant 1 : index
    %896 = memref.load %arg5[%c1_91] : memref<4xf32, #tpu.memory_space<smem>>
    %897 = vector.broadcast %896 : f32 to vector<1x16xf32>
    %898 = arith.addf %895, %897 : vector<1x16xf32>
    %899 = arith.addf %898, %3 : vector<1x16xf32>
    %cst_92 = arith.constant 0.000000e+00 : f32
    %900 = vector.broadcast %cst_92 : f32 to vector<1x16xf32>
    %901 = arith.maximumf %899, %900 : vector<1x16xf32>
    %cst_93 = arith.constant 0.000000e+00 : f32
    %902 = vector.broadcast %cst_93 : f32 to vector<1x16xf32>
    %903 = vector.extract_strided_slice %163 {offsets = [0, 0], sizes = [1, 16], strides = [1, 1]} : vector<1x22xf32> to vector<1x16xf32>
    %c56_94 = arith.constant 56 : index
    %904 = memref.load %arg4[%c56_94] : memref<112xf32, #tpu.memory_space<smem>>
    %905 = vector.broadcast %904 : f32 to vector<1x16xf32>
    %906 = arith.mulf %903, %905 : vector<1x16xf32>
    %907 = arith.addf %902, %906 : vector<1x16xf32>
    %908 = vector.extract_strided_slice %163 {offsets = [0, 1], sizes = [1, 16], strides = [1, 1]} : vector<1x22xf32> to vector<1x16xf32>
    %c57_95 = arith.constant 57 : index
    %909 = memref.load %arg4[%c57_95] : memref<112xf32, #tpu.memory_space<smem>>
    %910 = vector.broadcast %909 : f32 to vector<1x16xf32>
    %911 = arith.mulf %908, %910 : vector<1x16xf32>
    %912 = arith.addf %907, %911 : vector<1x16xf32>
    %913 = vector.extract_strided_slice %163 {offsets = [0, 2], sizes = [1, 16], strides = [1, 1]} : vector<1x22xf32> to vector<1x16xf32>
    %c58_96 = arith.constant 58 : index
    %914 = memref.load %arg4[%c58_96] : memref<112xf32, #tpu.memory_space<smem>>
    %915 = vector.broadcast %914 : f32 to vector<1x16xf32>
    %916 = arith.mulf %913, %915 : vector<1x16xf32>
    %917 = arith.addf %912, %916 : vector<1x16xf32>
    %918 = vector.extract_strided_slice %163 {offsets = [0, 3], sizes = [1, 16], strides = [1, 1]} : vector<1x22xf32> to vector<1x16xf32>
    %c59_97 = arith.constant 59 : index
    %919 = memref.load %arg4[%c59_97] : memref<112xf32, #tpu.memory_space<smem>>
    %920 = vector.broadcast %919 : f32 to vector<1x16xf32>
    %921 = arith.mulf %918, %920 : vector<1x16xf32>
    %922 = arith.addf %917, %921 : vector<1x16xf32>
    %923 = vector.extract_strided_slice %163 {offsets = [0, 4], sizes = [1, 16], strides = [1, 1]} : vector<1x22xf32> to vector<1x16xf32>
    %c60_98 = arith.constant 60 : index
    %924 = memref.load %arg4[%c60_98] : memref<112xf32, #tpu.memory_space<smem>>
    %925 = vector.broadcast %924 : f32 to vector<1x16xf32>
    %926 = arith.mulf %923, %925 : vector<1x16xf32>
    %927 = arith.addf %922, %926 : vector<1x16xf32>
    %928 = vector.extract_strided_slice %163 {offsets = [0, 5], sizes = [1, 16], strides = [1, 1]} : vector<1x22xf32> to vector<1x16xf32>
    %c61_99 = arith.constant 61 : index
    %929 = memref.load %arg4[%c61_99] : memref<112xf32, #tpu.memory_space<smem>>
    %930 = vector.broadcast %929 : f32 to vector<1x16xf32>
    %931 = arith.mulf %928, %930 : vector<1x16xf32>
    %932 = arith.addf %927, %931 : vector<1x16xf32>
    %933 = vector.extract_strided_slice %163 {offsets = [0, 6], sizes = [1, 16], strides = [1, 1]} : vector<1x22xf32> to vector<1x16xf32>
    %c62_100 = arith.constant 62 : index
    %934 = memref.load %arg4[%c62_100] : memref<112xf32, #tpu.memory_space<smem>>
    %935 = vector.broadcast %934 : f32 to vector<1x16xf32>
    %936 = arith.mulf %933, %935 : vector<1x16xf32>
    %937 = arith.addf %932, %936 : vector<1x16xf32>
    %938 = vector.extract_strided_slice %311 {offsets = [0, 0], sizes = [1, 16], strides = [1, 1]} : vector<1x22xf32> to vector<1x16xf32>
    %c63_101 = arith.constant 63 : index
    %939 = memref.load %arg4[%c63_101] : memref<112xf32, #tpu.memory_space<smem>>
    %940 = vector.broadcast %939 : f32 to vector<1x16xf32>
    %941 = arith.mulf %938, %940 : vector<1x16xf32>
    %942 = arith.addf %937, %941 : vector<1x16xf32>
    %943 = vector.extract_strided_slice %311 {offsets = [0, 1], sizes = [1, 16], strides = [1, 1]} : vector<1x22xf32> to vector<1x16xf32>
    %c64_102 = arith.constant 64 : index
    %944 = memref.load %arg4[%c64_102] : memref<112xf32, #tpu.memory_space<smem>>
    %945 = vector.broadcast %944 : f32 to vector<1x16xf32>
    %946 = arith.mulf %943, %945 : vector<1x16xf32>
    %947 = arith.addf %942, %946 : vector<1x16xf32>
    %948 = vector.extract_strided_slice %311 {offsets = [0, 2], sizes = [1, 16], strides = [1, 1]} : vector<1x22xf32> to vector<1x16xf32>
    %c65_103 = arith.constant 65 : index
    %949 = memref.load %arg4[%c65_103] : memref<112xf32, #tpu.memory_space<smem>>
    %950 = vector.broadcast %949 : f32 to vector<1x16xf32>
    %951 = arith.mulf %948, %950 : vector<1x16xf32>
    %952 = arith.addf %947, %951 : vector<1x16xf32>
    %953 = vector.extract_strided_slice %311 {offsets = [0, 3], sizes = [1, 16], strides = [1, 1]} : vector<1x22xf32> to vector<1x16xf32>
    %c66_104 = arith.constant 66 : index
    %954 = memref.load %arg4[%c66_104] : memref<112xf32, #tpu.memory_space<smem>>
    %955 = vector.broadcast %954 : f32 to vector<1x16xf32>
    %956 = arith.mulf %953, %955 : vector<1x16xf32>
    %957 = arith.addf %952, %956 : vector<1x16xf32>
    %958 = vector.extract_strided_slice %311 {offsets = [0, 4], sizes = [1, 16], strides = [1, 1]} : vector<1x22xf32> to vector<1x16xf32>
    %c67_105 = arith.constant 67 : index
    %959 = memref.load %arg4[%c67_105] : memref<112xf32, #tpu.memory_space<smem>>
    %960 = vector.broadcast %959 : f32 to vector<1x16xf32>
    %961 = arith.mulf %958, %960 : vector<1x16xf32>
    %962 = arith.addf %957, %961 : vector<1x16xf32>
    %963 = vector.extract_strided_slice %311 {offsets = [0, 5], sizes = [1, 16], strides = [1, 1]} : vector<1x22xf32> to vector<1x16xf32>
    %c68_106 = arith.constant 68 : index
    %964 = memref.load %arg4[%c68_106] : memref<112xf32, #tpu.memory_space<smem>>
    %965 = vector.broadcast %964 : f32 to vector<1x16xf32>
    %966 = arith.mulf %963, %965 : vector<1x16xf32>
    %967 = arith.addf %962, %966 : vector<1x16xf32>
    %968 = vector.extract_strided_slice %311 {offsets = [0, 6], sizes = [1, 16], strides = [1, 1]} : vector<1x22xf32> to vector<1x16xf32>
    %c69_107 = arith.constant 69 : index
    %969 = memref.load %arg4[%c69_107] : memref<112xf32, #tpu.memory_space<smem>>
    %970 = vector.broadcast %969 : f32 to vector<1x16xf32>
    %971 = arith.mulf %968, %970 : vector<1x16xf32>
    %972 = arith.addf %967, %971 : vector<1x16xf32>
    %973 = vector.extract_strided_slice %459 {offsets = [0, 0], sizes = [1, 16], strides = [1, 1]} : vector<1x22xf32> to vector<1x16xf32>
    %c70_108 = arith.constant 70 : index
    %974 = memref.load %arg4[%c70_108] : memref<112xf32, #tpu.memory_space<smem>>
    %975 = vector.broadcast %974 : f32 to vector<1x16xf32>
    %976 = arith.mulf %973, %975 : vector<1x16xf32>
    %977 = arith.addf %972, %976 : vector<1x16xf32>
    %978 = vector.extract_strided_slice %459 {offsets = [0, 1], sizes = [1, 16], strides = [1, 1]} : vector<1x22xf32> to vector<1x16xf32>
    %c71_109 = arith.constant 71 : index
    %979 = memref.load %arg4[%c71_109] : memref<112xf32, #tpu.memory_space<smem>>
    %980 = vector.broadcast %979 : f32 to vector<1x16xf32>
    %981 = arith.mulf %978, %980 : vector<1x16xf32>
    %982 = arith.addf %977, %981 : vector<1x16xf32>
    %983 = vector.extract_strided_slice %459 {offsets = [0, 2], sizes = [1, 16], strides = [1, 1]} : vector<1x22xf32> to vector<1x16xf32>
    %c72_110 = arith.constant 72 : index
    %984 = memref.load %arg4[%c72_110] : memref<112xf32, #tpu.memory_space<smem>>
    %985 = vector.broadcast %984 : f32 to vector<1x16xf32>
    %986 = arith.mulf %983, %985 : vector<1x16xf32>
    %987 = arith.addf %982, %986 : vector<1x16xf32>
    %988 = vector.extract_strided_slice %459 {offsets = [0, 3], sizes = [1, 16], strides = [1, 1]} : vector<1x22xf32> to vector<1x16xf32>
    %c73_111 = arith.constant 73 : index
    %989 = memref.load %arg4[%c73_111] : memref<112xf32, #tpu.memory_space<smem>>
    %990 = vector.broadcast %989 : f32 to vector<1x16xf32>
    %991 = arith.mulf %988, %990 : vector<1x16xf32>
    %992 = arith.addf %987, %991 : vector<1x16xf32>
    %993 = vector.extract_strided_slice %459 {offsets = [0, 4], sizes = [1, 16], strides = [1, 1]} : vector<1x22xf32> to vector<1x16xf32>
    %c74_112 = arith.constant 74 : index
    %994 = memref.load %arg4[%c74_112] : memref<112xf32, #tpu.memory_space<smem>>
    %995 = vector.broadcast %994 : f32 to vector<1x16xf32>
    %996 = arith.mulf %993, %995 : vector<1x16xf32>
    %997 = arith.addf %992, %996 : vector<1x16xf32>
    %998 = vector.extract_strided_slice %459 {offsets = [0, 5], sizes = [1, 16], strides = [1, 1]} : vector<1x22xf32> to vector<1x16xf32>
    %c75_113 = arith.constant 75 : index
    %999 = memref.load %arg4[%c75_113] : memref<112xf32, #tpu.memory_space<smem>>
    %1000 = vector.broadcast %999 : f32 to vector<1x16xf32>
    %1001 = arith.mulf %998, %1000 : vector<1x16xf32>
    %1002 = arith.addf %997, %1001 : vector<1x16xf32>
    %1003 = vector.extract_strided_slice %459 {offsets = [0, 6], sizes = [1, 16], strides = [1, 1]} : vector<1x22xf32> to vector<1x16xf32>
    %c76_114 = arith.constant 76 : index
    %1004 = memref.load %arg4[%c76_114] : memref<112xf32, #tpu.memory_space<smem>>
    %1005 = vector.broadcast %1004 : f32 to vector<1x16xf32>
    %1006 = arith.mulf %1003, %1005 : vector<1x16xf32>
    %1007 = arith.addf %1002, %1006 : vector<1x16xf32>
    %1008 = vector.extract_strided_slice %607 {offsets = [0, 0], sizes = [1, 16], strides = [1, 1]} : vector<1x22xf32> to vector<1x16xf32>
    %c77_115 = arith.constant 77 : index
    %1009 = memref.load %arg4[%c77_115] : memref<112xf32, #tpu.memory_space<smem>>
    %1010 = vector.broadcast %1009 : f32 to vector<1x16xf32>
    %1011 = arith.mulf %1008, %1010 : vector<1x16xf32>
    %1012 = arith.addf %1007, %1011 : vector<1x16xf32>
    %1013 = vector.extract_strided_slice %607 {offsets = [0, 1], sizes = [1, 16], strides = [1, 1]} : vector<1x22xf32> to vector<1x16xf32>
    %c78_116 = arith.constant 78 : index
    %1014 = memref.load %arg4[%c78_116] : memref<112xf32, #tpu.memory_space<smem>>
    %1015 = vector.broadcast %1014 : f32 to vector<1x16xf32>
    %1016 = arith.mulf %1013, %1015 : vector<1x16xf32>
    %1017 = arith.addf %1012, %1016 : vector<1x16xf32>
    %1018 = vector.extract_strided_slice %607 {offsets = [0, 2], sizes = [1, 16], strides = [1, 1]} : vector<1x22xf32> to vector<1x16xf32>
    %c79_117 = arith.constant 79 : index
    %1019 = memref.load %arg4[%c79_117] : memref<112xf32, #tpu.memory_space<smem>>
    %1020 = vector.broadcast %1019 : f32 to vector<1x16xf32>
    %1021 = arith.mulf %1018, %1020 : vector<1x16xf32>
    %1022 = arith.addf %1017, %1021 : vector<1x16xf32>
    %1023 = vector.extract_strided_slice %607 {offsets = [0, 3], sizes = [1, 16], strides = [1, 1]} : vector<1x22xf32> to vector<1x16xf32>
    %c80_118 = arith.constant 80 : index
    %1024 = memref.load %arg4[%c80_118] : memref<112xf32, #tpu.memory_space<smem>>
    %1025 = vector.broadcast %1024 : f32 to vector<1x16xf32>
    %1026 = arith.mulf %1023, %1025 : vector<1x16xf32>
    %1027 = arith.addf %1022, %1026 : vector<1x16xf32>
    %1028 = vector.extract_strided_slice %607 {offsets = [0, 4], sizes = [1, 16], strides = [1, 1]} : vector<1x22xf32> to vector<1x16xf32>
    %c81_119 = arith.constant 81 : index
    %1029 = memref.load %arg4[%c81_119] : memref<112xf32, #tpu.memory_space<smem>>
    %1030 = vector.broadcast %1029 : f32 to vector<1x16xf32>
    %1031 = arith.mulf %1028, %1030 : vector<1x16xf32>
    %1032 = arith.addf %1027, %1031 : vector<1x16xf32>
    %1033 = vector.extract_strided_slice %607 {offsets = [0, 5], sizes = [1, 16], strides = [1, 1]} : vector<1x22xf32> to vector<1x16xf32>
    %c82_120 = arith.constant 82 : index
    %1034 = memref.load %arg4[%c82_120] : memref<112xf32, #tpu.memory_space<smem>>
    %1035 = vector.broadcast %1034 : f32 to vector<1x16xf32>
    %1036 = arith.mulf %1033, %1035 : vector<1x16xf32>
    %1037 = arith.addf %1032, %1036 : vector<1x16xf32>
    %1038 = vector.extract_strided_slice %607 {offsets = [0, 6], sizes = [1, 16], strides = [1, 1]} : vector<1x22xf32> to vector<1x16xf32>
    %c83_121 = arith.constant 83 : index
    %1039 = memref.load %arg4[%c83_121] : memref<112xf32, #tpu.memory_space<smem>>
    %1040 = vector.broadcast %1039 : f32 to vector<1x16xf32>
    %1041 = arith.mulf %1038, %1040 : vector<1x16xf32>
    %1042 = arith.addf %1037, %1041 : vector<1x16xf32>
    %c2_122 = arith.constant 2 : index
    %1043 = memref.load %arg5[%c2_122] : memref<4xf32, #tpu.memory_space<smem>>
    %1044 = vector.broadcast %1043 : f32 to vector<1x16xf32>
    %1045 = arith.addf %1042, %1044 : vector<1x16xf32>
    %1046 = arith.addf %1045, %5 : vector<1x16xf32>
    %cst_123 = arith.constant 0.000000e+00 : f32
    %1047 = vector.broadcast %cst_123 : f32 to vector<1x16xf32>
    %1048 = arith.maximumf %1046, %1047 : vector<1x16xf32>
    %cst_124 = arith.constant 0.000000e+00 : f32
    %1049 = vector.broadcast %cst_124 : f32 to vector<1x16xf32>
    %1050 = vector.extract_strided_slice %163 {offsets = [0, 0], sizes = [1, 16], strides = [1, 1]} : vector<1x22xf32> to vector<1x16xf32>
    %c84_125 = arith.constant 84 : index
    %1051 = memref.load %arg4[%c84_125] : memref<112xf32, #tpu.memory_space<smem>>
    %1052 = vector.broadcast %1051 : f32 to vector<1x16xf32>
    %1053 = arith.mulf %1050, %1052 : vector<1x16xf32>
    %1054 = arith.addf %1049, %1053 : vector<1x16xf32>
    %1055 = vector.extract_strided_slice %163 {offsets = [0, 1], sizes = [1, 16], strides = [1, 1]} : vector<1x22xf32> to vector<1x16xf32>
    %c85_126 = arith.constant 85 : index
    %1056 = memref.load %arg4[%c85_126] : memref<112xf32, #tpu.memory_space<smem>>
    %1057 = vector.broadcast %1056 : f32 to vector<1x16xf32>
    %1058 = arith.mulf %1055, %1057 : vector<1x16xf32>
    %1059 = arith.addf %1054, %1058 : vector<1x16xf32>
    %1060 = vector.extract_strided_slice %163 {offsets = [0, 2], sizes = [1, 16], strides = [1, 1]} : vector<1x22xf32> to vector<1x16xf32>
    %c86_127 = arith.constant 86 : index
    %1061 = memref.load %arg4[%c86_127] : memref<112xf32, #tpu.memory_space<smem>>
    %1062 = vector.broadcast %1061 : f32 to vector<1x16xf32>
    %1063 = arith.mulf %1060, %1062 : vector<1x16xf32>
    %1064 = arith.addf %1059, %1063 : vector<1x16xf32>
    %1065 = vector.extract_strided_slice %163 {offsets = [0, 3], sizes = [1, 16], strides = [1, 1]} : vector<1x22xf32> to vector<1x16xf32>
    %c87_128 = arith.constant 87 : index
    %1066 = memref.load %arg4[%c87_128] : memref<112xf32, #tpu.memory_space<smem>>
    %1067 = vector.broadcast %1066 : f32 to vector<1x16xf32>
    %1068 = arith.mulf %1065, %1067 : vector<1x16xf32>
    %1069 = arith.addf %1064, %1068 : vector<1x16xf32>
    %1070 = vector.extract_strided_slice %163 {offsets = [0, 4], sizes = [1, 16], strides = [1, 1]} : vector<1x22xf32> to vector<1x16xf32>
    %c88_129 = arith.constant 88 : index
    %1071 = memref.load %arg4[%c88_129] : memref<112xf32, #tpu.memory_space<smem>>
    %1072 = vector.broadcast %1071 : f32 to vector<1x16xf32>
    %1073 = arith.mulf %1070, %1072 : vector<1x16xf32>
    %1074 = arith.addf %1069, %1073 : vector<1x16xf32>
    %1075 = vector.extract_strided_slice %163 {offsets = [0, 5], sizes = [1, 16], strides = [1, 1]} : vector<1x22xf32> to vector<1x16xf32>
    %c89_130 = arith.constant 89 : index
    %1076 = memref.load %arg4[%c89_130] : memref<112xf32, #tpu.memory_space<smem>>
    %1077 = vector.broadcast %1076 : f32 to vector<1x16xf32>
    %1078 = arith.mulf %1075, %1077 : vector<1x16xf32>
    %1079 = arith.addf %1074, %1078 : vector<1x16xf32>
    %1080 = vector.extract_strided_slice %163 {offsets = [0, 6], sizes = [1, 16], strides = [1, 1]} : vector<1x22xf32> to vector<1x16xf32>
    %c90_131 = arith.constant 90 : index
    %1081 = memref.load %arg4[%c90_131] : memref<112xf32, #tpu.memory_space<smem>>
    %1082 = vector.broadcast %1081 : f32 to vector<1x16xf32>
    %1083 = arith.mulf %1080, %1082 : vector<1x16xf32>
    %1084 = arith.addf %1079, %1083 : vector<1x16xf32>
    %1085 = vector.extract_strided_slice %311 {offsets = [0, 0], sizes = [1, 16], strides = [1, 1]} : vector<1x22xf32> to vector<1x16xf32>
    %c91_132 = arith.constant 91 : index
    %1086 = memref.load %arg4[%c91_132] : memref<112xf32, #tpu.memory_space<smem>>
    %1087 = vector.broadcast %1086 : f32 to vector<1x16xf32>
    %1088 = arith.mulf %1085, %1087 : vector<1x16xf32>
    %1089 = arith.addf %1084, %1088 : vector<1x16xf32>
    %1090 = vector.extract_strided_slice %311 {offsets = [0, 1], sizes = [1, 16], strides = [1, 1]} : vector<1x22xf32> to vector<1x16xf32>
    %c92_133 = arith.constant 92 : index
    %1091 = memref.load %arg4[%c92_133] : memref<112xf32, #tpu.memory_space<smem>>
    %1092 = vector.broadcast %1091 : f32 to vector<1x16xf32>
    %1093 = arith.mulf %1090, %1092 : vector<1x16xf32>
    %1094 = arith.addf %1089, %1093 : vector<1x16xf32>
    %1095 = vector.extract_strided_slice %311 {offsets = [0, 2], sizes = [1, 16], strides = [1, 1]} : vector<1x22xf32> to vector<1x16xf32>
    %c93_134 = arith.constant 93 : index
    %1096 = memref.load %arg4[%c93_134] : memref<112xf32, #tpu.memory_space<smem>>
    %1097 = vector.broadcast %1096 : f32 to vector<1x16xf32>
    %1098 = arith.mulf %1095, %1097 : vector<1x16xf32>
    %1099 = arith.addf %1094, %1098 : vector<1x16xf32>
    %1100 = vector.extract_strided_slice %311 {offsets = [0, 3], sizes = [1, 16], strides = [1, 1]} : vector<1x22xf32> to vector<1x16xf32>
    %c94_135 = arith.constant 94 : index
    %1101 = memref.load %arg4[%c94_135] : memref<112xf32, #tpu.memory_space<smem>>
    %1102 = vector.broadcast %1101 : f32 to vector<1x16xf32>
    %1103 = arith.mulf %1100, %1102 : vector<1x16xf32>
    %1104 = arith.addf %1099, %1103 : vector<1x16xf32>
    %1105 = vector.extract_strided_slice %311 {offsets = [0, 4], sizes = [1, 16], strides = [1, 1]} : vector<1x22xf32> to vector<1x16xf32>
    %c95_136 = arith.constant 95 : index
    %1106 = memref.load %arg4[%c95_136] : memref<112xf32, #tpu.memory_space<smem>>
    %1107 = vector.broadcast %1106 : f32 to vector<1x16xf32>
    %1108 = arith.mulf %1105, %1107 : vector<1x16xf32>
    %1109 = arith.addf %1104, %1108 : vector<1x16xf32>
    %1110 = vector.extract_strided_slice %311 {offsets = [0, 5], sizes = [1, 16], strides = [1, 1]} : vector<1x22xf32> to vector<1x16xf32>
    %c96_137 = arith.constant 96 : index
    %1111 = memref.load %arg4[%c96_137] : memref<112xf32, #tpu.memory_space<smem>>
    %1112 = vector.broadcast %1111 : f32 to vector<1x16xf32>
    %1113 = arith.mulf %1110, %1112 : vector<1x16xf32>
    %1114 = arith.addf %1109, %1113 : vector<1x16xf32>
    %1115 = vector.extract_strided_slice %311 {offsets = [0, 6], sizes = [1, 16], strides = [1, 1]} : vector<1x22xf32> to vector<1x16xf32>
    %c97_138 = arith.constant 97 : index
    %1116 = memref.load %arg4[%c97_138] : memref<112xf32, #tpu.memory_space<smem>>
    %1117 = vector.broadcast %1116 : f32 to vector<1x16xf32>
    %1118 = arith.mulf %1115, %1117 : vector<1x16xf32>
    %1119 = arith.addf %1114, %1118 : vector<1x16xf32>
    %1120 = vector.extract_strided_slice %459 {offsets = [0, 0], sizes = [1, 16], strides = [1, 1]} : vector<1x22xf32> to vector<1x16xf32>
    %c98_139 = arith.constant 98 : index
    %1121 = memref.load %arg4[%c98_139] : memref<112xf32, #tpu.memory_space<smem>>
    %1122 = vector.broadcast %1121 : f32 to vector<1x16xf32>
    %1123 = arith.mulf %1120, %1122 : vector<1x16xf32>
    %1124 = arith.addf %1119, %1123 : vector<1x16xf32>
    %1125 = vector.extract_strided_slice %459 {offsets = [0, 1], sizes = [1, 16], strides = [1, 1]} : vector<1x22xf32> to vector<1x16xf32>
    %c99_140 = arith.constant 99 : index
    %1126 = memref.load %arg4[%c99_140] : memref<112xf32, #tpu.memory_space<smem>>
    %1127 = vector.broadcast %1126 : f32 to vector<1x16xf32>
    %1128 = arith.mulf %1125, %1127 : vector<1x16xf32>
    %1129 = arith.addf %1124, %1128 : vector<1x16xf32>
    %1130 = vector.extract_strided_slice %459 {offsets = [0, 2], sizes = [1, 16], strides = [1, 1]} : vector<1x22xf32> to vector<1x16xf32>
    %c100_141 = arith.constant 100 : index
    %1131 = memref.load %arg4[%c100_141] : memref<112xf32, #tpu.memory_space<smem>>
    %1132 = vector.broadcast %1131 : f32 to vector<1x16xf32>
    %1133 = arith.mulf %1130, %1132 : vector<1x16xf32>
    %1134 = arith.addf %1129, %1133 : vector<1x16xf32>
    %1135 = vector.extract_strided_slice %459 {offsets = [0, 3], sizes = [1, 16], strides = [1, 1]} : vector<1x22xf32> to vector<1x16xf32>
    %c101_142 = arith.constant 101 : index
    %1136 = memref.load %arg4[%c101_142] : memref<112xf32, #tpu.memory_space<smem>>
    %1137 = vector.broadcast %1136 : f32 to vector<1x16xf32>
    %1138 = arith.mulf %1135, %1137 : vector<1x16xf32>
    %1139 = arith.addf %1134, %1138 : vector<1x16xf32>
    %1140 = vector.extract_strided_slice %459 {offsets = [0, 4], sizes = [1, 16], strides = [1, 1]} : vector<1x22xf32> to vector<1x16xf32>
    %c102_143 = arith.constant 102 : index
    %1141 = memref.load %arg4[%c102_143] : memref<112xf32, #tpu.memory_space<smem>>
    %1142 = vector.broadcast %1141 : f32 to vector<1x16xf32>
    %1143 = arith.mulf %1140, %1142 : vector<1x16xf32>
    %1144 = arith.addf %1139, %1143 : vector<1x16xf32>
    %1145 = vector.extract_strided_slice %459 {offsets = [0, 5], sizes = [1, 16], strides = [1, 1]} : vector<1x22xf32> to vector<1x16xf32>
    %c103_144 = arith.constant 103 : index
    %1146 = memref.load %arg4[%c103_144] : memref<112xf32, #tpu.memory_space<smem>>
    %1147 = vector.broadcast %1146 : f32 to vector<1x16xf32>
    %1148 = arith.mulf %1145, %1147 : vector<1x16xf32>
    %1149 = arith.addf %1144, %1148 : vector<1x16xf32>
    %1150 = vector.extract_strided_slice %459 {offsets = [0, 6], sizes = [1, 16], strides = [1, 1]} : vector<1x22xf32> to vector<1x16xf32>
    %c104_145 = arith.constant 104 : index
    %1151 = memref.load %arg4[%c104_145] : memref<112xf32, #tpu.memory_space<smem>>
    %1152 = vector.broadcast %1151 : f32 to vector<1x16xf32>
    %1153 = arith.mulf %1150, %1152 : vector<1x16xf32>
    %1154 = arith.addf %1149, %1153 : vector<1x16xf32>
    %1155 = vector.extract_strided_slice %607 {offsets = [0, 0], sizes = [1, 16], strides = [1, 1]} : vector<1x22xf32> to vector<1x16xf32>
    %c105_146 = arith.constant 105 : index
    %1156 = memref.load %arg4[%c105_146] : memref<112xf32, #tpu.memory_space<smem>>
    %1157 = vector.broadcast %1156 : f32 to vector<1x16xf32>
    %1158 = arith.mulf %1155, %1157 : vector<1x16xf32>
    %1159 = arith.addf %1154, %1158 : vector<1x16xf32>
    %1160 = vector.extract_strided_slice %607 {offsets = [0, 1], sizes = [1, 16], strides = [1, 1]} : vector<1x22xf32> to vector<1x16xf32>
    %c106_147 = arith.constant 106 : index
    %1161 = memref.load %arg4[%c106_147] : memref<112xf32, #tpu.memory_space<smem>>
    %1162 = vector.broadcast %1161 : f32 to vector<1x16xf32>
    %1163 = arith.mulf %1160, %1162 : vector<1x16xf32>
    %1164 = arith.addf %1159, %1163 : vector<1x16xf32>
    %1165 = vector.extract_strided_slice %607 {offsets = [0, 2], sizes = [1, 16], strides = [1, 1]} : vector<1x22xf32> to vector<1x16xf32>
    %c107_148 = arith.constant 107 : index
    %1166 = memref.load %arg4[%c107_148] : memref<112xf32, #tpu.memory_space<smem>>
    %1167 = vector.broadcast %1166 : f32 to vector<1x16xf32>
    %1168 = arith.mulf %1165, %1167 : vector<1x16xf32>
    %1169 = arith.addf %1164, %1168 : vector<1x16xf32>
    %1170 = vector.extract_strided_slice %607 {offsets = [0, 3], sizes = [1, 16], strides = [1, 1]} : vector<1x22xf32> to vector<1x16xf32>
    %c108_149 = arith.constant 108 : index
    %1171 = memref.load %arg4[%c108_149] : memref<112xf32, #tpu.memory_space<smem>>
    %1172 = vector.broadcast %1171 : f32 to vector<1x16xf32>
    %1173 = arith.mulf %1170, %1172 : vector<1x16xf32>
    %1174 = arith.addf %1169, %1173 : vector<1x16xf32>
    %1175 = vector.extract_strided_slice %607 {offsets = [0, 4], sizes = [1, 16], strides = [1, 1]} : vector<1x22xf32> to vector<1x16xf32>
    %c109_150 = arith.constant 109 : index
    %1176 = memref.load %arg4[%c109_150] : memref<112xf32, #tpu.memory_space<smem>>
    %1177 = vector.broadcast %1176 : f32 to vector<1x16xf32>
    %1178 = arith.mulf %1175, %1177 : vector<1x16xf32>
    %1179 = arith.addf %1174, %1178 : vector<1x16xf32>
    %1180 = vector.extract_strided_slice %607 {offsets = [0, 5], sizes = [1, 16], strides = [1, 1]} : vector<1x22xf32> to vector<1x16xf32>
    %c110_151 = arith.constant 110 : index
    %1181 = memref.load %arg4[%c110_151] : memref<112xf32, #tpu.memory_space<smem>>
    %1182 = vector.broadcast %1181 : f32 to vector<1x16xf32>
    %1183 = arith.mulf %1180, %1182 : vector<1x16xf32>
    %1184 = arith.addf %1179, %1183 : vector<1x16xf32>
    %1185 = vector.extract_strided_slice %607 {offsets = [0, 6], sizes = [1, 16], strides = [1, 1]} : vector<1x22xf32> to vector<1x16xf32>
    %c111_152 = arith.constant 111 : index
    %1186 = memref.load %arg4[%c111_152] : memref<112xf32, #tpu.memory_space<smem>>
    %1187 = vector.broadcast %1186 : f32 to vector<1x16xf32>
    %1188 = arith.mulf %1185, %1187 : vector<1x16xf32>
    %1189 = arith.addf %1184, %1188 : vector<1x16xf32>
    %c3_153 = arith.constant 3 : index
    %1190 = memref.load %arg5[%c3_153] : memref<4xf32, #tpu.memory_space<smem>>
    %1191 = vector.broadcast %1190 : f32 to vector<1x16xf32>
    %1192 = arith.addf %1189, %1191 : vector<1x16xf32>
    %1193 = arith.addf %1192, %7 : vector<1x16xf32>
    %cst_154 = arith.constant 0.000000e+00 : f32
    %1194 = vector.broadcast %cst_154 : f32 to vector<1x16xf32>
    %1195 = arith.maximumf %1193, %1194 : vector<1x16xf32>
    %1196 = vector.shape_cast %754 : vector<1x16xf32> to vector<1x1x16xf32>
    %1197 = vector.shape_cast %901 : vector<1x16xf32> to vector<1x1x16xf32>
    %1198 = vector.shape_cast %1048 : vector<1x16xf32> to vector<1x1x16xf32>
    %1199 = vector.shape_cast %1195 : vector<1x16xf32> to vector<1x1x16xf32>
    %1200 = tpu.concatenate %1196, %1197, %1198, %1199 in 1 : vector<1x1x16xf32>, vector<1x1x16xf32>, vector<1x1x16xf32>, vector<1x1x16xf32> -> vector<1x4x16xf32>
    %c0_155 = arith.constant 0 : index
    %c0_156 = arith.constant 0 : index
    %c0_157 = arith.constant 0 : index
    %1201 = vector.load %arg6[%c0_155, %c0_156, %c0_157] : memref<1x4x16xf32, #tpu.memory_space<vmem>>, vector<1x4x16xf32>
    tpu.vector_store %arg6[%c0_155, %c0_156, %c0_157], %1200 {strides = array<i32>} : memref<1x4x16xf32, #tpu.memory_space<vmem>>, vector<1x4x16xf32>,
    return
  }
  func.func @transform_0(%arg0: i32) -> (i32, i32, i32) {
    %c0_i32 = arith.constant 0 : i32
    %c0_i32_0 = arith.constant 0 : i32
    %c0_i32_1 = arith.constant 0 : i32
    return %arg0, %c0_i32, %c0_i32_0 : i32, i32, i32
  }
  func.func @transform_1(%arg0: i32) -> i32 {
    %c0_i32 = arith.constant 0 : i32
    %c0_i32_0 = arith.constant 0 : i32
    return %c0_i32 : i32
  }
  func.func @transform_2(%arg0: i32) -> i32 {
    %c0_i32 = arith.constant 0 : i32
    %c0_i32_0 = arith.constant 0 : i32
    return %c0_i32 : i32
  }
  func.func @transform_3(%arg0: i32) -> i32 {
    %c0_i32 = arith.constant 0 : i32
    %c0_i32_0 = arith.constant 0 : i32
    return %c0_i32 : i32
  }
  func.func @transform_4(%arg0: i32) -> i32 {
    %c0_i32 = arith.constant 0 : i32
    %c0_i32_0 = arith.constant 0 : i32
    return %c0_i32 : i32
  }
  func.func @transform_5(%arg0: i32) -> (i32, i32, i32) {
    %c0_i32 = arith.constant 0 : i32
    %c0_i32_0 = arith.constant 0 : i32
    %c0_i32_1 = arith.constant 0 : i32
    return %arg0, %c0_i32, %c0_i32_0 : i32, i32, i32
  }
}

</mosaic_0001>

<llo_original>
// kernel: tpu_custom_call.1
$region0: #{tpu_custom_call.1}
  #allocation0 [shape = 'u32[]', space=smem, size = 0x4, offset = 0x4, fixed_abs, tag = 'smem constant byte address 0x4 - core index']
  #allocation1 [shape = 'u32[72,128]{1,0:T(1,128)}', space=vmem, size = 0x9000, scoped, tag = 'internal scratch']
  %s0 = inlined_call_operand.hbm [shape: f32[2,4,16], index: 0, kind: input, shape index: {}]
  %s1 = inlined_call_operand.hbm [shape: f32[112], index: 1, kind: input, shape index: {}]
  %s2 = inlined_call_operand.vmem [shape: f32[4], index: 2, kind: input, shape index: {}]
  %s3 = inlined_call_operand.vmem [shape: f32[112], index: 3, kind: input, shape index: {}]
  %s4 = inlined_call_operand.vmem [shape: f32[4], index: 4, kind: input, shape index: {}]
  %s5 = inlined_call_operand.hbm [shape: f32[2,4,16], index: 5, kind: output, shape index: {}]
  %s6 = sld [smem:[#allocation0]]
  $region73: #{tpu_custom_call.1} parent=0
    _
  %s8 = ssub.s32 1, %s6
  %s9 = scalar_select 0, %s8, %s6
  $region1: #{tpu_custom_call.1} parent=0
    #allocation2 [shape = 'u8[4096]{0}', space=vmem, size = 0x1000, scoped, tag = 'input window, operand 0']
    #allocation3 [shape = 's32[2]{0}', space=sflag, size = 0x8, scoped, tag = 'scoped memory for tpu_custom_call.1']
    #allocation4 [shape = 's32[2]{0}', space=sflag, size = 0x8, scoped, tag = 'scoped memory for tpu_custom_call.1']
    #allocation5 [shape = 's32[2]{0}', space=sflag, size = 0x8, scoped, tag = 'scoped memory for tpu_custom_call.1']
    #allocation6 [shape = 's32[2]{0}', space=sflag, size = 0x8, scoped, tag = 'scoped memory for tpu_custom_call.1']
    #allocation7 [shape = 'u8[512]{0}', space=smem, size = 0x200, scoped, tag = 'input window, operand 1, single buffered']
    #allocation8 [shape = 'u8[512]{0}', space=smem, size = 0x200, scoped, tag = 'input window, operand 2, single buffered']
    #allocation9 [shape = 'u8[512]{0}', space=smem, size = 0x200, scoped, tag = 'input window, operand 3, single buffered']
    #allocation10 [shape = 's32[1]{0}', space=sflag, size = 0x4, scoped, tag = 'scoped memory for tpu_custom_call.1']
    #allocation11 [shape = 'u8[512]{0}', space=smem, size = 0x200, scoped, tag = 'input window, operand 4, single buffered']
    #allocation12 [shape = 'u8[4096]{0}', space=vmem, size = 0x1000, scoped, tag = 'output window, operand 0']
    %10 = vsyncpa [#allocation3], 0
    %s11 = scalar_lea.sflag [#allocation3], 1
    %12 = vsyncpa %s11, 0
    %13 = vsyncpa [#allocation5], 0
    %14 = vsyncpa [#allocation6], 0
    %15 = vsyncpa [#allocation10], 0
    %16 = vsyncpa [#allocation4], 0
    %s17 = scalar_lea.sflag [#allocation4], 1
    %18 = vsyncpa %s17, 0
    loop: start=0, step=1, limit=4
    $region2: #{tpu_custom_call.1} parent=1 // loop_pre_header
      _
    $region3: #{tpu_custom_call.1} parent=1 // loop_header
      %s20 = sphi 0, %s24
      %p21 = scmp.ge.s32.totalorder %s20, 4
      %s30 = sphi 0, %s32
      %s33 = sphi 0, %s30
      %s34 = sphi 0, %s33
      %s50 = sphi 0, %s34
      %s54 = sphi 0, %s54
      %s56 = sphi 0, %s54
      %s57 = sphi 0, %s56
      %s71 = sphi 0, %s57
      %s75 = sphi 0, %s75
      %s77 = sphi 0, %s75
      %s78 = sphi 0, %s77
      %s92 = sphi 0, %s78
      %s96 = sphi 0, %s96
      %s98 = sphi 0, %s96
      %s99 = sphi 0, %s98
      %s113 = sphi 0, %s99
      %s117 = sphi 0, %s117
      %s119 = sphi 0, %s117
      %s120 = sphi 0, %s119
      %s134 = sphi 0, %s120
      %s140 = sphi 0, %s142
      %s143 = sphi 0, %s140
      %s144 = sphi 0, %s143
      %s160 = sphi 0, %s144
    $region4: #{tpu_custom_call.1} parent=1 // loop_header_branch
      %23 = sbr.rel (%p21) target = $region8
    $region5: #{tpu_custom_call.1} parent=1 // loop_body
      %s25 = ssub.s32 %s20, 1
      %s26 = ssub.s32 %s20, 2
      %s27 = sadd.s32 %s20, 1
      %s28 = ssub.s32 %s20, %s27
      %p29 = scmp.eq.s32.totalorder %s28, 0
      %s31 = sadd.s32 %s30, 1
      %s32 = scalar_select %p29, %s30, %s31
      %p35 = pneg %p29
      %p36 = scmp.eq.s32.totalorder %s20, 1
      %p37 = por %p35, %p36
      %p38 = scmp.ne.s32.totalorder %s30, %s33
      %p39 = scmp.eq.s32.totalorder %s20, 0
      %p40 = por %p38, %p39
      %p41 = scmp.ne.s32.totalorder %s30, %s33
      %p42 = scmp.eq.s32.totalorder %s25, 1
      %p43 = por %p41, %p42
      %p44 = scmp.ne.s32.totalorder %s33, %s34
      %p45 = scmp.eq.s32.totalorder %s25, 0
      %p46 = por %p44, %p45
      %p47 = scmp.ne.s32.totalorder %s33, %s34
      %p48 = scmp.eq.s32.totalorder %s26, 1
      %p49 = por %p47, %p48
      %p51 = scmp.ne.s32.totalorder %s34, %s50
      %p52 = scmp.eq.s32.totalorder %s26, 0
      %p53 = por %p51, %p52
      %s55 = sadd.s32 %s54, 1
      %p58 = scmp.eq.s32.totalorder %s20, 1
      %p59 = scmp.ne.s32.totalorder %s54, %s56
      %p60 = scmp.eq.s32.totalorder %s20, 0
      %p61 = por %p59, %p60
      %p62 = scmp.ne.s32.totalorder %s54, %s56
      %p63 = scmp.eq.s32.totalorder %s25, 1
      %p64 = por %p62, %p63
      %p65 = scmp.ne.s32.totalorder %s56, %s57
      %p66 = scmp.eq.s32.totalorder %s25, 0
      %p67 = por %p65, %p66
      %p68 = scmp.ne.s32.totalorder %s56, %s57
      %p69 = scmp.eq.s32.totalorder %s26, 1
      %p70 = por %p68, %p69
      %p72 = scmp.ne.s32.totalorder %s57, %s71
      %p73 = scmp.eq.s32.totalorder %s26, 0
      %p74 = por %p72, %p73
      %s76 = sadd.s32 %s75, 1
      %p79 = scmp.eq.s32.totalorder %s20, 1
      %p80 = scmp.ne.s32.totalorder %s75, %s77
      %p81 = scmp.eq.s32.totalorder %s20, 0
      %p82 = por %p80, %p81
      %p83 = scmp.ne.s32.totalorder %s75, %s77
      %p84 = scmp.eq.s32.totalorder %s25, 1
      %p85 = por %p83, %p84
      %p86 = scmp.ne.s32.totalorder %s77, %s78
      %p87 = scmp.eq.s32.totalorder %s25, 0
      %p88 = por %p86, %p87
      %p89 = scmp.ne.s32.totalorder %s77, %s78
      %p90 = scmp.eq.s32.totalorder %s26, 1
      %p91 = por %p89, %p90
      %p93 = scmp.ne.s32.totalorder %s78, %s92
      %p94 = scmp.eq.s32.totalorder %s26, 0
      %p95 = por %p93, %p94
      %s97 = sadd.s32 %s96, 1
      %p100 = scmp.eq.s32.totalorder %s20, 1
      %p101 = scmp.ne.s32.totalorder %s96, %s98
      %p102 = scmp.eq.s32.totalorder %s20, 0
      %p103 = por %p101, %p102
      %p104 = scmp.ne.s32.totalorder %s96, %s98
      %p105 = scmp.eq.s32.totalorder %s25, 1
      %p106 = por %p104, %p105
      %p107 = scmp.ne.s32.totalorder %s98, %s99
      %p108 = scmp.eq.s32.totalorder %s25, 0
      %p109 = por %p107, %p108
      %p110 = scmp.ne.s32.totalorder %s98, %s99
      %p111 = scmp.eq.s32.totalorder %s26, 1
      %p112 = por %p110, %p111
      %p114 = scmp.ne.s32.totalorder %s99, %s113
      %p115 = scmp.eq.s32.totalorder %s26, 0
      %p116 = por %p114, %p115
      %s118 = sadd.s32 %s117, 1
      %p121 = scmp.eq.s32.totalorder %s20, 1
      %p122 = scmp.ne.s32.totalorder %s117, %s119
      %p123 = scmp.eq.s32.totalorder %s20, 0
      %p124 = por %p122, %p123
      %p125 = scmp.ne.s32.totalorder %s117, %s119
      %p126 = scmp.eq.s32.totalorder %s25, 1
      %p127 = por %p125, %p126
      %p128 = scmp.ne.s32.totalorder %s119, %s120
      %p129 = scmp.eq.s32.totalorder %s25, 0
      %p130 = por %p128, %p129
      %p131 = scmp.ne.s32.totalorder %s119, %s120
      %p132 = scmp.eq.s32.totalorder %s26, 1
      %p133 = por %p131, %p132
      %p135 = scmp.ne.s32.totalorder %s120, %s134
      %p136 = scmp.eq.s32.totalorder %s26, 0
      %p137 = por %p135, %p136
      %s138 = ssub.s32 %s20, %s27
      %p139 = scmp.eq.s32.totalorder %s138, 0
      %s141 = sadd.s32 %s140, 1
      %s142 = scalar_select %p139, %s140, %s141
      %p145 = pneg %p139
      %p146 = scmp.eq.s32.totalorder %s20, 1
      %p147 = por %p145, %p146
      %p148 = scmp.ne.s32.totalorder %s140, %s143
      %p149 = scmp.eq.s32.totalorder %s20, 0
      %p150 = por %p148, %p149
      %p151 = scmp.ne.s32.totalorder %s140, %s143
      %p152 = scmp.eq.s32.totalorder %s25, 1
      %p153 = por %p151, %p152
      %p154 = scmp.ne.s32.totalorder %s143, %s144
      %p155 = scmp.eq.s32.totalorder %s25, 0
      %p156 = por %p154, %p155
      %p157 = scmp.ne.s32.totalorder %s143, %s144
      %p158 = scmp.eq.s32.totalorder %s26, 1
      %p159 = por %p157, %p158
      %p161 = scmp.ne.s32.totalorder %s144, %s160
      %p162 = scmp.eq.s32.totalorder %s26, 0
      %p163 = por %p161, %p162
      %p164 = scmp.le.s32.totalorder 1, %s20
      %p165 = scmp.lt.s32.totalorder %s20, 3
      %p166 = pnand %p164, %p165
      %p167 = pneg %p166
      // Predicated region
      $region9: #{tpu_custom_call.1} parent=5 // pred_check
        _
      $region10: #{tpu_custom_call.1} parent=5 // pred_check_branch
        %169 = sbr.rel (%p166) target = $region12
      $region11: #{tpu_custom_call.1} parent=5 // pred_region
        %s170 = ssub.s32 %s20, 1
        // Predicated region
        $region13: #{tpu_custom_call.1} parent=11 // pred_check
          %p171 = pneg %p67
        $region14: #{tpu_custom_call.1} parent=11 // pred_check_branch
          %173 = sbr.rel (%p171) target = $region16
        $region15: #{tpu_custom_call.1} parent=11 // pred_region
          %175 = vsyncadd [#allocation5], 0
          %s177 = sshll.u32 %s1, 4
          %s178 = int_to_ptr.hbm [resolvable:$true] %s177
          %180 = dma.hbm_to_smem %s178, 16, [#allocation7], [#allocation5]
        $region16: #{tpu_custom_call.1} parent=11 // pred_fallthru
          _
        // Predicated region
        $region17: #{tpu_custom_call.1} parent=11 // pred_check
          %p181 = pneg %p88
        $region18: #{tpu_custom_call.1} parent=11 // pred_check_branch
          %183 = sbr.rel (%p181) target = $region20
        $region19: #{tpu_custom_call.1} parent=11 // pred_region
          %185 = vsyncadd [#allocation6], 0
          %s187 = sshll.u32 %s2, 4
          %s188 = int_to_ptr.vmem [resolvable:$true] %s187
          %190 = dma.vmem_to_smem %s188, 16, [#allocation8], [#allocation6]
        $region20: #{tpu_custom_call.1} parent=11 // pred_fallthru
          _
        // Predicated region
        $region21: #{tpu_custom_call.1} parent=11 // pred_check
          %p191 = pneg %p109
        $region22: #{tpu_custom_call.1} parent=11 // pred_check_branch
          %193 = sbr.rel (%p191) target = $region24
        $region23: #{tpu_custom_call.1} parent=11 // pred_region
          %195 = vsyncadd [#allocation10], 0
          %s197 = sshll.u32 %s3, 4
          %s198 = int_to_ptr.vmem [resolvable:$true] %s197
          %200 = dma.vmem_to_smem %s198, 16, [#allocation9], [#allocation10]
        $region24: #{tpu_custom_call.1} parent=11 // pred_fallthru
          _
        // Predicated region
        $region25: #{tpu_custom_call.1} parent=11 // pred_check
          %p201 = pneg %p130
        $region26: #{tpu_custom_call.1} parent=11 // pred_check_branch
          %203 = sbr.rel (%p201) target = $region28
        $region27: #{tpu_custom_call.1} parent=11 // pred_region
          %205 = vsyncadd [#allocation10], 0
          %s207 = sshll.u32 %s4, 4
          %s208 = int_to_ptr.vmem [resolvable:$true] %s207
          %210 = dma.vmem_to_smem %s208, 16, [#allocation11], [#allocation10]
        $region28: #{tpu_custom_call.1} parent=11 // pred_fallthru
          _
      $region12: #{tpu_custom_call.1} parent=5 // pred_fallthru
        _
      %p211 = scmp.lt.s32.totalorder %s20, 2
      // Predicated region
      $region29: #{tpu_custom_call.1} parent=5 // pred_check
        %p212 = pneg %p211
      $region30: #{tpu_custom_call.1} parent=5 // pred_check_branch
        %214 = sbr.rel (%p212) target = $region32
      $region31: #{tpu_custom_call.1} parent=5 // pred_region
        // Predicated region
        $region33: #{tpu_custom_call.1} parent=31 // pred_check
          %p215 = pneg %p40
        $region34: #{tpu_custom_call.1} parent=31 // pred_check_branch
          %217 = sbr.rel (%p215) target = $region36
        $region35: #{tpu_custom_call.1} parent=31 // pred_region
          %s218 = sand.u32 %s30, 1
          %s219 = scalar_lea.sflag [#allocation3], %s218
          %s220 = sand.u32 %s30, 1
          %s221 = smul.addr %s220, 4
          %s222 = scalar_lea.vmem [#allocation2], %s221
          %224 = vsyncadd %s219, 0
          %s225 = smul.addr %s20, 4
          %s226 = scalar_lea.hbm %s0, %s225
          %s228 = sshll.u32 %s226, 4
          %s229 = int_to_ptr.hbm [resolvable:$true] %s228
          %s230 = sshll.u32 %s222, 4
          %s231 = int_to_ptr.vmem [resolvable:$true] %s230
          %233 = dma.hbm_to_vmem [thread:$0]  %s229, 64, %s231, %s219
        $region36: #{tpu_custom_call.1} parent=31 // pred_fallthru
          _
      $region32: #{tpu_custom_call.1} parent=5 // pred_fallthru
        _
      %p234 = scmp.le.s32.totalorder 1, %s20
      %p235 = scmp.lt.s32.totalorder %s20, 3
      %p236 = pnand %p234, %p235
      %p237 = pneg %p236
      // Predicated region
      $region37: #{tpu_custom_call.1} parent=5 // pred_check
        _
      $region38: #{tpu_custom_call.1} parent=5 // pred_check_branch
        %239 = sbr.rel (%p236) target = $region40
      $region39: #{tpu_custom_call.1} parent=5 // pred_region
        %s240 = ssub.s32 %s20, 1
        %s241 = sand.u32 %s33, 1
        %s242 = scalar_lea.sflag [#allocation3], %s241
        %s243 = sand.u32 %s33, 1
        %s244 = smul.addr %s243, 4
        %s245 = scalar_lea.vmem [#allocation2], %s244
        // Predicated region
        $region41: #{tpu_custom_call.1} parent=39 // pred_check
          %p246 = pneg %p46
        $region42: #{tpu_custom_call.1} parent=39 // pred_check_branch
          %248 = sbr.rel (%p246) target = $region44
        $region43: #{tpu_custom_call.1} parent=39 // pred_region
          %250 = dma.done %s242, 64
        $region44: #{tpu_custom_call.1} parent=39 // pred_fallthru
          _
        // Predicated region
        $region45: #{tpu_custom_call.1} parent=39 // pred_check
          %p251 = pneg %p67
        $region46: #{tpu_custom_call.1} parent=39 // pred_check_branch
          %253 = sbr.rel (%p251) target = $region48
        $region47: #{tpu_custom_call.1} parent=39 // pred_region
          %255 = dma.done [#allocation5], 16
        $region48: #{tpu_custom_call.1} parent=39 // pred_fallthru
          _
        // Predicated region
        $region49: #{tpu_custom_call.1} parent=39 // pred_check
          %p256 = pneg %p88
        $region50: #{tpu_custom_call.1} parent=39 // pred_check_branch
          %258 = sbr.rel (%p256) target = $region52
        $region51: #{tpu_custom_call.1} parent=39 // pred_region
          %260 = dma.done [#allocation6], 16
        $region52: #{tpu_custom_call.1} parent=39 // pred_fallthru
          _
        // Predicated region
        $region53: #{tpu_custom_call.1} parent=39 // pred_check
          %p261 = pneg %p109
        $region54: #{tpu_custom_call.1} parent=39 // pred_check_branch
          %263 = sbr.rel (%p261) target = $region56
        $region55: #{tpu_custom_call.1} parent=39 // pred_region
          %265 = dma.done [#allocation10], 16
        $region56: #{tpu_custom_call.1} parent=39 // pred_fallthru
          _
        // Predicated region
        $region57: #{tpu_custom_call.1} parent=39 // pred_check
          %p266 = pneg %p130
        $region58: #{tpu_custom_call.1} parent=39 // pred_check_branch
          %268 = sbr.rel (%p266) target = $region60
        $region59: #{tpu_custom_call.1} parent=39 // pred_region
          %270 = dma.done [#allocation10], 16
        $region60: #{tpu_custom_call.1} parent=39 // pred_fallthru
          _
        %271 = sfence
        %s272 = sand.u32 %s33, 1
        %s273 = scalar_lea.sflag [#allocation3], %s272
        %s274 = sand.u32 %s33, 1
        %s275 = smul.addr %s274, 4
        %s276 = scalar_lea.vmem [#allocation2], %s275
        %p277 = pneg %p46
        %p278 = pneg %p43
        %p279 = pneg %p67
        %p280 = pneg %p64
        %p281 = pneg %p88
        %p282 = pneg %p85
        %p283 = pneg %p109
        %p284 = pneg %p106
        %p285 = pneg %p130
        %p286 = pneg %p127
        %p287 = pneg %p156
        %p288 = pneg %p153
        %s289 = sand.u32 %s143, 1
        %s290 = scalar_lea.sflag [#allocation4], %s289
        %s291 = sand.u32 %s143, 1
        %s292 = smul.addr %s291, 4
        %s293 = scalar_lea.vmem [#allocation12], %s292
        %v294 = vld [vmem:[%s245] sm:$0x1]
        %v295 = vld [vmem:[%s245 + $0x1] sm:$0x1]
        %v296 = vld [vmem:[%s245 + $0x2] sm:$0x1]
        %v297 = vld [vmem:[%s245 + $0x3] sm:$0x1]
        %299 = vrot.lane.b32.xlu0 %v294, 3
        %v300 = vpop.permute.xlu0 %299
        %vm302 = vcmask 23552
        %v303 = vsel %vm302, 0.0, %v300
        %vm304 = vcmask 154624
        %v305 = vsel %vm304, %v303, 0.0
        %307 = vrot.lane.b32.xlu0 %v295, 3
        %v308 = vpop.permute.xlu0 %307
        %v310 = vsel %vm302, 0.0, %v308
        %v311 = vsel %vm304, %v310, 0.0
        %313 = vrot.lane.b32.xlu0 %v296, 3
        %v314 = vpop.permute.xlu0 %313
        %v316 = vsel %vm302, 0.0, %v314
        %v317 = vsel %vm304, %v316, 0.0
        %319 = vrot.lane.b32.xlu0 %v297, 3
        %v320 = vpop.permute.xlu0 %319
        %v322 = vsel %vm302, 0.0, %v320
        %v323 = vsel %vm304, %v322, 0.0
        %s324 = sld [smem:[#allocation7]]
        %v325 = vstv %s324
        %v326 = vmul.f32 %v305, %v325
        %v327 = vadd.f32 %v326, 0.0
        %s328 = sld [smem:[#allocation7 + $0x1]]
        %v329 = vstv %s328
        %v330 = vmul.f32 %v305, %v329
        %332 = vrot.lane.b32.xlu0 %v330, 127
        %v333 = vpop.permute.xlu0 %332
        %v335 = vadd.f32 %v327, %v333
        %s336 = sld [smem:[#allocation7 + $0x2]]
        %v337 = vstv %s336
        %v338 = vmul.f32 %v305, %v337
        %340 = vrot.lane.b32.xlu0 %v338, 126
        %v341 = vpop.permute.xlu0 %340
        %v343 = vadd.f32 %v335, %v341
        %s344 = sld [smem:[#allocation7 + $0x3]]
        %v345 = vstv %s344
        %v346 = vmul.f32 %v305, %v345
        %348 = vrot.lane.b32.xlu0 %v346, 125
        %v349 = vpop.permute.xlu0 %348
        %v351 = vadd.f32 %v343, %v349
        %s352 = sld [smem:[#allocation7 + $0x4]]
        %v353 = vstv %s352
        %v354 = vmul.f32 %v305, %v353
        %356 = vrot.lane.b32.xlu0 %v354, 124
        %v357 = vpop.permute.xlu0 %356
        %v359 = vadd.f32 %v351, %v357
        %s360 = sld [smem:[#allocation7 + $0x5]]
        %v361 = vstv %s360
        %v362 = vmul.f32 %v305, %v361
        %364 = vrot.lane.b32.xlu0 %v362, 123
        %v365 = vpop.permute.xlu0 %364
        %v367 = vadd.f32 %v359, %v365
        %s368 = sld [smem:[#allocation7 + $0x6]]
        %v369 = vstv %s368
        %v370 = vmul.f32 %v305, %v369
        %372 = vrot.lane.b32.xlu0 %v370, 122
        %v373 = vpop.permute.xlu0 %372
        %v375 = vadd.f32 %v367, %v373
        %s376 = sld [smem:[#allocation7 + $0x7]]
        %v377 = vstv %s376
        %v378 = vmul.f32 %v311, %v377
        %v379 = vadd.f32 %v375, %v378
        %s380 = sld [smem:[#allocation7 + $0x8]]
        %v381 = vstv %s380
        %v382 = vmul.f32 %v311, %v381
        %384 = vrot.lane.b32.xlu0 %v382, 127
        %v385 = vpop.permute.xlu0 %384
        %v387 = vadd.f32 %v379, %v385
        %s388 = sld [smem:[#allocation7 + $0x9]]
        %v389 = vstv %s388
        %v390 = vmul.f32 %v311, %v389
        %392 = vrot.lane.b32.xlu0 %v390, 126
        %v393 = vpop.permute.xlu0 %392
        %v395 = vadd.f32 %v387, %v393
        %s396 = sld [smem:[#allocation7 + $0xa]]
        %v397 = vstv %s396
        %v398 = vmul.f32 %v311, %v397
        %400 = vrot.lane.b32.xlu0 %v398, 125
        %v401 = vpop.permute.xlu0 %400
        %v403 = vadd.f32 %v395, %v401
        %s404 = sld [smem:[#allocation7 + $0xb]]
        %v405 = vstv %s404
        %v406 = vmul.f32 %v311, %v405
        %408 = vrot.lane.b32.xlu0 %v406, 124
        %v409 = vpop.permute.xlu0 %408
        %v411 = vadd.f32 %v403, %v409
        %s412 = sld [smem:[#allocation7 + $0xc]]
        %v413 = vstv %s412
        %v414 = vmul.f32 %v311, %v413
        %416 = vrot.lane.b32.xlu0 %v414, 123
        %v417 = vpop.permute.xlu0 %416
        %v419 = vadd.f32 %v411, %v417
        %s420 = sld [smem:[#allocation7 + $0xd]]
        %v421 = vstv %s420
        %v422 = vmul.f32 %v311, %v421
        %424 = vrot.lane.b32.xlu0 %v422, 122
        %v425 = vpop.permute.xlu0 %424
        %v427 = vadd.f32 %v419, %v425
        %s428 = sld [smem:[#allocation7 + $0xe]]
        %v429 = vstv %s428
        %v430 = vmul.f32 %v317, %v429
        %v431 = vadd.f32 %v427, %v430
        %s432 = sld [smem:[#allocation7 + $0xf]]
        %v433 = vstv %s432
        %v434 = vmul.f32 %v317, %v433
        %436 = vrot.lane.b32.xlu0 %v434, 127
        %v437 = vpop.permute.xlu0 %436
        %v439 = vadd.f32 %v431, %v437
        %s440 = sld [smem:[#allocation7 + $0x10]]
        %v441 = vstv %s440
        %v442 = vmul.f32 %v317, %v441
        %444 = vrot.lane.b32.xlu0 %v442, 126
        %v445 = vpop.permute.xlu0 %444
        %v447 = vadd.f32 %v439, %v445
        %s448 = sld [smem:[#allocation7 + $0x11]]
        %v449 = vstv %s448
        %v450 = vmul.f32 %v317, %v449
        %452 = vrot.lane.b32.xlu0 %v450, 125
        %v453 = vpop.permute.xlu0 %452
        %v455 = vadd.f32 %v447, %v453
        %s456 = sld [smem:[#allocation7 + $0x12]]
        %v457 = vstv %s456
        %v458 = vmul.f32 %v317, %v457
        %460 = vrot.lane.b32.xlu0 %v458, 124
        %v461 = vpop.permute.xlu0 %460
        %v463 = vadd.f32 %v455, %v461
        %s464 = sld [smem:[#allocation7 + $0x13]]
        %v465 = vstv %s464
        %v466 = vmul.f32 %v317, %v465
        %468 = vrot.lane.b32.xlu0 %v466, 123
        %v469 = vpop.permute.xlu0 %468
        %v471 = vadd.f32 %v463, %v469
        %s472 = sld [smem:[#allocation7 + $0x14]]
        %v473 = vstv %s472
        %v474 = vmul.f32 %v317, %v473
        %476 = vrot.lane.b32.xlu0 %v474, 122
        %v477 = vpop.permute.xlu0 %476
        %v479 = vadd.f32 %v471, %v477
        %s480 = sld [smem:[#allocation7 + $0x15]]
        %v481 = vstv %s480
        %v482 = vmul.f32 %v323, %v481
        %v483 = vadd.f32 %v479, %v482
        %s484 = sld [smem:[#allocation7 + $0x16]]
        %v485 = vstv %s484
        %v486 = vmul.f32 %v323, %v485
        %488 = vrot.lane.b32.xlu0 %v486, 127
        %v489 = vpop.permute.xlu0 %488
        %v491 = vadd.f32 %v483, %v489
        %s492 = sld [smem:[#allocation7 + $0x17]]
        %v493 = vstv %s492
        %v494 = vmul.f32 %v323, %v493
        %496 = vrot.lane.b32.xlu0 %v494, 126
        %v497 = vpop.permute.xlu0 %496
        %v499 = vadd.f32 %v491, %v497
        %s500 = sld [smem:[#allocation7 + $0x18]]
        %v501 = vstv %s500
        %v502 = vmul.f32 %v323, %v501
        %504 = vrot.lane.b32.xlu0 %v502, 125
        %v505 = vpop.permute.xlu0 %504
        %v507 = vadd.f32 %v499, %v505
        %s508 = sld [smem:[#allocation7 + $0x19]]
        %v509 = vstv %s508
        %v510 = vmul.f32 %v323, %v509
        %512 = vrot.lane.b32.xlu0 %v510, 124
        %v513 = vpop.permute.xlu0 %512
        %v515 = vadd.f32 %v507, %v513
        %s516 = sld [smem:[#allocation7 + $0x1a]]
        %v517 = vstv %s516
        %v518 = vmul.f32 %v323, %v517
        %520 = vrot.lane.b32.xlu0 %v518, 123
        %v521 = vpop.permute.xlu0 %520
        %v523 = vadd.f32 %v515, %v521
        %s524 = sld [smem:[#allocation7 + $0x1b]]
        %v525 = vstv %s524
        %v526 = vmul.f32 %v323, %v525
        %528 = vrot.lane.b32.xlu0 %v526, 122
        %v529 = vpop.permute.xlu0 %528
        %v531 = vadd.f32 %v523, %v529
        %s532 = sld [smem:[#allocation8]]
        %v533 = vstv %s532
        %v534 = vadd.f32 %v531, %v533
        %v535 = vmax.f32 %v534, 0.0
        %537 = vrot.lane.b32.xlu0 %v535, 3
        %v538 = vpop.permute.xlu0 %537
        %v540 = vsel %vm302, 0.0, %v538
        %v541 = vsel %vm304, %v540, 0.0
        %s542 = sld [smem:[#allocation7 + $0x1c]]
        %v543 = vstv %s542
        %v544 = vmul.f32 %v305, %v543
        %v545 = vadd.f32 %v544, 0.0
        %s546 = sld [smem:[#allocation7 + $0x1d]]
        %v547 = vstv %s546
        %v548 = vmul.f32 %v305, %v547
        %550 = vrot.lane.b32.xlu0 %v548, 127
        %v551 = vpop.permute.xlu0 %550
        %v553 = vadd.f32 %v545, %v551
        %s554 = sld [smem:[#allocation7 + $0x1e]]
        %v555 = vstv %s554
        %v556 = vmul.f32 %v305, %v555
        %558 = vrot.lane.b32.xlu0 %v556, 126
        %v559 = vpop.permute.xlu0 %558
        %v561 = vadd.f32 %v553, %v559
        %s562 = sld [smem:[#allocation7 + $0x1f]]
        %v563 = vstv %s562
        %v564 = vmul.f32 %v305, %v563
        %566 = vrot.lane.b32.xlu0 %v564, 125
        %v567 = vpop.permute.xlu0 %566
        %v569 = vadd.f32 %v561, %v567
        %s570 = sld [smem:[#allocation7 + $0x20]]
        %v571 = vstv %s570
        %v572 = vmul.f32 %v305, %v571
        %574 = vrot.lane.b32.xlu0 %v572, 124
        %v575 = vpop.permute.xlu0 %574
        %v577 = vadd.f32 %v569, %v575
        %s578 = sld [smem:[#allocation7 + $0x21]]
        %v579 = vstv %s578
        %v580 = vmul.f32 %v305, %v579
        %582 = vrot.lane.b32.xlu0 %v580, 123
        %v583 = vpop.permute.xlu0 %582
        %v585 = vadd.f32 %v577, %v583
        %s586 = sld [smem:[#allocation7 + $0x22]]
        %v587 = vstv %s586
        %v588 = vmul.f32 %v305, %v587
        %590 = vrot.lane.b32.xlu0 %v588, 122
        %v591 = vpop.permute.xlu0 %590
        %v593 = vadd.f32 %v585, %v591
        %s594 = sld [smem:[#allocation7 + $0x23]]
        %v595 = vstv %s594
        %v596 = vmul.f32 %v311, %v595
        %v597 = vadd.f32 %v593, %v596
        %s598 = sld [smem:[#allocation7 + $0x24]]
        %v599 = vstv %s598
        %v600 = vmul.f32 %v311, %v599
        %602 = vrot.lane.b32.xlu0 %v600, 127
        %v603 = vpop.permute.xlu0 %602
        %v605 = vadd.f32 %v597, %v603
        %s606 = sld [smem:[#allocation7 + $0x25]]
        %v607 = vstv %s606
        %v608 = vmul.f32 %v311, %v607
        %610 = vrot.lane.b32.xlu0 %v608, 126
        %v611 = vpop.permute.xlu0 %610
        %v613 = vadd.f32 %v605, %v611
        %s614 = sld [smem:[#allocation7 + $0x26]]
        %v615 = vstv %s614
        %v616 = vmul.f32 %v311, %v615
        %618 = vrot.lane.b32.xlu0 %v616, 125
        %v619 = vpop.permute.xlu0 %618
        %v621 = vadd.f32 %v613, %v619
        %s622 = sld [smem:[#allocation7 + $0x27]]
        %v623 = vstv %s622
        %v624 = vmul.f32 %v311, %v623
        %626 = vrot.lane.b32.xlu0 %v624, 124
        %v627 = vpop.permute.xlu0 %626
        %v629 = vadd.f32 %v621, %v627
        %s630 = sld [smem:[#allocation7 + $0x28]]
        %v631 = vstv %s630
        %v632 = vmul.f32 %v311, %v631
        %634 = vrot.lane.b32.xlu0 %v632, 123
        %v635 = vpop.permute.xlu0 %634
        %v637 = vadd.f32 %v629, %v635
        %s638 = sld [smem:[#allocation7 + $0x29]]
        %v639 = vstv %s638
        %v640 = vmul.f32 %v311, %v639
        %642 = vrot.lane.b32.xlu0 %v640, 122
        %v643 = vpop.permute.xlu0 %642
        %v645 = vadd.f32 %v637, %v643
        %s646 = sld [smem:[#allocation7 + $0x2a]]
        %v647 = vstv %s646
        %v648 = vmul.f32 %v317, %v647
        %v649 = vadd.f32 %v645, %v648
        %s650 = sld [smem:[#allocation7 + $0x2b]]
        %v651 = vstv %s650
        %v652 = vmul.f32 %v317, %v651
        %654 = vrot.lane.b32.xlu0 %v652, 127
        %v655 = vpop.permute.xlu0 %654
        %v657 = vadd.f32 %v649, %v655
        %s658 = sld [smem:[#allocation7 + $0x2c]]
        %v659 = vstv %s658
        %v660 = vmul.f32 %v317, %v659
        %662 = vrot.lane.b32.xlu0 %v660, 126
        %v663 = vpop.permute.xlu0 %662
        %v665 = vadd.f32 %v657, %v663
        %s666 = sld [smem:[#allocation7 + $0x2d]]
        %v667 = vstv %s666
        %v668 = vmul.f32 %v317, %v667
        %670 = vrot.lane.b32.xlu0 %v668, 125
        %v671 = vpop.permute.xlu0 %670
        %v673 = vadd.f32 %v665, %v671
        %s674 = sld [smem:[#allocation7 + $0x2e]]
        %v675 = vstv %s674
        %v676 = vmul.f32 %v317, %v675
        %678 = vrot.lane.b32.xlu0 %v676, 124
        %v679 = vpop.permute.xlu0 %678
        %v681 = vadd.f32 %v673, %v679
        %s682 = sld [smem:[#allocation7 + $0x2f]]
        %v683 = vstv %s682
        %v684 = vmul.f32 %v317, %v683
        %686 = vrot.lane.b32.xlu0 %v684, 123
        %v687 = vpop.permute.xlu0 %686
        %v689 = vadd.f32 %v681, %v687
        %s690 = sld [smem:[#allocation7 + $0x30]]
        %v691 = vstv %s690
        %v692 = vmul.f32 %v317, %v691
        %694 = vrot.lane.b32.xlu0 %v692, 122
        %v695 = vpop.permute.xlu0 %694
        %v697 = vadd.f32 %v689, %v695
        %s698 = sld [smem:[#allocation7 + $0x31]]
        %v699 = vstv %s698
        %v700 = vmul.f32 %v323, %v699
        %v701 = vadd.f32 %v697, %v700
        %s702 = sld [smem:[#allocation7 + $0x32]]
        %v703 = vstv %s702
        %v704 = vmul.f32 %v323, %v703
        %706 = vrot.lane.b32.xlu0 %v704, 127
        %v707 = vpop.permute.xlu0 %706
        %v709 = vadd.f32 %v701, %v707
        %s710 = sld [smem:[#allocation7 + $0x33]]
        %v711 = vstv %s710
        %v712 = vmul.f32 %v323, %v711
        %714 = vrot.lane.b32.xlu0 %v712, 126
        %v715 = vpop.permute.xlu0 %714
        %v717 = vadd.f32 %v709, %v715
        %s718 = sld [smem:[#allocation7 + $0x34]]
        %v719 = vstv %s718
        %v720 = vmul.f32 %v323, %v719
        %722 = vrot.lane.b32.xlu0 %v720, 125
        %v723 = vpop.permute.xlu0 %722
        %v725 = vadd.f32 %v717, %v723
        %s726 = sld [smem:[#allocation7 + $0x35]]
        %v727 = vstv %s726
        %v728 = vmul.f32 %v323, %v727
        %730 = vrot.lane.b32.xlu0 %v728, 124
        %v731 = vpop.permute.xlu0 %730
        %v733 = vadd.f32 %v725, %v731
        %s734 = sld [smem:[#allocation7 + $0x36]]
        %v735 = vstv %s734
        %v736 = vmul.f32 %v323, %v735
        %738 = vrot.lane.b32.xlu0 %v736, 123
        %v739 = vpop.permute.xlu0 %738
        %v741 = vadd.f32 %v733, %v739
        %s742 = sld [smem:[#allocation7 + $0x37]]
        %v743 = vstv %s742
        %v744 = vmul.f32 %v323, %v743
        %746 = vrot.lane.b32.xlu0 %v744, 122
        %v747 = vpop.permute.xlu0 %746
        %v749 = vadd.f32 %v741, %v747
        %s750 = sld [smem:[#allocation8 + $0x1]]
        %v751 = vstv %s750
        %v752 = vadd.f32 %v749, %v751
        %v753 = vmax.f32 %v752, 0.0
        %755 = vrot.lane.b32.xlu0 %v753, 3
        %v756 = vpop.permute.xlu0 %755
        %v758 = vsel %vm302, 0.0, %v756
        %v759 = vsel %vm304, %v758, 0.0
        %s760 = sld [smem:[#allocation7 + $0x38]]
        %v761 = vstv %s760
        %v762 = vmul.f32 %v305, %v761
        %v763 = vadd.f32 %v762, 0.0
        %s764 = sld [smem:[#allocation7 + $0x39]]
        %v765 = vstv %s764
        %v766 = vmul.f32 %v305, %v765
        %768 = vrot.lane.b32.xlu0 %v766, 127
        %v769 = vpop.permute.xlu0 %768
        %v771 = vadd.f32 %v763, %v769
        %s772 = sld [smem:[#allocation7 + $0x3a]]
        %v773 = vstv %s772
        %v774 = vmul.f32 %v305, %v773
        %776 = vrot.lane.b32.xlu0 %v774, 126
        %v777 = vpop.permute.xlu0 %776
        %v779 = vadd.f32 %v771, %v777
        %s780 = sld [smem:[#allocation7 + $0x3b]]
        %v781 = vstv %s780
        %v782 = vmul.f32 %v305, %v781
        %784 = vrot.lane.b32.xlu0 %v782, 125
        %v785 = vpop.permute.xlu0 %784
        %v787 = vadd.f32 %v779, %v785
        %s788 = sld [smem:[#allocation7 + $0x3c]]
        %v789 = vstv %s788
        %v790 = vmul.f32 %v305, %v789
        %792 = vrot.lane.b32.xlu0 %v790, 124
        %v793 = vpop.permute.xlu0 %792
        %v795 = vadd.f32 %v787, %v793
        %s796 = sld [smem:[#allocation7 + $0x3d]]
        %v797 = vstv %s796
        %v798 = vmul.f32 %v305, %v797
        %800 = vrot.lane.b32.xlu0 %v798, 123
        %v801 = vpop.permute.xlu0 %800
        %v803 = vadd.f32 %v795, %v801
        %s804 = sld [smem:[#allocation7 + $0x3e]]
        %v805 = vstv %s804
        %v806 = vmul.f32 %v305, %v805
        %808 = vrot.lane.b32.xlu0 %v806, 122
        %v809 = vpop.permute.xlu0 %808
        %v811 = vadd.f32 %v803, %v809
        %s812 = sld [smem:[#allocation7 + $0x3f]]
        %v813 = vstv %s812
        %v814 = vmul.f32 %v311, %v813
        %v815 = vadd.f32 %v811, %v814
        %s816 = sld [smem:[#allocation7 + $0x40]]
        %v817 = vstv %s816
        %v818 = vmul.f32 %v311, %v817
        %820 = vrot.lane.b32.xlu0 %v818, 127
        %v821 = vpop.permute.xlu0 %820
        %v823 = vadd.f32 %v815, %v821
        %s824 = sld [smem:[#allocation7 + $0x41]]
        %v825 = vstv %s824
        %v826 = vmul.f32 %v311, %v825
        %828 = vrot.lane.b32.xlu0 %v826, 126
        %v829 = vpop.permute.xlu0 %828
        %v831 = vadd.f32 %v823, %v829
        %s832 = sld [smem:[#allocation7 + $0x42]]
        %v833 = vstv %s832
        %v834 = vmul.f32 %v311, %v833
        %836 = vrot.lane.b32.xlu0 %v834, 125
        %v837 = vpop.permute.xlu0 %836
        %v839 = vadd.f32 %v831, %v837
        %s840 = sld [smem:[#allocation7 + $0x43]]
        %v841 = vstv %s840
        %v842 = vmul.f32 %v311, %v841
        %844 = vrot.lane.b32.xlu0 %v842, 124
        %v845 = vpop.permute.xlu0 %844
        %v847 = vadd.f32 %v839, %v845
        %s848 = sld [smem:[#allocation7 + $0x44]]
        %v849 = vstv %s848
        %v850 = vmul.f32 %v311, %v849
        %852 = vrot.lane.b32.xlu0 %v850, 123
        %v853 = vpop.permute.xlu0 %852
        %v855 = vadd.f32 %v847, %v853
        %s856 = sld [smem:[#allocation7 + $0x45]]
        %v857 = vstv %s856
        %v858 = vmul.f32 %v311, %v857
        %860 = vrot.lane.b32.xlu0 %v858, 122
        %v861 = vpop.permute.xlu0 %860
        %v863 = vadd.f32 %v855, %v861
        %s864 = sld [smem:[#allocation7 + $0x46]]
        %v865 = vstv %s864
        %v866 = vmul.f32 %v317, %v865
        %v867 = vadd.f32 %v863, %v866
        %s868 = sld [smem:[#allocation7 + $0x47]]
        %v869 = vstv %s868
        %v870 = vmul.f32 %v317, %v869
        %872 = vrot.lane.b32.xlu0 %v870, 127
        %v873 = vpop.permute.xlu0 %872
        %v875 = vadd.f32 %v867, %v873
        %s876 = sld [smem:[#allocation7 + $0x48]]
        %v877 = vstv %s876
        %v878 = vmul.f32 %v317, %v877
        %880 = vrot.lane.b32.xlu0 %v878, 126
        %v881 = vpop.permute.xlu0 %880
        %v883 = vadd.f32 %v875, %v881
        %s884 = sld [smem:[#allocation7 + $0x49]]
        %v885 = vstv %s884
        %v886 = vmul.f32 %v317, %v885
        %888 = vrot.lane.b32.xlu0 %v886, 125
        %v889 = vpop.permute.xlu0 %888
        %v891 = vadd.f32 %v883, %v889
        %s892 = sld [smem:[#allocation7 + $0x4a]]
        %v893 = vstv %s892
        %v894 = vmul.f32 %v317, %v893
        %896 = vrot.lane.b32.xlu0 %v894, 124
        %v897 = vpop.permute.xlu0 %896
        %v899 = vadd.f32 %v891, %v897
        %s900 = sld [smem:[#allocation7 + $0x4b]]
        %v901 = vstv %s900
        %v902 = vmul.f32 %v317, %v901
        %904 = vrot.lane.b32.xlu0 %v902, 123
        %v905 = vpop.permute.xlu0 %904
        %v907 = vadd.f32 %v899, %v905
        %s908 = sld [smem:[#allocation7 + $0x4c]]
        %v909 = vstv %s908
        %v910 = vmul.f32 %v317, %v909
        %912 = vrot.lane.b32.xlu0 %v910, 122
        %v913 = vpop.permute.xlu0 %912
        %v915 = vadd.f32 %v907, %v913
        %s916 = sld [smem:[#allocation7 + $0x4d]]
        %v917 = vstv %s916
        %v918 = vmul.f32 %v323, %v917
        %v919 = vadd.f32 %v915, %v918
        %s920 = sld [smem:[#allocation7 + $0x4e]]
        %v921 = vstv %s920
        %v922 = vmul.f32 %v323, %v921
        %924 = vrot.lane.b32.xlu0 %v922, 127
        %v925 = vpop.permute.xlu0 %924
        %v927 = vadd.f32 %v919, %v925
        %s928 = sld [smem:[#allocation7 + $0x4f]]
        %v929 = vstv %s928
        %v930 = vmul.f32 %v323, %v929
        %932 = vrot.lane.b32.xlu0 %v930, 126
        %v933 = vpop.permute.xlu0 %932
        %v935 = vadd.f32 %v927, %v933
        %s936 = sld [smem:[#allocation7 + $0x50]]
        %v937 = vstv %s936
        %v938 = vmul.f32 %v323, %v937
        %940 = vrot.lane.b32.xlu0 %v938, 125
        %v941 = vpop.permute.xlu0 %940
        %v943 = vadd.f32 %v935, %v941
        %s944 = sld [smem:[#allocation7 + $0x51]]
        %v945 = vstv %s944
        %v946 = vmul.f32 %v323, %v945
        %948 = vrot.lane.b32.xlu0 %v946, 124
        %v949 = vpop.permute.xlu0 %948
        %v951 = vadd.f32 %v943, %v949
        %s952 = sld [smem:[#allocation7 + $0x52]]
        %v953 = vstv %s952
        %v954 = vmul.f32 %v323, %v953
        %956 = vrot.lane.b32.xlu0 %v954, 123
        %v957 = vpop.permute.xlu0 %956
        %v959 = vadd.f32 %v951, %v957
        %s960 = sld [smem:[#allocation7 + $0x53]]
        %v961 = vstv %s960
        %v962 = vmul.f32 %v323, %v961
        %964 = vrot.lane.b32.xlu0 %v962, 122
        %v965 = vpop.permute.xlu0 %964
        %v967 = vadd.f32 %v959, %v965
        %s968 = sld [smem:[#allocation8 + $0x2]]
        %v969 = vstv %s968
        %v970 = vadd.f32 %v967, %v969
        %v971 = vmax.f32 %v970, 0.0
        %973 = vrot.lane.b32.xlu0 %v971, 3
        %v974 = vpop.permute.xlu0 %973
        %v976 = vsel %vm302, 0.0, %v974
        %v977 = vsel %vm304, %v976, 0.0
        %s978 = sld [smem:[#allocation7 + $0x54]]
        %v979 = vstv %s978
        %v980 = vmul.f32 %v305, %v979
        %v981 = vadd.f32 %v980, 0.0
        %s982 = sld [smem:[#allocation7 + $0x55]]
        %v983 = vstv %s982
        %v984 = vmul.f32 %v305, %v983
        %986 = vrot.lane.b32.xlu0 %v984, 127
        %v987 = vpop.permute.xlu0 %986
        %v989 = vadd.f32 %v981, %v987
        %s990 = sld [smem:[#allocation7 + $0x56]]
        %v991 = vstv %s990
        %v992 = vmul.f32 %v305, %v991
        %994 = vrot.lane.b32.xlu0 %v992, 126
        %v995 = vpop.permute.xlu0 %994
        %v997 = vadd.f32 %v989, %v995
        %s998 = sld [smem:[#allocation7 + $0x57]]
        %v999 = vstv %s998
        %v1000 = vmul.f32 %v305, %v999
        %1002 = vrot.lane.b32.xlu0 %v1000, 125
        %v1003 = vpop.permute.xlu0 %1002
        %v1005 = vadd.f32 %v997, %v1003
        %s1006 = sld [smem:[#allocation7 + $0x58]]
        %v1007 = vstv %s1006
        %v1008 = vmul.f32 %v305, %v1007
        %1010 = vrot.lane.b32.xlu0 %v1008, 124
        %v1011 = vpop.permute.xlu0 %1010
        %v1013 = vadd.f32 %v1005, %v1011
        %s1014 = sld [smem:[#allocation7 + $0x59]]
        %v1015 = vstv %s1014
        %v1016 = vmul.f32 %v305, %v1015
        %1018 = vrot.lane.b32.xlu0 %v1016, 123
        %v1019 = vpop.permute.xlu0 %1018
        %v1021 = vadd.f32 %v1013, %v1019
        %s1022 = sld [smem:[#allocation7 + $0x5a]]
        %v1023 = vstv %s1022
        %v1024 = vmul.f32 %v305, %v1023
        %1026 = vrot.lane.b32.xlu0 %v1024, 122
        %v1027 = vpop.permute.xlu0 %1026
        %v1029 = vadd.f32 %v1021, %v1027
        %s1030 = sld [smem:[#allocation7 + $0x5b]]
        %v1031 = vstv %s1030
        %v1032 = vmul.f32 %v311, %v1031
        %v1033 = vadd.f32 %v1029, %v1032
        %s1034 = sld [smem:[#allocation7 + $0x5c]]
        %v1035 = vstv %s1034
        %v1036 = vmul.f32 %v311, %v1035
        %1038 = vrot.lane.b32.xlu0 %v1036, 127
        %v1039 = vpop.permute.xlu0 %1038
        %v1041 = vadd.f32 %v1033, %v1039
        %s1042 = sld [smem:[#allocation7 + $0x5d]]
        %v1043 = vstv %s1042
        %v1044 = vmul.f32 %v311, %v1043
        %1046 = vrot.lane.b32.xlu0 %v1044, 126
        %v1047 = vpop.permute.xlu0 %1046
        %v1049 = vadd.f32 %v1041, %v1047
        %s1050 = sld [smem:[#allocation7 + $0x5e]]
        %v1051 = vstv %s1050
        %v1052 = vmul.f32 %v311, %v1051
        %1054 = vrot.lane.b32.xlu0 %v1052, 125
        %v1055 = vpop.permute.xlu0 %1054
        %v1057 = vadd.f32 %v1049, %v1055
        %s1058 = sld [smem:[#allocation7 + $0x5f]]
        %v1059 = vstv %s1058
        %v1060 = vmul.f32 %v311, %v1059
        %1062 = vrot.lane.b32.xlu0 %v1060, 124
        %v1063 = vpop.permute.xlu0 %1062
        %v1065 = vadd.f32 %v1057, %v1063
        %s1066 = sld [smem:[#allocation7 + $0x60]]
        %v1067 = vstv %s1066
        %v1068 = vmul.f32 %v311, %v1067
        %1070 = vrot.lane.b32.xlu0 %v1068, 123
        %v1071 = vpop.permute.xlu0 %1070
        %v1073 = vadd.f32 %v1065, %v1071
        %s1074 = sld [smem:[#allocation7 + $0x61]]
        %v1075 = vstv %s1074
        %v1076 = vmul.f32 %v311, %v1075
        %1078 = vrot.lane.b32.xlu0 %v1076, 122
        %v1079 = vpop.permute.xlu0 %1078
        %v1081 = vadd.f32 %v1073, %v1079
        %s1082 = sld [smem:[#allocation7 + $0x62]]
        %v1083 = vstv %s1082
        %v1084 = vmul.f32 %v317, %v1083
        %v1085 = vadd.f32 %v1081, %v1084
        %s1086 = sld [smem:[#allocation7 + $0x63]]
        %v1087 = vstv %s1086
        %v1088 = vmul.f32 %v317, %v1087
        %1090 = vrot.lane.b32.xlu0 %v1088, 127
        %v1091 = vpop.permute.xlu0 %1090
        %v1093 = vadd.f32 %v1085, %v1091
        %s1094 = sld [smem:[#allocation7 + $0x64]]
        %v1095 = vstv %s1094
        %v1096 = vmul.f32 %v317, %v1095
        %1098 = vrot.lane.b32.xlu0 %v1096, 126
        %v1099 = vpop.permute.xlu0 %1098
        %v1101 = vadd.f32 %v1093, %v1099
        %s1102 = sld [smem:[#allocation7 + $0x65]]
        %v1103 = vstv %s1102
        %v1104 = vmul.f32 %v317, %v1103
        %1106 = vrot.lane.b32.xlu0 %v1104, 125
        %v1107 = vpop.permute.xlu0 %1106
        %v1109 = vadd.f32 %v1101, %v1107
        %s1110 = sld [smem:[#allocation7 + $0x66]]
        %v1111 = vstv %s1110
        %v1112 = vmul.f32 %v317, %v1111
        %1114 = vrot.lane.b32.xlu0 %v1112, 124
        %v1115 = vpop.permute.xlu0 %1114
        %v1117 = vadd.f32 %v1109, %v1115
        %s1118 = sld [smem:[#allocation7 + $0x67]]
        %v1119 = vstv %s1118
        %v1120 = vmul.f32 %v317, %v1119
        %1122 = vrot.lane.b32.xlu0 %v1120, 123
        %v1123 = vpop.permute.xlu0 %1122
        %v1125 = vadd.f32 %v1117, %v1123
        %s1126 = sld [smem:[#allocation7 + $0x68]]
        %v1127 = vstv %s1126
        %v1128 = vmul.f32 %v317, %v1127
        %1130 = vrot.lane.b32.xlu0 %v1128, 122
        %v1131 = vpop.permute.xlu0 %1130
        %v1133 = vadd.f32 %v1125, %v1131
        %s1134 = sld [smem:[#allocation7 + $0x69]]
        %v1135 = vstv %s1134
        %v1136 = vmul.f32 %v323, %v1135
        %v1137 = vadd.f32 %v1133, %v1136
        %s1138 = sld [smem:[#allocation7 + $0x6a]]
        %v1139 = vstv %s1138
        %v1140 = vmul.f32 %v323, %v1139
        %1142 = vrot.lane.b32.xlu0 %v1140, 127
        %v1143 = vpop.permute.xlu0 %1142
        %v1145 = vadd.f32 %v1137, %v1143
        %s1146 = sld [smem:[#allocation7 + $0x6b]]
        %v1147 = vstv %s1146
        %v1148 = vmul.f32 %v323, %v1147
        %1150 = vrot.lane.b32.xlu0 %v1148, 126
        %v1151 = vpop.permute.xlu0 %1150
        %v1153 = vadd.f32 %v1145, %v1151
        %s1154 = sld [smem:[#allocation7 + $0x6c]]
        %v1155 = vstv %s1154
        %v1156 = vmul.f32 %v323, %v1155
        %1158 = vrot.lane.b32.xlu0 %v1156, 125
        %v1159 = vpop.permute.xlu0 %1158
        %v1161 = vadd.f32 %v1153, %v1159
        %s1162 = sld [smem:[#allocation7 + $0x6d]]
        %v1163 = vstv %s1162
        %v1164 = vmul.f32 %v323, %v1163
        %1166 = vrot.lane.b32.xlu0 %v1164, 124
        %v1167 = vpop.permute.xlu0 %1166
        %v1169 = vadd.f32 %v1161, %v1167
        %s1170 = sld [smem:[#allocation7 + $0x6e]]
        %v1171 = vstv %s1170
        %v1172 = vmul.f32 %v323, %v1171
        %1174 = vrot.lane.b32.xlu0 %v1172, 123
        %v1175 = vpop.permute.xlu0 %1174
        %v1177 = vadd.f32 %v1169, %v1175
        %s1178 = sld [smem:[#allocation7 + $0x6f]]
        %v1179 = vstv %s1178
        %v1180 = vmul.f32 %v323, %v1179
        %1182 = vrot.lane.b32.xlu0 %v1180, 122
        %v1183 = vpop.permute.xlu0 %1182
        %v1185 = vadd.f32 %v1177, %v1183
        %s1186 = sld [smem:[#allocation8 + $0x3]]
        %v1187 = vstv %s1186
        %v1188 = vadd.f32 %v1185, %v1187
        %v1189 = vmax.f32 %v1188, 0.0
        %1191 = vrot.lane.b32.xlu0 %v1189, 3
        %v1192 = vpop.permute.xlu0 %1191
        %v1194 = vsel %vm302, 0.0, %v1192
        %v1195 = vsel %vm304, %v1194, 0.0
        %s1196 = sld [smem:[#allocation9]]
        %v1197 = vstv %s1196
        %v1198 = vmul.f32 %v541, %v1197
        %v1199 = vadd.f32 %v1198, 0.0
        %s1200 = sld [smem:[#allocation9 + $0x1]]
        %v1201 = vstv %s1200
        %v1202 = vmul.f32 %v541, %v1201
        %1204 = vrot.lane.b32.xlu0 %v1202, 127
        %v1205 = vpop.permute.xlu0 %1204
        %v1207 = vadd.f32 %v1199, %v1205
        %s1208 = sld [smem:[#allocation9 + $0x2]]
        %v1209 = vstv %s1208
        %v1210 = vmul.f32 %v541, %v1209
        %1212 = vrot.lane.b32.xlu0 %v1210, 126
        %v1213 = vpop.permute.xlu0 %1212
        %v1215 = vadd.f32 %v1207, %v1213
        %s1216 = sld [smem:[#allocation9 + $0x3]]
        %v1217 = vstv %s1216
        %v1218 = vmul.f32 %v541, %v1217
        %1220 = vrot.lane.b32.xlu0 %v1218, 125
        %v1221 = vpop.permute.xlu0 %1220
        %v1223 = vadd.f32 %v1215, %v1221
        %s1224 = sld [smem:[#allocation9 + $0x4]]
        %v1225 = vstv %s1224
        %v1226 = vmul.f32 %v541, %v1225
        %1228 = vrot.lane.b32.xlu0 %v1226, 124
        %v1229 = vpop.permute.xlu0 %1228
        %v1231 = vadd.f32 %v1223, %v1229
        %s1232 = sld [smem:[#allocation9 + $0x5]]
        %v1233 = vstv %s1232
        %v1234 = vmul.f32 %v541, %v1233
        %1236 = vrot.lane.b32.xlu0 %v1234, 123
        %v1237 = vpop.permute.xlu0 %1236
        %v1239 = vadd.f32 %v1231, %v1237
        %s1240 = sld [smem:[#allocation9 + $0x6]]
        %v1241 = vstv %s1240
        %v1242 = vmul.f32 %v541, %v1241
        %1244 = vrot.lane.b32.xlu0 %v1242, 122
        %v1245 = vpop.permute.xlu0 %1244
        %v1247 = vadd.f32 %v1239, %v1245
        %s1248 = sld [smem:[#allocation9 + $0x7]]
        %v1249 = vstv %s1248
        %v1250 = vmul.f32 %v759, %v1249
        %v1251 = vadd.f32 %v1247, %v1250
        %s1252 = sld [smem:[#allocation9 + $0x8]]
        %v1253 = vstv %s1252
        %v1254 = vmul.f32 %v759, %v1253
        %1256 = vrot.lane.b32.xlu0 %v1254, 127
        %v1257 = vpop.permute.xlu0 %1256
        %v1259 = vadd.f32 %v1251, %v1257
        %s1260 = sld [smem:[#allocation9 + $0x9]]
        %v1261 = vstv %s1260
        %v1262 = vmul.f32 %v759, %v1261
        %1264 = vrot.lane.b32.xlu0 %v1262, 126
        %v1265 = vpop.permute.xlu0 %1264
        %v1267 = vadd.f32 %v1259, %v1265
        %s1268 = sld [smem:[#allocation9 + $0xa]]
        %v1269 = vstv %s1268
        %v1270 = vmul.f32 %v759, %v1269
        %1272 = vrot.lane.b32.xlu0 %v1270, 125
        %v1273 = vpop.permute.xlu0 %1272
        %v1275 = vadd.f32 %v1267, %v1273
        %s1276 = sld [smem:[#allocation9 + $0xb]]
        %v1277 = vstv %s1276
        %v1278 = vmul.f32 %v759, %v1277
        %1280 = vrot.lane.b32.xlu0 %v1278, 124
        %v1281 = vpop.permute.xlu0 %1280
        %v1283 = vadd.f32 %v1275, %v1281
        %s1284 = sld [smem:[#allocation9 + $0xc]]
        %v1285 = vstv %s1284
        %v1286 = vmul.f32 %v759, %v1285
        %1288 = vrot.lane.b32.xlu0 %v1286, 123
        %v1289 = vpop.permute.xlu0 %1288
        %v1291 = vadd.f32 %v1283, %v1289
        %s1292 = sld [smem:[#allocation9 + $0xd]]
        %v1293 = vstv %s1292
        %v1294 = vmul.f32 %v759, %v1293
        %1296 = vrot.lane.b32.xlu0 %v1294, 122
        %v1297 = vpop.permute.xlu0 %1296
        %v1299 = vadd.f32 %v1291, %v1297
        %s1300 = sld [smem:[#allocation9 + $0xe]]
        %v1301 = vstv %s1300
        %v1302 = vmul.f32 %v977, %v1301
        %v1303 = vadd.f32 %v1299, %v1302
        %s1304 = sld [smem:[#allocation9 + $0xf]]
        %v1305 = vstv %s1304
        %v1306 = vmul.f32 %v977, %v1305
        %1308 = vrot.lane.b32.xlu0 %v1306, 127
        %v1309 = vpop.permute.xlu0 %1308
        %v1311 = vadd.f32 %v1303, %v1309
        %s1312 = sld [smem:[#allocation9 + $0x10]]
        %v1313 = vstv %s1312
        %v1314 = vmul.f32 %v977, %v1313
        %1316 = vrot.lane.b32.xlu0 %v1314, 126
        %v1317 = vpop.permute.xlu0 %1316
        %v1319 = vadd.f32 %v1311, %v1317
        %s1320 = sld [smem:[#allocation9 + $0x11]]
        %v1321 = vstv %s1320
        %v1322 = vmul.f32 %v977, %v1321
        %1324 = vrot.lane.b32.xlu0 %v1322, 125
        %v1325 = vpop.permute.xlu0 %1324
        %v1327 = vadd.f32 %v1319, %v1325
        %s1328 = sld [smem:[#allocation9 + $0x12]]
        %v1329 = vstv %s1328
        %v1330 = vmul.f32 %v977, %v1329
        %1332 = vrot.lane.b32.xlu0 %v1330, 124
        %v1333 = vpop.permute.xlu0 %1332
        %v1335 = vadd.f32 %v1327, %v1333
        %s1336 = sld [smem:[#allocation9 + $0x13]]
        %v1337 = vstv %s1336
        %v1338 = vmul.f32 %v977, %v1337
        %1340 = vrot.lane.b32.xlu0 %v1338, 123
        %v1341 = vpop.permute.xlu0 %1340
        %v1343 = vadd.f32 %v1335, %v1341
        %s1344 = sld [smem:[#allocation9 + $0x14]]
        %v1345 = vstv %s1344
        %v1346 = vmul.f32 %v977, %v1345
        %1348 = vrot.lane.b32.xlu0 %v1346, 122
        %v1349 = vpop.permute.xlu0 %1348
        %v1351 = vadd.f32 %v1343, %v1349
        %s1352 = sld [smem:[#allocation9 + $0x15]]
        %v1353 = vstv %s1352
        %v1354 = vmul.f32 %v1195, %v1353
        %v1355 = vadd.f32 %v1351, %v1354
        %s1356 = sld [smem:[#allocation9 + $0x16]]
        %v1357 = vstv %s1356
        %v1358 = vmul.f32 %v1195, %v1357
        %1360 = vrot.lane.b32.xlu0 %v1358, 127
        %v1361 = vpop.permute.xlu0 %1360
        %v1363 = vadd.f32 %v1355, %v1361
        %s1364 = sld [smem:[#allocation9 + $0x17]]
        %v1365 = vstv %s1364
        %v1366 = vmul.f32 %v1195, %v1365
        %1368 = vrot.lane.b32.xlu0 %v1366, 126
        %v1369 = vpop.permute.xlu0 %1368
        %v1371 = vadd.f32 %v1363, %v1369
        %s1372 = sld [smem:[#allocation9 + $0x18]]
        %v1373 = vstv %s1372
        %v1374 = vmul.f32 %v1195, %v1373
        %1376 = vrot.lane.b32.xlu0 %v1374, 125
        %v1377 = vpop.permute.xlu0 %1376
        %v1379 = vadd.f32 %v1371, %v1377
        %s1380 = sld [smem:[#allocation9 + $0x19]]
        %v1381 = vstv %s1380
        %v1382 = vmul.f32 %v1195, %v1381
        %1384 = vrot.lane.b32.xlu0 %v1382, 124
        %v1385 = vpop.permute.xlu0 %1384
        %v1387 = vadd.f32 %v1379, %v1385
        %s1388 = sld [smem:[#allocation9 + $0x1a]]
        %v1389 = vstv %s1388
        %v1390 = vmul.f32 %v1195, %v1389
        %1392 = vrot.lane.b32.xlu0 %v1390, 123
        %v1393 = vpop.permute.xlu0 %1392
        %v1395 = vadd.f32 %v1387, %v1393
        %s1396 = sld [smem:[#allocation9 + $0x1b]]
        %v1397 = vstv %s1396
        %v1398 = vmul.f32 %v1195, %v1397
        %1400 = vrot.lane.b32.xlu0 %v1398, 122
        %v1401 = vpop.permute.xlu0 %1400
        %v1403 = vadd.f32 %v1395, %v1401
        %s1404 = sld [smem:[#allocation11]]
        %v1405 = vstv %s1404
        %v1406 = vadd.f32 %v1403, %v1405
        %v1407 = vadd.f32 %v1406, %v294
        %v1408 = vmax.f32 %v1407, 0.0
        %s1409 = sld [smem:[#allocation9 + $0x1c]]
        %v1410 = vstv %s1409
        %v1411 = vmul.f32 %v541, %v1410
        %v1412 = vadd.f32 %v1411, 0.0
        %s1413 = sld [smem:[#allocation9 + $0x1d]]
        %v1414 = vstv %s1413
        %v1415 = vmul.f32 %v541, %v1414
        %1417 = vrot.lane.b32.xlu0 %v1415, 127
        %v1418 = vpop.permute.xlu0 %1417
        %v1420 = vadd.f32 %v1412, %v1418
        %s1421 = sld [smem:[#allocation9 + $0x1e]]
        %v1422 = vstv %s1421
        %v1423 = vmul.f32 %v541, %v1422
        %1425 = vrot.lane.b32.xlu0 %v1423, 126
        %v1426 = vpop.permute.xlu0 %1425
        %v1428 = vadd.f32 %v1420, %v1426
        %s1429 = sld [smem:[#allocation9 + $0x1f]]
        %v1430 = vstv %s1429
        %v1431 = vmul.f32 %v541, %v1430
        %1433 = vrot.lane.b32.xlu0 %v1431, 125
        %v1434 = vpop.permute.xlu0 %1433
        %v1436 = vadd.f32 %v1428, %v1434
        %s1437 = sld [smem:[#allocation9 + $0x20]]
        %v1438 = vstv %s1437
        %v1439 = vmul.f32 %v541, %v1438
        %1441 = vrot.lane.b32.xlu0 %v1439, 124
        %v1442 = vpop.permute.xlu0 %1441
        %v1444 = vadd.f32 %v1436, %v1442
        %s1445 = sld [smem:[#allocation9 + $0x21]]
        %v1446 = vstv %s1445
        %v1447 = vmul.f32 %v541, %v1446
        %1449 = vrot.lane.b32.xlu0 %v1447, 123
        %v1450 = vpop.permute.xlu0 %1449
        %v1452 = vadd.f32 %v1444, %v1450
        %s1453 = sld [smem:[#allocation9 + $0x22]]
        %v1454 = vstv %s1453
        %v1455 = vmul.f32 %v541, %v1454
        %1457 = vrot.lane.b32.xlu0 %v1455, 122
        %v1458 = vpop.permute.xlu0 %1457
        %v1460 = vadd.f32 %v1452, %v1458
        %s1461 = sld [smem:[#allocation9 + $0x23]]
        %v1462 = vstv %s1461
        %v1463 = vmul.f32 %v759, %v1462
        %v1464 = vadd.f32 %v1460, %v1463
        %s1465 = sld [smem:[#allocation9 + $0x24]]
        %v1466 = vstv %s1465
        %v1467 = vmul.f32 %v759, %v1466
        %1469 = vrot.lane.b32.xlu0 %v1467, 127
        %v1470 = vpop.permute.xlu0 %1469
        %v1472 = vadd.f32 %v1464, %v1470
        %s1473 = sld [smem:[#allocation9 + $0x25]]
        %v1474 = vstv %s1473
        %v1475 = vmul.f32 %v759, %v1474
        %1477 = vrot.lane.b32.xlu0 %v1475, 126
        %v1478 = vpop.permute.xlu0 %1477
        %v1480 = vadd.f32 %v1472, %v1478
        %s1481 = sld [smem:[#allocation9 + $0x26]]
        %v1482 = vstv %s1481
        %v1483 = vmul.f32 %v759, %v1482
        %1485 = vrot.lane.b32.xlu0 %v1483, 125
        %v1486 = vpop.permute.xlu0 %1485
        %v1488 = vadd.f32 %v1480, %v1486
        %s1489 = sld [smem:[#allocation9 + $0x27]]
        %v1490 = vstv %s1489
        %v1491 = vmul.f32 %v759, %v1490
        %1493 = vrot.lane.b32.xlu0 %v1491, 124
        %v1494 = vpop.permute.xlu0 %1493
        %v1496 = vadd.f32 %v1488, %v1494
        %s1497 = sld [smem:[#allocation9 + $0x28]]
        %v1498 = vstv %s1497
        %v1499 = vmul.f32 %v759, %v1498
        %1501 = vrot.lane.b32.xlu0 %v1499, 123
        %v1502 = vpop.permute.xlu0 %1501
        %v1504 = vadd.f32 %v1496, %v1502
        %s1505 = sld [smem:[#allocation9 + $0x29]]
        %v1506 = vstv %s1505
        %v1507 = vmul.f32 %v759, %v1506
        %1509 = vrot.lane.b32.xlu0 %v1507, 122
        %v1510 = vpop.permute.xlu0 %1509
        %v1512 = vadd.f32 %v1504, %v1510
        %s1513 = sld [smem:[#allocation9 + $0x2a]]
        %v1514 = vstv %s1513
        %v1515 = vmul.f32 %v977, %v1514
        %v1516 = vadd.f32 %v1512, %v1515
        %s1517 = sld [smem:[#allocation9 + $0x2b]]
        %v1518 = vstv %s1517
        %v1519 = vmul.f32 %v977, %v1518
        %1521 = vrot.lane.b32.xlu0 %v1519, 127
        %v1522 = vpop.permute.xlu0 %1521
        %v1524 = vadd.f32 %v1516, %v1522
        %s1525 = sld [smem:[#allocation9 + $0x2c]]
        %v1526 = vstv %s1525
        %v1527 = vmul.f32 %v977, %v1526
        %1529 = vrot.lane.b32.xlu0 %v1527, 126
        %v1530 = vpop.permute.xlu0 %1529
        %v1532 = vadd.f32 %v1524, %v1530
        %s1533 = sld [smem:[#allocation9 + $0x2d]]
        %v1534 = vstv %s1533
        %v1535 = vmul.f32 %v977, %v1534
        %1537 = vrot.lane.b32.xlu0 %v1535, 125
        %v1538 = vpop.permute.xlu0 %1537
        %v1540 = vadd.f32 %v1532, %v1538
        %s1541 = sld [smem:[#allocation9 + $0x2e]]
        %v1542 = vstv %s1541
        %v1543 = vmul.f32 %v977, %v1542
        %1545 = vrot.lane.b32.xlu0 %v1543, 124
        %v1546 = vpop.permute.xlu0 %1545
        %v1548 = vadd.f32 %v1540, %v1546
        %s1549 = sld [smem:[#allocation9 + $0x2f]]
        %v1550 = vstv %s1549
        %v1551 = vmul.f32 %v977, %v1550
        %1553 = vrot.lane.b32.xlu0 %v1551, 123
        %v1554 = vpop.permute.xlu0 %1553
        %v1556 = vadd.f32 %v1548, %v1554
        %s1557 = sld [smem:[#allocation9 + $0x30]]
        %v1558 = vstv %s1557
        %v1559 = vmul.f32 %v977, %v1558
        %1561 = vrot.lane.b32.xlu0 %v1559, 122
        %v1562 = vpop.permute.xlu0 %1561
        %v1564 = vadd.f32 %v1556, %v1562
        %s1565 = sld [smem:[#allocation9 + $0x31]]
        %v1566 = vstv %s1565
        %v1567 = vmul.f32 %v1195, %v1566
        %v1568 = vadd.f32 %v1564, %v1567
        %s1569 = sld [smem:[#allocation9 + $0x32]]
        %v1570 = vstv %s1569
        %v1571 = vmul.f32 %v1195, %v1570
        %1573 = vrot.lane.b32.xlu0 %v1571, 127
        %v1574 = vpop.permute.xlu0 %1573
        %v1576 = vadd.f32 %v1568, %v1574
        %s1577 = sld [smem:[#allocation9 + $0x33]]
        %v1578 = vstv %s1577
        %v1579 = vmul.f32 %v1195, %v1578
        %1581 = vrot.lane.b32.xlu0 %v1579, 126
        %v1582 = vpop.permute.xlu0 %1581
        %v1584 = vadd.f32 %v1576, %v1582
        %s1585 = sld [smem:[#allocation9 + $0x34]]
        %v1586 = vstv %s1585
        %v1587 = vmul.f32 %v1195, %v1586
        %1589 = vrot.lane.b32.xlu0 %v1587, 125
        %v1590 = vpop.permute.xlu0 %1589
        %v1592 = vadd.f32 %v1584, %v1590
        %s1593 = sld [smem:[#allocation9 + $0x35]]
        %v1594 = vstv %s1593
        %v1595 = vmul.f32 %v1195, %v1594
        %1597 = vrot.lane.b32.xlu0 %v1595, 124
        %v1598 = vpop.permute.xlu0 %1597
        %v1600 = vadd.f32 %v1592, %v1598
        %s1601 = sld [smem:[#allocation9 + $0x36]]
        %v1602 = vstv %s1601
        %v1603 = vmul.f32 %v1195, %v1602
        %1605 = vrot.lane.b32.xlu0 %v1603, 123
        %v1606 = vpop.permute.xlu0 %1605
        %v1608 = vadd.f32 %v1600, %v1606
        %s1609 = sld [smem:[#allocation9 + $0x37]]
        %v1610 = vstv %s1609
        %v1611 = vmul.f32 %v1195, %v1610
        %1613 = vrot.lane.b32.xlu0 %v1611, 122
        %v1614 = vpop.permute.xlu0 %1613
        %v1616 = vadd.f32 %v1608, %v1614
        %s1617 = sld [smem:[#allocation11 + $0x1]]
        %v1618 = vstv %s1617
        %v1619 = vadd.f32 %v1616, %v1618
        %v1620 = vadd.f32 %v1619, %v295
        %v1621 = vmax.f32 %v1620, 0.0
        %s1622 = sld [smem:[#allocation9 + $0x38]]
        %v1623 = vstv %s1622
        %v1624 = vmul.f32 %v541, %v1623
        %v1625 = vadd.f32 %v1624, 0.0
        %s1626 = sld [smem:[#allocation9 + $0x39]]
        %v1627 = vstv %s1626
        %v1628 = vmul.f32 %v541, %v1627
        %1630 = vrot.lane.b32.xlu0 %v1628, 127
        %v1631 = vpop.permute.xlu0 %1630
        %v1633 = vadd.f32 %v1625, %v1631
        %s1634 = sld [smem:[#allocation9 + $0x3a]]
        %v1635 = vstv %s1634
        %v1636 = vmul.f32 %v541, %v1635
        %1638 = vrot.lane.b32.xlu0 %v1636, 126
        %v1639 = vpop.permute.xlu0 %1638
        %v1641 = vadd.f32 %v1633, %v1639
        %s1642 = sld [smem:[#allocation9 + $0x3b]]
        %v1643 = vstv %s1642
        %v1644 = vmul.f32 %v541, %v1643
        %1646 = vrot.lane.b32.xlu0 %v1644, 125
        %v1647 = vpop.permute.xlu0 %1646
        %v1649 = vadd.f32 %v1641, %v1647
        %s1650 = sld [smem:[#allocation9 + $0x3c]]
        %v1651 = vstv %s1650
        %v1652 = vmul.f32 %v541, %v1651
        %1654 = vrot.lane.b32.xlu0 %v1652, 124
        %v1655 = vpop.permute.xlu0 %1654
        %v1657 = vadd.f32 %v1649, %v1655
        %s1658 = sld [smem:[#allocation9 + $0x3d]]
        %v1659 = vstv %s1658
        %v1660 = vmul.f32 %v541, %v1659
        %1662 = vrot.lane.b32.xlu0 %v1660, 123
        %v1663 = vpop.permute.xlu0 %1662
        %v1665 = vadd.f32 %v1657, %v1663
        %s1666 = sld [smem:[#allocation9 + $0x3e]]
        %v1667 = vstv %s1666
        %v1668 = vmul.f32 %v541, %v1667
        %1670 = vrot.lane.b32.xlu0 %v1668, 122
        %v1671 = vpop.permute.xlu0 %1670
        %v1673 = vadd.f32 %v1665, %v1671
        %s1674 = sld [smem:[#allocation9 + $0x3f]]
        %v1675 = vstv %s1674
        %v1676 = vmul.f32 %v759, %v1675
        %v1677 = vadd.f32 %v1673, %v1676
        %s1678 = sld [smem:[#allocation9 + $0x40]]
        %v1679 = vstv %s1678
        %v1680 = vmul.f32 %v759, %v1679
        %1682 = vrot.lane.b32.xlu0 %v1680, 127
        %v1683 = vpop.permute.xlu0 %1682
        %v1685 = vadd.f32 %v1677, %v1683
        %s1686 = sld [smem:[#allocation9 + $0x41]]
        %v1687 = vstv %s1686
        %v1688 = vmul.f32 %v759, %v1687
        %1690 = vrot.lane.b32.xlu0 %v1688, 126
        %v1691 = vpop.permute.xlu0 %1690
        %v1693 = vadd.f32 %v1685, %v1691
        %s1694 = sld [smem:[#allocation9 + $0x42]]
        %v1695 = vstv %s1694
        %v1696 = vmul.f32 %v759, %v1695
        %1698 = vrot.lane.b32.xlu0 %v1696, 125
        %v1699 = vpop.permute.xlu0 %1698
        %v1701 = vadd.f32 %v1693, %v1699
        %s1702 = sld [smem:[#allocation9 + $0x43]]
        %v1703 = vstv %s1702
        %v1704 = vmul.f32 %v759, %v1703
        %1706 = vrot.lane.b32.xlu0 %v1704, 124
        %v1707 = vpop.permute.xlu0 %1706
        %v1709 = vadd.f32 %v1701, %v1707
        %s1710 = sld [smem:[#allocation9 + $0x44]]
        %v1711 = vstv %s1710
        %v1712 = vmul.f32 %v759, %v1711
        %1714 = vrot.lane.b32.xlu0 %v1712, 123
        %v1715 = vpop.permute.xlu0 %1714
        %v1717 = vadd.f32 %v1709, %v1715
        %s1718 = sld [smem:[#allocation9 + $0x45]]
        %v1719 = vstv %s1718
        %v1720 = vmul.f32 %v759, %v1719
        %1722 = vrot.lane.b32.xlu0 %v1720, 122
        %v1723 = vpop.permute.xlu0 %1722
        %v1725 = vadd.f32 %v1717, %v1723
        %s1726 = sld [smem:[#allocation9 + $0x46]]
        %v1727 = vstv %s1726
        %v1728 = vmul.f32 %v977, %v1727
        %v1729 = vadd.f32 %v1725, %v1728
        %s1730 = sld [smem:[#allocation9 + $0x47]]
        %v1731 = vstv %s1730
        %v1732 = vmul.f32 %v977, %v1731
        %1734 = vrot.lane.b32.xlu0 %v1732, 127
        %v1735 = vpop.permute.xlu0 %1734
        %v1737 = vadd.f32 %v1729, %v1735
        %s1738 = sld [smem:[#allocation9 + $0x48]]
        %v1739 = vstv %s1738
        %v1740 = vmul.f32 %v977, %v1739
        %1742 = vrot.lane.b32.xlu0 %v1740, 126
        %v1743 = vpop.permute.xlu0 %1742
        %v1745 = vadd.f32 %v1737, %v1743
        %s1746 = sld [smem:[#allocation9 + $0x49]]
        %v1747 = vstv %s1746
        %v1748 = vmul.f32 %v977, %v1747
        %1750 = vrot.lane.b32.xlu0 %v1748, 125
        %v1751 = vpop.permute.xlu0 %1750
        %v1753 = vadd.f32 %v1745, %v1751
        %s1754 = sld [smem:[#allocation9 + $0x4a]]
        %v1755 = vstv %s1754
        %v1756 = vmul.f32 %v977, %v1755
        %1758 = vrot.lane.b32.xlu0 %v1756, 124
        %v1759 = vpop.permute.xlu0 %1758
        %v1761 = vadd.f32 %v1753, %v1759
        %s1762 = sld [smem:[#allocation9 + $0x4b]]
        %v1763 = vstv %s1762
        %v1764 = vmul.f32 %v977, %v1763
        %1766 = vrot.lane.b32.xlu0 %v1764, 123
        %v1767 = vpop.permute.xlu0 %1766
        %v1769 = vadd.f32 %v1761, %v1767
        %s1770 = sld [smem:[#allocation9 + $0x4c]]
        %v1771 = vstv %s1770
        %v1772 = vmul.f32 %v977, %v1771
        %1774 = vrot.lane.b32.xlu0 %v1772, 122
        %v1775 = vpop.permute.xlu0 %1774
        %v1777 = vadd.f32 %v1769, %v1775
        %s1778 = sld [smem:[#allocation9 + $0x4d]]
        %v1779 = vstv %s1778
        %v1780 = vmul.f32 %v1195, %v1779
        %v1781 = vadd.f32 %v1777, %v1780
        %s1782 = sld [smem:[#allocation9 + $0x4e]]
        %v1783 = vstv %s1782
        %v1784 = vmul.f32 %v1195, %v1783
        %1786 = vrot.lane.b32.xlu0 %v1784, 127
        %v1787 = vpop.permute.xlu0 %1786
        %v1789 = vadd.f32 %v1781, %v1787
        %s1790 = sld [smem:[#allocation9 + $0x4f]]
        %v1791 = vstv %s1790
        %v1792 = vmul.f32 %v1195, %v1791
        %1794 = vrot.lane.b32.xlu0 %v1792, 126
        %v1795 = vpop.permute.xlu0 %1794
        %v1797 = vadd.f32 %v1789, %v1795
        %s1798 = sld [smem:[#allocation9 + $0x50]]
        %v1799 = vstv %s1798
        %v1800 = vmul.f32 %v1195, %v1799
        %1802 = vrot.lane.b32.xlu0 %v1800, 125
        %v1803 = vpop.permute.xlu0 %1802
        %v1805 = vadd.f32 %v1797, %v1803
        %s1806 = sld [smem:[#allocation9 + $0x51]]
        %v1807 = vstv %s1806
        %v1808 = vmul.f32 %v1195, %v1807
        %1810 = vrot.lane.b32.xlu0 %v1808, 124
        %v1811 = vpop.permute.xlu0 %1810
        %v1813 = vadd.f32 %v1805, %v1811
        %s1814 = sld [smem:[#allocation9 + $0x52]]
        %v1815 = vstv %s1814
        %v1816 = vmul.f32 %v1195, %v1815
        %1818 = vrot.lane.b32.xlu0 %v1816, 123
        %v1819 = vpop.permute.xlu0 %1818
        %v1821 = vadd.f32 %v1813, %v1819
        %s1822 = sld [smem:[#allocation9 + $0x53]]
        %v1823 = vstv %s1822
        %v1824 = vmul.f32 %v1195, %v1823
        %1826 = vrot.lane.b32.xlu0 %v1824, 122
        %v1827 = vpop.permute.xlu0 %1826
        %v1829 = vadd.f32 %v1821, %v1827
        %s1830 = sld [smem:[#allocation11 + $0x2]]
        %v1831 = vstv %s1830
        %v1832 = vadd.f32 %v1829, %v1831
        %v1833 = vadd.f32 %v1832, %v296
        %v1834 = vmax.f32 %v1833, 0.0
        %s1835 = sld [smem:[#allocation9 + $0x54]]
        %v1836 = vstv %s1835
        %v1837 = vmul.f32 %v541, %v1836
        %v1838 = vadd.f32 %v1837, 0.0
        %s1839 = sld [smem:[#allocation9 + $0x55]]
        %v1840 = vstv %s1839
        %v1841 = vmul.f32 %v541, %v1840
        %1843 = vrot.lane.b32.xlu0 %v1841, 127
        %v1844 = vpop.permute.xlu0 %1843
        %v1846 = vadd.f32 %v1838, %v1844
        %s1847 = sld [smem:[#allocation9 + $0x56]]
        %v1848 = vstv %s1847
        %v1849 = vmul.f32 %v541, %v1848
        %1851 = vrot.lane.b32.xlu0 %v1849, 126
        %v1852 = vpop.permute.xlu0 %1851
        %v1854 = vadd.f32 %v1846, %v1852
        %s1855 = sld [smem:[#allocation9 + $0x57]]
        %v1856 = vstv %s1855
        %v1857 = vmul.f32 %v541, %v1856
        %1859 = vrot.lane.b32.xlu0 %v1857, 125
        %v1860 = vpop.permute.xlu0 %1859
        %v1862 = vadd.f32 %v1854, %v1860
        %s1863 = sld [smem:[#allocation9 + $0x58]]
        %v1864 = vstv %s1863
        %v1865 = vmul.f32 %v541, %v1864
        %1867 = vrot.lane.b32.xlu0 %v1865, 124
        %v1868 = vpop.permute.xlu0 %1867
        %v1870 = vadd.f32 %v1862, %v1868
        %s1871 = sld [smem:[#allocation9 + $0x59]]
        %v1872 = vstv %s1871
        %v1873 = vmul.f32 %v541, %v1872
        %1875 = vrot.lane.b32.xlu0 %v1873, 123
        %v1876 = vpop.permute.xlu0 %1875
        %v1878 = vadd.f32 %v1870, %v1876
        %s1879 = sld [smem:[#allocation9 + $0x5a]]
        %v1880 = vstv %s1879
        %v1881 = vmul.f32 %v541, %v1880
        %1883 = vrot.lane.b32.xlu0 %v1881, 122
        %v1884 = vpop.permute.xlu0 %1883
        %v1886 = vadd.f32 %v1878, %v1884
        %s1887 = sld [smem:[#allocation9 + $0x5b]]
        %v1888 = vstv %s1887
        %v1889 = vmul.f32 %v759, %v1888
        %v1890 = vadd.f32 %v1886, %v1889
        %s1891 = sld [smem:[#allocation9 + $0x5c]]
        %v1892 = vstv %s1891
        %v1893 = vmul.f32 %v759, %v1892
        %1895 = vrot.lane.b32.xlu0 %v1893, 127
        %v1896 = vpop.permute.xlu0 %1895
        %v1898 = vadd.f32 %v1890, %v1896
        %s1899 = sld [smem:[#allocation9 + $0x5d]]
        %v1900 = vstv %s1899
        %v1901 = vmul.f32 %v759, %v1900
        %1903 = vrot.lane.b32.xlu0 %v1901, 126
        %v1904 = vpop.permute.xlu0 %1903
        %v1906 = vadd.f32 %v1898, %v1904
        %s1907 = sld [smem:[#allocation9 + $0x5e]]
        %v1908 = vstv %s1907
        %v1909 = vmul.f32 %v759, %v1908
        %1911 = vrot.lane.b32.xlu0 %v1909, 125
        %v1912 = vpop.permute.xlu0 %1911
        %v1914 = vadd.f32 %v1906, %v1912
        %s1915 = sld [smem:[#allocation9 + $0x5f]]
        %v1916 = vstv %s1915
        %v1917 = vmul.f32 %v759, %v1916
        %1919 = vrot.lane.b32.xlu0 %v1917, 124
        %v1920 = vpop.permute.xlu0 %1919
        %v1922 = vadd.f32 %v1914, %v1920
        %s1923 = sld [smem:[#allocation9 + $0x60]]
        %v1924 = vstv %s1923
        %v1925 = vmul.f32 %v759, %v1924
        %1927 = vrot.lane.b32.xlu0 %v1925, 123
        %v1928 = vpop.permute.xlu0 %1927
        %v1930 = vadd.f32 %v1922, %v1928
        %s1931 = sld [smem:[#allocation9 + $0x61]]
        %v1932 = vstv %s1931
        %v1933 = vmul.f32 %v759, %v1932
        %1935 = vrot.lane.b32.xlu0 %v1933, 122
        %v1936 = vpop.permute.xlu0 %1935
        %v1938 = vadd.f32 %v1930, %v1936
        %s1939 = sld [smem:[#allocation9 + $0x62]]
        %v1940 = vstv %s1939
        %v1941 = vmul.f32 %v977, %v1940
        %v1942 = vadd.f32 %v1938, %v1941
        %s1943 = sld [smem:[#allocation9 + $0x63]]
        %v1944 = vstv %s1943
        %v1945 = vmul.f32 %v977, %v1944
        %1947 = vrot.lane.b32.xlu0 %v1945, 127
        %v1948 = vpop.permute.xlu0 %1947
        %v1950 = vadd.f32 %v1942, %v1948
        %s1951 = sld [smem:[#allocation9 + $0x64]]
        %v1952 = vstv %s1951
        %v1953 = vmul.f32 %v977, %v1952
        %1955 = vrot.lane.b32.xlu0 %v1953, 126
        %v1956 = vpop.permute.xlu0 %1955
        %v1958 = vadd.f32 %v1950, %v1956
        %s1959 = sld [smem:[#allocation9 + $0x65]]
        %v1960 = vstv %s1959
        %v1961 = vmul.f32 %v977, %v1960
        %1963 = vrot.lane.b32.xlu0 %v1961, 125
        %v1964 = vpop.permute.xlu0 %1963
        %v1966 = vadd.f32 %v1958, %v1964
        %s1967 = sld [smem:[#allocation9 + $0x66]]
        %v1968 = vstv %s1967
        %v1969 = vmul.f32 %v977, %v1968
        %1971 = vrot.lane.b32.xlu0 %v1969, 124
        %v1972 = vpop.permute.xlu0 %1971
        %v1974 = vadd.f32 %v1966, %v1972
        %s1975 = sld [smem:[#allocation9 + $0x67]]
        %v1976 = vstv %s1975
        %v1977 = vmul.f32 %v977, %v1976
        %1979 = vrot.lane.b32.xlu0 %v1977, 123
        %v1980 = vpop.permute.xlu0 %1979
        %v1982 = vadd.f32 %v1974, %v1980
        %s1983 = sld [smem:[#allocation9 + $0x68]]
        %v1984 = vstv %s1983
        %v1985 = vmul.f32 %v977, %v1984
        %1987 = vrot.lane.b32.xlu0 %v1985, 122
        %v1988 = vpop.permute.xlu0 %1987
        %v1990 = vadd.f32 %v1982, %v1988
        %s1991 = sld [smem:[#allocation9 + $0x69]]
        %v1992 = vstv %s1991
        %v1993 = vmul.f32 %v1195, %v1992
        %v1994 = vadd.f32 %v1990, %v1993
        %s1995 = sld [smem:[#allocation9 + $0x6a]]
        %v1996 = vstv %s1995
        %v1997 = vmul.f32 %v1195, %v1996
        %1999 = vrot.lane.b32.xlu0 %v1997, 127
        %v2000 = vpop.permute.xlu0 %1999
        %v2002 = vadd.f32 %v1994, %v2000
        %s2003 = sld [smem:[#allocation9 + $0x6b]]
        %v2004 = vstv %s2003
        %v2005 = vmul.f32 %v1195, %v2004
        %2007 = vrot.lane.b32.xlu0 %v2005, 126
        %v2008 = vpop.permute.xlu0 %2007
        %v2010 = vadd.f32 %v2002, %v2008
        %s2011 = sld [smem:[#allocation9 + $0x6c]]
        %v2012 = vstv %s2011
        %v2013 = vmul.f32 %v1195, %v2012
        %2015 = vrot.lane.b32.xlu0 %v2013, 125
        %v2016 = vpop.permute.xlu0 %2015
        %v2018 = vadd.f32 %v2010, %v2016
        %s2019 = sld [smem:[#allocation9 + $0x6d]]
        %v2020 = vstv %s2019
        %v2021 = vmul.f32 %v1195, %v2020
        %2023 = vrot.lane.b32.xlu0 %v2021, 124
        %v2024 = vpop.permute.xlu0 %2023
        %v2026 = vadd.f32 %v2018, %v2024
        %s2027 = sld [smem:[#allocation9 + $0x6e]]
        %v2028 = vstv %s2027
        %v2029 = vmul.f32 %v1195, %v2028
        %2031 = vrot.lane.b32.xlu0 %v2029, 123
        %v2032 = vpop.permute.xlu0 %2031
        %v2034 = vadd.f32 %v2026, %v2032
        %s2035 = sld [smem:[#allocation9 + $0x6f]]
        %v2036 = vstv %s2035
        %v2037 = vmul.f32 %v1195, %v2036
        %2039 = vrot.lane.b32.xlu0 %v2037, 122
        %v2040 = vpop.permute.xlu0 %2039
        %v2042 = vadd.f32 %v2034, %v2040
        %s2043 = sld [smem:[#allocation11 + $0x3]]
        %v2044 = vstv %s2043
        %v2045 = vadd.f32 %v2042, %v2044
        %v2046 = vadd.f32 %v2045, %v297
        %v2047 = vmax.f32 %v2046, 0.0
        %v2049 = vrot.slane %v1621, 7
        %v2052 = vrot.slane %v1834, 6
        %v2055 = vrot.slane %v2047, 5
        %vm2057 = vcmask 1040384
        %v2058 = vsel %vm2057, %v1408, %v2049
        %vm2059 = vcmask 1041408
        %v2060 = vsel %vm2059, %v2058, %v2052
        %vm2061 = vcmask 1042432
        %v2062 = vsel %vm2061, %v2060, %v2055
        %vm2063 = vcmask 125952
        %2064 = vst.msk [vmem:[%s293] sm:$0xf] %vm2063, %v2062
        %s2065 = sand.u32 %s143, 1
        %s2066 = scalar_lea.sflag [#allocation4], %s2065
        %s2067 = sand.u32 %s143, 1
        %s2068 = smul.addr %s2067, 4
        %s2069 = scalar_lea.vmem [#allocation12], %s2068
        // Predicated region
        $region61: #{tpu_custom_call.1} parent=39 // pred_check
          %p2070 = pneg %p153
        $region62: #{tpu_custom_call.1} parent=39 // pred_check_branch
          %2072 = sbr.rel (%p2070) target = $region64
        $region63: #{tpu_custom_call.1} parent=39 // pred_region
          %2074 = vsyncadd %s2066, 0
          %s2075 = smul.addr %s25, 4
          %s2076 = scalar_lea.hbm %s5, %s2075
          %s2078 = sshll.u32 %s2069, 4
          %s2079 = int_to_ptr.vmem [resolvable:$true] %s2078
          %s2080 = sshll.u32 %s2076, 4
          %s2081 = int_to_ptr.hbm [resolvable:$true] %s2080
          %2083 = dma.vmem_to_hbm [thread:$0]  %s2079, 64, %s2081, %s2066
        $region64: #{tpu_custom_call.1} parent=39 // pred_fallthru
          _
      $region40: #{tpu_custom_call.1} parent=5 // pred_fallthru
        _
      %p2084 = scmp.le.s32.totalorder 2, %s20
      // Predicated region
      $region65: #{tpu_custom_call.1} parent=5 // pred_check
        %p2085 = pneg %p2084
      $region66: #{tpu_custom_call.1} parent=5 // pred_check_branch
        %2087 = sbr.rel (%p2085) target = $region68
      $region67: #{tpu_custom_call.1} parent=5 // pred_region
        %s2088 = ssub.s32 %s20, 2
        // Predicated region
        $region69: #{tpu_custom_call.1} parent=67 // pred_check
          %p2089 = pneg %p159
        $region70: #{tpu_custom_call.1} parent=67 // pred_check_branch
          %2091 = sbr.rel (%p2089) target = $region72
        $region71: #{tpu_custom_call.1} parent=67 // pred_region
          %s2092 = sand.u32 %s144, 1
          %s2093 = scalar_lea.sflag [#allocation4], %s2092
          %s2094 = sand.u32 %s144, 1
          %s2095 = smul.addr %s2094, 4
          %s2096 = scalar_lea.vmem [#allocation12], %s2095
          %2098 = dma.done %s2093, 64
        $region72: #{tpu_custom_call.1} parent=67 // pred_fallthru
          _
      $region68: #{tpu_custom_call.1} parent=5 // pred_fallthru
        _
    $region6: #{tpu_custom_call.1} parent=1 // loop_footer
      %s24 = sadd.s32 1, %s20
    $region7: #{tpu_custom_call.1} parent=1 // loop_footer_branch
      %19 = sbr.rel target = $region3
    $region8: #{tpu_custom_call.1} parent=1 // loop_exit
      _
    %2099 = vsyncpa [#allocation3], 1
    %s2100 = scalar_lea.sflag [#allocation3], 1
    %2101 = vsyncpa %s2100, 1
    %2102 = vsyncpa [#allocation4], 1
    %s2103 = scalar_lea.sflag [#allocation4], 1
    %2104 = vsyncpa %s2103, 1
    %2105 = vsyncpa [#allocation5], 1
    %s2106 = scalar_lea.sflag [#allocation5], 1
    %2107 = vsyncpa %s2106, 1
    %2108 = vsyncpa [#allocation6], 1
    %s2109 = scalar_lea.sflag [#allocation6], 1
    %2110 = vsyncpa %s2109, 1
    %2111 = vsyncpa [#allocation10], 1

</llo_original>
